<compile_context>
chip_gen: v6e
topology: v6e:2x2x1
jax: 0.10.0
libtpu: 0.0.40
codegen_flags: <defaults>
</compile_context>

<pallas_src>
import functools
import math

import jax
import jax.numpy as jnp
from jax.experimental import pallas as pl
from jax.experimental.pallas import tpu as pltpu


# --------------------------------------------------------------------------
# helpers
# --------------------------------------------------------------------------
def _row_tile(m, target=256):
    """Largest row tile (multiple of 8 sublanes) that divides m; falls back to m."""
    for t in (target, 512, 256, 128, 64, 32, 16, 8):
        if t <= m and m % t == 0:
            return t
    return m


def _col_tile(n, target=512):
    """Lane-dense column tile (multiple of 128) dividing n; falls back to n."""
    for t in (target, 1024, 512, 256, 128):
        if t <= n and n % t == 0:
            return t
    return n


def _vmem_limit(est_bytes):
    """Scoped-VMEM limit: 2x headroom over the footprint, clamped to [32 MiB, 100 MiB]."""
    return int(min(max(2 * int(est_bytes), 32 * 2**20), 100 * 2**20))


# --------------------------------------------------------------------------
# Kernels
# --------------------------------------------------------------------------
def attn_block_kernel(xq_ref, xkv_ref, *refs, nhead, eps, has_mask):
    """Fused post-norm attention block for one (batch, q-row-tile):
         out = LayerNorm(x_q + MHA(x_q, x_kv) @ Wo + bo)
    Weights are plain (D, D) bf16 (1/sqrt(Dh) folded into Wq/bq); heads are handled by
    lane-slicing the full-width Q/K/V and writing each head's context into a (TQ, D)
    VMEM scratch, so the out-projection is a single D-deep matmul.
    """
    if has_mask:
        (mask_ref, wq_ref, bq_ref, wk_ref, bk_ref, wv_ref, bv_ref,
         wo_ref, bo_ref, g_ref, b_ref, o_ref, ctx_ref) = refs
    else:
        (wq_ref, bq_ref, wk_ref, bk_ref, wv_ref, bv_ref,
         wo_ref, bo_ref, g_ref, b_ref, o_ref, ctx_ref) = refs
        mask_ref = None

    xq = xq_ref[0]                                   # (TQ, D)  query + residual
    xkv = xkv_ref[0]                                 # (Sk, D)
    xq_b = xq.astype(jnp.bfloat16)
    xkv_b = xkv.astype(jnp.bfloat16)

    # Full-width projections: contraction depth D, output width D -> dense MXU.
    q = jnp.dot(xq_b, wq_ref[...], preferred_element_type=jnp.float32) + bq_ref[...]   # (TQ, D)
    k = jnp.dot(xkv_b, wk_ref[...], preferred_element_type=jnp.float32) + bk_ref[...]  # (Sk, D)
    v = jnp.dot(xkv_b, wv_ref[...], preferred_element_type=jnp.float32) + bv_ref[...]  # (Sk, D)

    D = q.shape[-1]
    Dh = D // nhead
    if has_mask:
        addm = mask_ref[0]                           # (1, Sk) additive mask, f32

    for h in range(nhead):                           # static loop; each head independent
        sl = slice(h * Dh, (h + 1) * Dh)
        qh = q[:, sl].astype(jnp.bfloat16)           # (TQ, Dh)
        kh = k[:, sl].astype(jnp.bfloat16)           # (Sk, Dh)
        vh = v[:, sl].astype(jnp.bfloat16)           # (Sk, Dh)
        s = jax.lax.dot_general(qh, kh, (((1,), (1,)), ((), ())),
                                preferred_element_type=jnp.float32)   # (TQ, Sk) = qh @ kh.T
        if has_mask:
            s = s + addm
        s = s - jnp.max(s, axis=-1, keepdims=True)
        p = jnp.exp(s)
        inv = pl.reciprocal(jnp.sum(p, axis=-1, keepdims=True), approx=True)
        o_h = jnp.dot(p.astype(jnp.bfloat16), vh, preferred_element_type=jnp.float32) * inv
        ctx_ref[:, sl] = o_h                         # write head slot; no carried accumulator

    # Single full-depth out-projection + residual + bias (f32 accumulation).
    acc = xq.astype(jnp.float32) + bo_ref[...]
    acc = acc + jnp.dot(ctx_ref[...].astype(jnp.bfloat16), wo_ref[...],
                        preferred_element_type=jnp.float32)

    # LayerNorm epilogue (f32 stats)
    mu = jnp.mean(acc, axis=-1, keepdims=True)
    var = jnp.mean(jnp.square(acc - mu), axis=-1, keepdims=True)
    y = (acc - mu) * jax.lax.rsqrt(var + eps)
    o_ref[0] = (y * g_ref[...] + b_ref[...]).astype(o_ref.dtype)


def ffn_block_kernel(x_ref, w1_ref, b1_ref, w2_ref, b2_ref, g_ref, b_ref, *refs,
                     eps, extra_ln):
    """F-tiled fused FFN block: accumulate relu(x @ W1[:,ft] + b1[ft]) @ W2[ft,:] over the
    'arbitrary' F grid axis; on the last F step add bias + residual, apply LayerNorm
    (and optionally the fused final norm_layer LayerNorm)."""
    if extra_ln:
        g2_ref, bb2_ref, o_ref, acc_ref = refs
    else:
        o_ref, acc_ref = refs

    f = pl.program_id(1)

    @pl.when(f == 0)
    def _():
        acc_ref[...] = jnp.zeros_like(acc_ref)

    x = x_ref[...]                                                        # (TM, D)
    h = jnp.dot(x.astype(jnp.bfloat16), w1_ref[...],
                preferred_element_type=jnp.float32) + b1_ref[...]          # (TM, TF)
    h = jnp.maximum(h, 0.0)
    acc_ref[...] += jnp.dot(h.astype(jnp.bfloat16), w2_ref[...],
                            preferred_element_type=jnp.float32)            # (TM, D)

    @pl.when(f == pl.num_programs(1) - 1)
    def _():
        y = acc_ref[...] + b2_ref[...] + x.astype(jnp.float32)             # residual
        mu = jnp.mean(y, axis=-1, keepdims=True)
        var = jnp.mean(jnp.square(y - mu), axis=-1, keepdims=True)
        y = (y - mu) * jax.lax.rsqrt(var + eps)
        y = y * g_ref[...] + b_ref[...]
        if extra_ln:                                                       # fused final norm_layer
            mu = jnp.mean(y, axis=-1, keepdims=True)
            var = jnp.mean(jnp.square(y - mu), axis=-1, keepdims=True)
            y = (y - mu) * jax.lax.rsqrt(var + eps)
            y = y * g2_ref[...] + bb2_ref[...]
        o_ref[...] = y.astype(o_ref.dtype)


def ln_kernel(x_ref, g_ref, b_ref, o_ref, *, eps):
    """Plain LayerNorm over one row tile (only used for the zero-layer edge case)."""
    x = x_ref[...].astype(jnp.float32)
    mu = jnp.mean(x, axis=-1, keepdims=True)
    var = jnp.mean(jnp.square(x - mu), axis=-1, keepdims=True)
    y = (x - mu) * jax.lax.rsqrt(var + eps)
    o_ref[...] = (y * g_ref[...] + b_ref[...]).astype(o_ref.dtype)


# --------------------------------------------------------------------------
# Pallas wrappers
# --------------------------------------------------------------------------
def attention_block(x_q, x_kv, add_mask, attn, norm, nhead, eps=1e-5):
    # x_q: (B, Sq, D), x_kv: (B, Sk, D), add_mask: (B, 1, Sk) additive or None
    B, Sq, D = x_q.shape
    Sk = x_kv.shape[1]
    TQ = _row_tile(Sq)
    has_mask = add_mask is not None
    kernel = functools.partial(attn_block_kernel, nhead=nhead, eps=eps, has_mask=has_mask)

    in_specs = [
        pl.BlockSpec((1, TQ, D), lambda b, qi: (b, qi, 0)),   # x_q tile (query + residual)
        pl.BlockSpec((1, Sk, D), lambda b, qi: (b, 0, 0)),    # x_kv (full K/V context)
    ]
    args = [x_q, x_kv]
    if has_mask:
        in_specs.append(pl.BlockSpec((1, 1, Sk), lambda b, qi: (b, 0, 0)))   # additive mask
        args.append(add_mask)

    def wspec(shape):
        return pl.BlockSpec(shape, lambda b, qi: (0, 0))      # constant-index (resident) params

    in_specs += [
        wspec((D, D)), wspec((1, D)),   # Wq (scale folded), bq
        wspec((D, D)), wspec((1, D)),   # Wk, bk
        wspec((D, D)), wspec((1, D)),   # Wv, bv
        wspec((D, D)), wspec((1, D)),   # Wo, bo
        wspec((1, D)), wspec((1, D)),   # LN gamma, beta
    ]
    args += [attn["wq"], attn["bq"], attn["wk"], attn["bk"], attn["wv"], attn["bv"],
             attn["wo"], attn["bo"], norm["g"], norm["b"]]

    # VMEM footprint: double-buffered activation blocks + resident bf16 weights + temporaries.
    itms = x_q.dtype.itemsize
    est = (2 * 2 * (TQ * D + Sk * D) * itms          # xq / out / xkv blocks (double buffered)
           + 4 * D * D * 2 + 6 * D * 4               # bf16 weights + f32 biases / LN params
           + TQ * D * 4                              # ctx scratch (f32)
           + 4 * TQ * Sk * 4                         # per-head score / prob temporaries
           + 3 * max(TQ, Sk) * D * 4)                # Q / K / V f32 temporaries
    return pl.pallas_call(
        kernel,
        out_shape=jax.ShapeDtypeStruct((B, Sq, D), x_q.dtype),
        grid=(B, Sq // TQ),
        in_specs=in_specs,
        out_specs=pl.BlockSpec((1, TQ, D), lambda b, qi: (b, qi, 0)),
        scratch_shapes=[pltpu.VMEM((TQ, D), jnp.float32)],    # per-head context slab
        compiler_params=pltpu.CompilerParams(
            dimension_semantics=("parallel", "parallel"),
            vmem_limit_bytes=_vmem_limit(est)),
    )(*args)


def ffn_block(x2d, ffn_p, norm_p, final_norm=None, eps=1e-5):
    M, D = x2d.shape
    F = ffn_p["w1"].shape[1]
    TM = _row_tile(M)
    TF = _col_tile(F)
    extra_ln = final_norm is not None
    kernel = functools.partial(ffn_block_kernel, eps=eps, extra_ln=extra_ln)

    in_specs = [
        pl.BlockSpec((TM, D), lambda i, f: (i, 0)),   # x tile (also residual)
        pl.BlockSpec((D, TF), lambda i, f: (0, f)),   # W1 column tile (bf16)
        pl.BlockSpec((1, TF), lambda i, f: (0, f)),   # b1 tile
        pl.BlockSpec((TF, D), lambda i, f: (f, 0)),   # W2 row tile (bf16)
        pl.BlockSpec((1, D), lambda i, f: (0, 0)),    # b2
        pl.BlockSpec((1, D), lambda i, f: (0, 0)),    # LN gamma
        pl.BlockSpec((1, D), lambda i, f: (0, 0)),    # LN beta
    ]
    args = [x2d, ffn_p["w1"], ffn_p["b1"], ffn_p["w2"], ffn_p["b2"], norm_p["g"], norm_p["b"]]
    if extra_ln:
        in_specs += [pl.BlockSpec((1, D), lambda i, f: (0, 0)),
                     pl.BlockSpec((1, D), lambda i, f: (0, 0))]
        args += [final_norm["g"], final_norm["b"]]

    itms = x2d.dtype.itemsize
    est = (2 * 2 * TM * D * itms                     # x / out blocks (double buffered)
           + 2 * 2 * (D * TF + TF * D) * 2           # W1 / W2 bf16 tiles (double buffered)
           + TM * D * 4                              # f32 accumulator scratch
           + 2 * TM * TF * 4                         # hidden temporaries
           + 4 * D * 4)                              # biases / LN params
    return pl.pallas_call(
        kernel,
        out_shape=jax.ShapeDtypeStruct((M, D), x2d.dtype),
        grid=(M // TM, F // TF),                     # reduction (F) axis last
        in_specs=in_specs,
        out_specs=pl.BlockSpec((TM, D), lambda i, f: (i, 0)),
        scratch_shapes=[pltpu.VMEM((TM, D), jnp.float32)],
        compiler_params=pltpu.CompilerParams(
            dimension_semantics=("parallel", "arbitrary"),
            vmem_limit_bytes=_vmem_limit(est)),
    )(*args)


def layer_norm(x2d, norm_p, eps=1e-5):
    M, D = x2d.shape
    TM = _row_tile(M)
    return pl.pallas_call(
        functools.partial(ln_kernel, eps=eps),
        out_shape=jax.ShapeDtypeStruct((M, D), x2d.dtype),
        grid=(M // TM,),
        in_specs=[
            pl.BlockSpec((TM, D), lambda i: (i, 0)),
            pl.BlockSpec((1, D), lambda i: (0, 0)),
            pl.BlockSpec((1, D), lambda i: (0, 0)),
        ],
        out_specs=pl.BlockSpec((TM, D), lambda i: (i, 0)),
        compiler_params=pltpu.CompilerParams(dimension_semantics=("parallel",)),
    )(x2d, norm_p["g"], norm_p["b"])


# --------------------------------------------------------------------------
# Model glue (plain JAX around the fused kernels)
# --------------------------------------------------------------------------
def transformer_decoder(inputs, enc_outputs, enc_mask, layers, final_norm, nhead):
    B, S, D = inputs.shape
    enc_add = None
    if enc_outputs is not None and enc_mask is not None:
        enc_add = ((1.0 - enc_mask.astype(jnp.float32)) * -1e9)[:, None, :]   # (B, 1, Sk)

    out = inputs
    n = len(layers)
    for li, p in enumerate(layers):                          # _get_clones loop
        # self-attention block (no mask in the spec -> skip mask DMA/adds entirely)
        out = attention_block(out, out, None, p["sa"], p["norm1"], nhead)
        # cross-attention block
        if enc_outputs is not None:
            out = attention_block(out, enc_outputs, enc_add, p["ca"], p["norm2"], nhead)
        # feed-forward block (F-tiled); final norm_layer fused into the last layer's FFN
        fuse_final = final_norm if (li == n - 1) else None
        out = ffn_block(out.reshape(B * S, D), p["ffn"], p["norm3"],
                        final_norm=fuse_final).reshape(B, S, D)

    if final_norm is not None and n == 0:                    # degenerate zero-layer stack
        out = layer_norm(out.reshape(B * S, D), final_norm).reshape(B, S, D)
    return out


# --------------------------------------------------------------------------
# Deterministic parameter init (synthetic; shapes follow the module __init__)
# --------------------------------------------------------------------------
def _dense_params(key, fin, fout):
    kw, kb = jax.random.split(key)
    w = jax.random.normal(kw, (fin, fout), jnp.float32) * (1.0 / math.sqrt(fin))
    b = jax.random.normal(kb, (fout,), jnp.float32) * 0.01
    return w, b


def _attn_params(key, d):
    ks = jax.random.split(key, 4)
    wq, bq = _dense_params(ks[0], d, d)
    wk, bk = _dense_params(ks[1], d, d)
    wv, bv = _dense_params(ks[2], d, d)
    wo, bo = _dense_params(ks[3], d, d)
    return dict(wq=wq, bq=bq, wk=wk, bk=bk, wv=wv, bv=bv, wo=wo, bo=bo)


def init_decoder_params(key, num_layers, d_model, dff):
    layer_params = []
    keys = jax.random.split(key, num_layers + 1)
    for lk in keys[:num_layers]:
        k_sa, k_ca, k_f1, k_f2 = jax.random.split(lk, 4)
        w1, b1 = _dense_params(k_f1, d_model, dff)
        w2, b2 = _dense_params(k_f2, dff, d_model)
        layer_params.append(dict(
            self_attn=_attn_params(k_sa, d_model),
            cross_attn=_attn_params(k_ca, d_model),
            w1=w1, b1=b1, w2=w2, b2=b2,
            norm1_g=jnp.ones((d_model,), jnp.float32), norm1_b=jnp.zeros((d_model,), jnp.float32),
            norm2_g=jnp.ones((d_model,), jnp.float32), norm2_b=jnp.zeros((d_model,), jnp.float32),
            norm3_g=jnp.ones((d_model,), jnp.float32), norm3_b=jnp.zeros((d_model,), jnp.float32),
        ))
    final_norm = dict(g=jnp.ones((d_model,), jnp.float32),
                      b=jnp.zeros((d_model,), jnp.float32))
    return layer_params, final_norm


def _prep_attn(p, scale):
    """One-time re-layout: fold 1/sqrt(Dh) into Wq/bq, store weights bf16, biases f32 (1,D)."""
    return dict(
        wq=(p["wq"] * scale).astype(jnp.bfloat16), bq=(p["bq"] * scale).reshape(1, -1),
        wk=p["wk"].astype(jnp.bfloat16),           bk=p["bk"].reshape(1, -1),
        wv=p["wv"].astype(jnp.bfloat16),           bv=p["bv"].reshape(1, -1),
        wo=p["wo"].astype(jnp.bfloat16),
        bo=p["bo"].reshape(1, -1),
    )


def prepare_params(layer_params, final_norm, nhead):
    """One-time conversion of torch-style params into kernel-ready layouts/dtypes."""
    D = layer_params[0]["norm1_g"].shape[0]
    scale = 1.0 / math.sqrt(D // nhead)
    prepared = []
    for p in layer_params:
        prepared.append(dict(
            sa=_prep_attn(p["self_attn"], scale),
            ca=_prep_attn(p["cross_attn"], scale),
            norm1=dict(g=p["norm1_g"].reshape(1, -1), b=p["norm1_b"].reshape(1, -1)),
            norm2=dict(g=p["norm2_g"].reshape(1, -1), b=p["norm2_b"].reshape(1, -1)),
            ffn=dict(w1=p["w1"].astype(jnp.bfloat16), b1=p["b1"].reshape(1, -1),
                     w2=p["w2"].astype(jnp.bfloat16), b2=p["b2"].reshape(1, -1)),
            norm3=dict(g=p["norm3_g"].reshape(1, -1), b=p["norm3_b"].reshape(1, -1)),
        ))
    fn = None
    if final_norm is not None:
        fn = dict(g=final_norm["g"].reshape(1, -1), b=final_norm["b"].reshape(1, -1))
    return prepared, fn


# --------------------------------------------------------------------------
if __name__ == "__main__":
    B, S, S_ENC, D, NHEAD, DFF, NUM_LAYERS = 2, 8, 8, 32, 4, 64, 2

    key = jax.random.PRNGKey(0)
    k_in, k_enc, k_par = jax.random.split(key, 3)

    inputs = jax.random.normal(k_in, (B, S, D), jnp.float32)            # (B, S, D)
    enc_outputs = jax.random.normal(k_enc, (B, S_ENC, D), jnp.float32)  # (B, S_enc, D)
    # mask: 1 = valid, 0 = padded (last two enc positions of batch 1 are padded)
    enc_mask = jnp.ones((B, S_ENC), jnp.float32).at[1, -2:].set(0.0)

    layer_params, final_norm = init_decoder_params(k_par, NUM_LAYERS, D, DFF)
    prepared, fin = prepare_params(layer_params, final_norm, NHEAD)

    fwd = jax.jit(functools.partial(transformer_decoder, nhead=NHEAD))
    out = fwd(inputs, enc_outputs, enc_mask, prepared, fin)
    out = jax.block_until_ready(out)

    assert out.shape == (B, S, D) and out.dtype == jnp.float32
    assert bool(jnp.all(jnp.isfinite(out)))
    print("KERNEL_OK")
</pallas_src>

<mosaic_0001>
module attributes {stable_mosaic.version = 11 : i64} {
  func.func @attn_block_kernel(%arg0: i32, %arg1: i32, %arg2: memref<1x8x32xf32, #tpu.memory_space<vmem>>, %arg3: memref<1x8x32xf32, #tpu.memory_space<vmem>>, %arg4: memref<32x32xbf16, #tpu.memory_space<vmem>>, %arg5: memref<1x32xf32, #tpu.memory_space<vmem>>, %arg6: memref<32x32xbf16, #tpu.memory_space<vmem>>, %arg7: memref<1x32xf32, #tpu.memory_space<vmem>>, %arg8: memref<32x32xbf16, #tpu.memory_space<vmem>>, %arg9: memref<1x32xf32, #tpu.memory_space<vmem>>, %arg10: memref<32x32xbf16, #tpu.memory_space<vmem>>, %arg11: memref<1x32xf32, #tpu.memory_space<vmem>>, %arg12: memref<1x32xf32, #tpu.memory_space<vmem>>, %arg13: memref<1x32xf32, #tpu.memory_space<vmem>>, %arg14: memref<1x8x32xf32, #tpu.memory_space<vmem>>, %arg15: memref<8x32xf32, #tpu.memory_space<vmem>>) attributes {dimension_semantics = [#tpu.dimension_semantics<parallel>, #tpu.dimension_semantics<parallel>], iteration_bounds = array<i64: 2, 1>, scalar_prefetch = 0 : i64, scratch_operands = 1 : i64, tpu.core_type = #tpu.core_type<tc>, window_params = [{transform_indices = @transform_0, window_bounds = array<i64: 1, 8, 32>}, {transform_indices = @transform_1, window_bounds = array<i64: 1, 8, 32>}, {pipeline_mode = #tpu.pipeline_mode<synchronous>, transform_indices = @transform_2, window_bounds = array<i64: 32, 32>}, {pipeline_mode = #tpu.pipeline_mode<synchronous>, transform_indices = @transform_3, window_bounds = array<i64: 1, 32>}, {pipeline_mode = #tpu.pipeline_mode<synchronous>, transform_indices = @transform_4, window_bounds = array<i64: 32, 32>}, {pipeline_mode = #tpu.pipeline_mode<synchronous>, transform_indices = @transform_5, window_bounds = array<i64: 1, 32>}, {pipeline_mode = #tpu.pipeline_mode<synchronous>, transform_indices = @transform_6, window_bounds = array<i64: 32, 32>}, {pipeline_mode = #tpu.pipeline_mode<synchronous>, transform_indices = @transform_7, window_bounds = array<i64: 1, 32>}, {pipeline_mode = #tpu.pipeline_mode<synchronous>, transform_indices = @transform_8, window_bounds = array<i64: 32, 32>}, {pipeline_mode = #tpu.pipeline_mode<synchronous>, transform_indices = @transform_9, window_bounds = array<i64: 1, 32>}, {pipeline_mode = #tpu.pipeline_mode<synchronous>, transform_indices = @transform_10, window_bounds = array<i64: 1, 32>}, {pipeline_mode = #tpu.pipeline_mode<synchronous>, transform_indices = @transform_11, window_bounds = array<i64: 1, 32>}, {transform_indices = @transform_12, window_bounds = array<i64: 1, 8, 32>}]} {
    %c0 = arith.constant 0 : index
    %c0_0 = arith.constant 0 : index
    %c0_1 = arith.constant 0 : index
    %0 = vector.load %arg2[%c0, %c0_0, %c0_1] : memref<1x8x32xf32, #tpu.memory_space<vmem>>, vector<1x8x32xf32>
    %1 = vector.shape_cast %0 : vector<1x8x32xf32> to vector<8x32xf32>
    %c0_2 = arith.constant 0 : index
    %c0_3 = arith.constant 0 : index
    %c0_4 = arith.constant 0 : index
    %2 = vector.load %arg3[%c0_2, %c0_3, %c0_4] : memref<1x8x32xf32, #tpu.memory_space<vmem>>, vector<1x8x32xf32>
    %3 = vector.shape_cast %2 : vector<1x8x32xf32> to vector<8x32xf32>
    %4 = arith.truncf %1 : vector<8x32xf32> to vector<8x32xbf16>
    %5 = arith.truncf %3 : vector<8x32xf32> to vector<8x32xbf16>
    %c0_5 = arith.constant 0 : index
    %c0_6 = arith.constant 0 : index
    %6 = vector.load %arg4[%c0_5, %c0_6] : memref<32x32xbf16, #tpu.memory_space<vmem>>, vector<32x32xbf16>
    %cst = arith.constant dense<0.000000e+00> : vector<8x32xf32>
    %7 = tpu.matmul %4, %6, %cst {dimension_numbers = #tpu.dot_dimension_numbers<[1], [0], [0], [1], [0, 0, 1, 1], [], []>} : vector<8x32xbf16>, vector<32x32xbf16>, vector<8x32xf32> -> vector<8x32xf32>
    %c0_7 = arith.constant 0 : index
    %c0_8 = arith.constant 0 : index
    %8 = vector.load %arg5[%c0_7, %c0_8] : memref<1x32xf32, #tpu.memory_space<vmem>>, vector<1x32xf32>
    %9 = vector.broadcast %8 : vector<1x32xf32> to vector<8x32xf32>
    %10 = arith.addf %7, %9 : vector<8x32xf32>
    %c0_9 = arith.constant 0 : index
    %c0_10 = arith.constant 0 : index
    %11 = vector.load %arg6[%c0_9, %c0_10] : memref<32x32xbf16, #tpu.memory_space<vmem>>, vector<32x32xbf16>
    %cst_11 = arith.constant dense<0.000000e+00> : vector<8x32xf32>
    %12 = tpu.matmul %5, %11, %cst_11 {dimension_numbers = #tpu.dot_dimension_numbers<[1], [0], [0], [1], [0, 0, 1, 1], [], []>} : vector<8x32xbf16>, vector<32x32xbf16>, vector<8x32xf32> -> vector<8x32xf32>
    %c0_12 = arith.constant 0 : index
    %c0_13 = arith.constant 0 : index
    %13 = vector.load %arg7[%c0_12, %c0_13] : memref<1x32xf32, #tpu.memory_space<vmem>>, vector<1x32xf32>
    %14 = vector.broadcast %13 : vector<1x32xf32> to vector<8x32xf32>
    %15 = arith.addf %12, %14 : vector<8x32xf32>
    %c0_14 = arith.constant 0 : index
    %c0_15 = arith.constant 0 : index
    %16 = vector.load %arg8[%c0_14, %c0_15] : memref<32x32xbf16, #tpu.memory_space<vmem>>, vector<32x32xbf16>
    %cst_16 = arith.constant dense<0.000000e+00> : vector<8x32xf32>
    %17 = tpu.matmul %5, %16, %cst_16 {dimension_numbers = #tpu.dot_dimension_numbers<[1], [0], [0], [1], [0, 0, 1, 1], [], []>} : vector<8x32xbf16>, vector<32x32xbf16>, vector<8x32xf32> -> vector<8x32xf32>
    %c0_17 = arith.constant 0 : index
    %c0_18 = arith.constant 0 : index
    %18 = vector.load %arg9[%c0_17, %c0_18] : memref<1x32xf32, #tpu.memory_space<vmem>>, vector<1x32xf32>
    %19 = vector.broadcast %18 : vector<1x32xf32> to vector<8x32xf32>
    %20 = arith.addf %17, %19 : vector<8x32xf32>
    %21 = vector.extract_strided_slice %10 {offsets = [0, 0], sizes = [8, 8], strides = [1, 1]} : vector<8x32xf32> to vector<8x8xf32>
    %22 = arith.truncf %21 : vector<8x8xf32> to vector<8x8xbf16>
    %23 = vector.extract_strided_slice %15 {offsets = [0, 0], sizes = [8, 8], strides = [1, 1]} : vector<8x32xf32> to vector<8x8xf32>
    %24 = arith.truncf %23 : vector<8x8xf32> to vector<8x8xbf16>
    %25 = vector.extract_strided_slice %20 {offsets = [0, 0], sizes = [8, 8], strides = [1, 1]} : vector<8x32xf32> to vector<8x8xf32>
    %26 = arith.truncf %25 : vector<8x8xf32> to vector<8x8xbf16>
    %cst_19 = arith.constant dense<0.000000e+00> : vector<8x8xf32>
    %27 = tpu.matmul %22, %24, %cst_19 {dimension_numbers = #tpu.dot_dimension_numbers<[1], [1], [0], [0], [0, 0, 1, 0], [], []>} : vector<8x8xbf16>, vector<8x8xbf16>, vector<8x8xf32> -> vector<8x8xf32>
    %cst_20 = arith.constant dense<0xFF800000> : vector<8xf32>
    %28 = vector.multi_reduction <maximumf>, %27, %cst_20 [1] : vector<8x8xf32> to vector<8xf32>
    %29 = vector.shape_cast %28 : vector<8xf32> to vector<8x1xf32>
    %30 = vector.broadcast %29 : vector<8x1xf32> to vector<8x8xf32>
    %31 = arith.subf %27, %30 : vector<8x8xf32>
    %32 = math.exp %31 : vector<8x8xf32>
    %cst_21 = arith.constant dense<0.000000e+00> : vector<8xf32>
    %33 = vector.multi_reduction <add>, %32, %cst_21 [1] : vector<8x8xf32> to vector<8xf32>
    %34 = vector.shape_cast %33 : vector<8xf32> to vector<8x1xf32>
    %35 = tpu.reciprocal %34 {approx = true} : vector<8x1xf32> -> vector<8x1xf32>
    %36 = arith.truncf %32 : vector<8x8xf32> to vector<8x8xbf16>
    %cst_22 = arith.constant dense<0.000000e+00> : vector<8x8xf32>
    %37 = tpu.matmul %36, %26, %cst_22 {dimension_numbers = #tpu.dot_dimension_numbers<[1], [0], [0], [1], [0, 0, 1, 1], [], []>} : vector<8x8xbf16>, vector<8x8xbf16>, vector<8x8xf32> -> vector<8x8xf32>
    %38 = vector.broadcast %35 : vector<8x1xf32> to vector<8x8xf32>
    %39 = arith.mulf %37, %38 : vector<8x8xf32>
    %c0_23 = arith.constant 0 : index
    %c0_24 = arith.constant 0 : index
    %40 = vector.load %arg15[%c0_23, %c0_24] : memref<8x32xf32, #tpu.memory_space<vmem>>, vector<8x8xf32>
    tpu.vector_store %arg15[%c0_23, %c0_24], %39 {strides = array<i32>} : memref<8x32xf32, #tpu.memory_space<vmem>>, vector<8x8xf32>,
    %41 = vector.extract_strided_slice %10 {offsets = [0, 8], sizes = [8, 8], strides = [1, 1]} : vector<8x32xf32> to vector<8x8xf32>
    %42 = arith.truncf %41 : vector<8x8xf32> to vector<8x8xbf16>
    %43 = vector.extract_strided_slice %15 {offsets = [0, 8], sizes = [8, 8], strides = [1, 1]} : vector<8x32xf32> to vector<8x8xf32>
    %44 = arith.truncf %43 : vector<8x8xf32> to vector<8x8xbf16>
    %45 = vector.extract_strided_slice %20 {offsets = [0, 8], sizes = [8, 8], strides = [1, 1]} : vector<8x32xf32> to vector<8x8xf32>
    %46 = arith.truncf %45 : vector<8x8xf32> to vector<8x8xbf16>
    %cst_25 = arith.constant dense<0.000000e+00> : vector<8x8xf32>
    %47 = tpu.matmul %42, %44, %cst_25 {dimension_numbers = #tpu.dot_dimension_numbers<[1], [1], [0], [0], [0, 0, 1, 0], [], []>} : vector<8x8xbf16>, vector<8x8xbf16>, vector<8x8xf32> -> vector<8x8xf32>
    %cst_26 = arith.constant dense<0xFF800000> : vector<8xf32>
    %48 = vector.multi_reduction <maximumf>, %47, %cst_26 [1] : vector<8x8xf32> to vector<8xf32>
    %49 = vector.shape_cast %48 : vector<8xf32> to vector<8x1xf32>
    %50 = vector.broadcast %49 : vector<8x1xf32> to vector<8x8xf32>
    %51 = arith.subf %47, %50 : vector<8x8xf32>
    %52 = math.exp %51 : vector<8x8xf32>
    %cst_27 = arith.constant dense<0.000000e+00> : vector<8xf32>
    %53 = vector.multi_reduction <add>, %52, %cst_27 [1] : vector<8x8xf32> to vector<8xf32>
    %54 = vector.shape_cast %53 : vector<8xf32> to vector<8x1xf32>
    %55 = tpu.reciprocal %54 {approx = true} : vector<8x1xf32> -> vector<8x1xf32>
    %56 = arith.truncf %52 : vector<8x8xf32> to vector<8x8xbf16>
    %cst_28 = arith.constant dense<0.000000e+00> : vector<8x8xf32>
    %57 = tpu.matmul %56, %46, %cst_28 {dimension_numbers = #tpu.dot_dimension_numbers<[1], [0], [0], [1], [0, 0, 1, 1], [], []>} : vector<8x8xbf16>, vector<8x8xbf16>, vector<8x8xf32> -> vector<8x8xf32>
    %58 = vector.broadcast %55 : vector<8x1xf32> to vector<8x8xf32>
    %59 = arith.mulf %57, %58 : vector<8x8xf32>
    %c0_29 = arith.constant 0 : index
    %c8 = arith.constant 8 : index
    %60 = vector.load %arg15[%c0_29, %c8] : memref<8x32xf32, #tpu.memory_space<vmem>>, vector<8x8xf32>
    tpu.vector_store %arg15[%c0_29, %c8], %59 {strides = array<i32>} : memref<8x32xf32, #tpu.memory_space<vmem>>, vector<8x8xf32>,
    %61 = vector.extract_strided_slice %10 {offsets = [0, 16], sizes = [8, 8], strides = [1, 1]} : vector<8x32xf32> to vector<8x8xf32>
    %62 = arith.truncf %61 : vector<8x8xf32> to vector<8x8xbf16>
    %63 = vector.extract_strided_slice %15 {offsets = [0, 16], sizes = [8, 8], strides = [1, 1]} : vector<8x32xf32> to vector<8x8xf32>
    %64 = arith.truncf %63 : vector<8x8xf32> to vector<8x8xbf16>
    %65 = vector.extract_strided_slice %20 {offsets = [0, 16], sizes = [8, 8], strides = [1, 1]} : vector<8x32xf32> to vector<8x8xf32>
    %66 = arith.truncf %65 : vector<8x8xf32> to vector<8x8xbf16>
    %cst_30 = arith.constant dense<0.000000e+00> : vector<8x8xf32>
    %67 = tpu.matmul %62, %64, %cst_30 {dimension_numbers = #tpu.dot_dimension_numbers<[1], [1], [0], [0], [0, 0, 1, 0], [], []>} : vector<8x8xbf16>, vector<8x8xbf16>, vector<8x8xf32> -> vector<8x8xf32>
    %cst_31 = arith.constant dense<0xFF800000> : vector<8xf32>
    %68 = vector.multi_reduction <maximumf>, %67, %cst_31 [1] : vector<8x8xf32> to vector<8xf32>
    %69 = vector.shape_cast %68 : vector<8xf32> to vector<8x1xf32>
    %70 = vector.broadcast %69 : vector<8x1xf32> to vector<8x8xf32>
    %71 = arith.subf %67, %70 : vector<8x8xf32>
    %72 = math.exp %71 : vector<8x8xf32>
    %cst_32 = arith.constant dense<0.000000e+00> : vector<8xf32>
    %73 = vector.multi_reduction <add>, %72, %cst_32 [1] : vector<8x8xf32> to vector<8xf32>
    %74 = vector.shape_cast %73 : vector<8xf32> to vector<8x1xf32>
    %75 = tpu.reciprocal %74 {approx = true} : vector<8x1xf32> -> vector<8x1xf32>
    %76 = arith.truncf %72 : vector<8x8xf32> to vector<8x8xbf16>
    %cst_33 = arith.constant dense<0.000000e+00> : vector<8x8xf32>
    %77 = tpu.matmul %76, %66, %cst_33 {dimension_numbers = #tpu.dot_dimension_numbers<[1], [0], [0], [1], [0, 0, 1, 1], [], []>} : vector<8x8xbf16>, vector<8x8xbf16>, vector<8x8xf32> -> vector<8x8xf32>
    %78 = vector.broadcast %75 : vector<8x1xf32> to vector<8x8xf32>
    %79 = arith.mulf %77, %78 : vector<8x8xf32>
    %c0_34 = arith.constant 0 : index
    %c16 = arith.constant 16 : index
    %80 = vector.load %arg15[%c0_34, %c16] : memref<8x32xf32, #tpu.memory_space<vmem>>, vector<8x8xf32>
    tpu.vector_store %arg15[%c0_34, %c16], %79 {strides = array<i32>} : memref<8x32xf32, #tpu.memory_space<vmem>>, vector<8x8xf32>,
    %81 = vector.extract_strided_slice %10 {offsets = [0, 24], sizes = [8, 8], strides = [1, 1]} : vector<8x32xf32> to vector<8x8xf32>
    %82 = arith.truncf %81 : vector<8x8xf32> to vector<8x8xbf16>
    %83 = vector.extract_strided_slice %15 {offsets = [0, 24], sizes = [8, 8], strides = [1, 1]} : vector<8x32xf32> to vector<8x8xf32>
    %84 = arith.truncf %83 : vector<8x8xf32> to vector<8x8xbf16>
    %85 = vector.extract_strided_slice %20 {offsets = [0, 24], sizes = [8, 8], strides = [1, 1]} : vector<8x32xf32> to vector<8x8xf32>
    %86 = arith.truncf %85 : vector<8x8xf32> to vector<8x8xbf16>
    %cst_35 = arith.constant dense<0.000000e+00> : vector<8x8xf32>
    %87 = tpu.matmul %82, %84, %cst_35 {dimension_numbers = #tpu.dot_dimension_numbers<[1], [1], [0], [0], [0, 0, 1, 0], [], []>} : vector<8x8xbf16>, vector<8x8xbf16>, vector<8x8xf32> -> vector<8x8xf32>
    %cst_36 = arith.constant dense<0xFF800000> : vector<8xf32>
    %88 = vector.multi_reduction <maximumf>, %87, %cst_36 [1] : vector<8x8xf32> to vector<8xf32>
    %89 = vector.shape_cast %88 : vector<8xf32> to vector<8x1xf32>
    %90 = vector.broadcast %89 : vector<8x1xf32> to vector<8x8xf32>
    %91 = arith.subf %87, %90 : vector<8x8xf32>
    %92 = math.exp %91 : vector<8x8xf32>
    %cst_37 = arith.constant dense<0.000000e+00> : vector<8xf32>
    %93 = vector.multi_reduction <add>, %92, %cst_37 [1] : vector<8x8xf32> to vector<8xf32>
    %94 = vector.shape_cast %93 : vector<8xf32> to vector<8x1xf32>
    %95 = tpu.reciprocal %94 {approx = true} : vector<8x1xf32> -> vector<8x1xf32>
    %96 = arith.truncf %92 : vector<8x8xf32> to vector<8x8xbf16>
    %cst_38 = arith.constant dense<0.000000e+00> : vector<8x8xf32>
    %97 = tpu.matmul %96, %86, %cst_38 {dimension_numbers = #tpu.dot_dimension_numbers<[1], [0], [0], [1], [0, 0, 1, 1], [], []>} : vector<8x8xbf16>, vector<8x8xbf16>, vector<8x8xf32> -> vector<8x8xf32>
    %98 = vector.broadcast %95 : vector<8x1xf32> to vector<8x8xf32>
    %99 = arith.mulf %97, %98 : vector<8x8xf32>
    %c0_39 = arith.constant 0 : index
    %c24 = arith.constant 24 : index
    %100 = vector.load %arg15[%c0_39, %c24] : memref<8x32xf32, #tpu.memory_space<vmem>>, vector<8x8xf32>
    tpu.vector_store %arg15[%c0_39, %c24], %99 {strides = array<i32>} : memref<8x32xf32, #tpu.memory_space<vmem>>, vector<8x8xf32>,
    %c0_40 = arith.constant 0 : index
    %c0_41 = arith.constant 0 : index
    %101 = vector.load %arg11[%c0_40, %c0_41] : memref<1x32xf32, #tpu.memory_space<vmem>>, vector<1x32xf32>
    %102 = vector.broadcast %101 : vector<1x32xf32> to vector<8x32xf32>
    %103 = arith.addf %1, %102 : vector<8x32xf32>
    %c0_42 = arith.constant 0 : index
    %c0_43 = arith.constant 0 : index
    %104 = vector.load %arg15[%c0_42, %c0_43] : memref<8x32xf32, #tpu.memory_space<vmem>>, vector<8x32xf32>
    %105 = arith.truncf %104 : vector<8x32xf32> to vector<8x32xbf16>
    %c0_44 = arith.constant 0 : index
    %c0_45 = arith.constant 0 : index
    %106 = vector.load %arg10[%c0_44, %c0_45] : memref<32x32xbf16, #tpu.memory_space<vmem>>, vector<32x32xbf16>
    %cst_46 = arith.constant dense<0.000000e+00> : vector<8x32xf32>
    %107 = tpu.matmul %105, %106, %cst_46 {dimension_numbers = #tpu.dot_dimension_numbers<[1], [0], [0], [1], [0, 0, 1, 1], [], []>} : vector<8x32xbf16>, vector<32x32xbf16>, vector<8x32xf32> -> vector<8x32xf32>
    %108 = arith.addf %103, %107 : vector<8x32xf32>
    %cst_47 = arith.constant dense<0.000000e+00> : vector<8xf32>
    %109 = vector.multi_reduction <add>, %108, %cst_47 [1] : vector<8x32xf32> to vector<8xf32>
    %110 = vector.shape_cast %109 : vector<8xf32> to vector<8x1xf32>
    %cst_48 = arith.constant 3.200000e+01 : f32
    %111 = vector.broadcast %cst_48 : f32 to vector<8x1xf32>
    %112 = arith.divf %110, %111 : vector<8x1xf32>
    %113 = vector.broadcast %112 : vector<8x1xf32> to vector<8x32xf32>
    %114 = arith.subf %108, %113 : vector<8x32xf32>
    %115 = arith.mulf %114, %114 : vector<8x32xf32>
    %cst_49 = arith.constant dense<0.000000e+00> : vector<8xf32>
    %116 = vector.multi_reduction <add>, %115, %cst_49 [1] : vector<8x32xf32> to vector<8xf32>
    %117 = vector.shape_cast %116 : vector<8xf32> to vector<8x1xf32>
    %cst_50 = arith.constant 3.200000e+01 : f32
    %118 = vector.broadcast %cst_50 : f32 to vector<8x1xf32>
    %119 = arith.divf %117, %118 : vector<8x1xf32>
    %120 = vector.broadcast %112 : vector<8x1xf32> to vector<8x32xf32>
    %121 = arith.subf %108, %120 : vector<8x32xf32>
    %cst_51 = arith.constant 9.99999974E-6 : f32
    %122 = vector.broadcast %cst_51 : f32 to vector<8x1xf32>
    %123 = arith.addf %119, %122 : vector<8x1xf32>
    %124 = math.rsqrt %123 : vector<8x1xf32>
    %125 = vector.broadcast %124 : vector<8x1xf32> to vector<8x32xf32>
    %126 = arith.mulf %121, %125 : vector<8x32xf32>
    %c0_52 = arith.constant 0 : index
    %c0_53 = arith.constant 0 : index
    %127 = vector.load %arg12[%c0_52, %c0_53] : memref<1x32xf32, #tpu.memory_space<vmem>>, vector<1x32xf32>
    %128 = vector.broadcast %127 : vector<1x32xf32> to vector<8x32xf32>
    %129 = arith.mulf %126, %128 : vector<8x32xf32>
    %c0_54 = arith.constant 0 : index
    %c0_55 = arith.constant 0 : index
    %130 = vector.load %arg13[%c0_54, %c0_55] : memref<1x32xf32, #tpu.memory_space<vmem>>, vector<1x32xf32>
    %131 = vector.broadcast %130 : vector<1x32xf32> to vector<8x32xf32>
    %132 = arith.addf %129, %131 : vector<8x32xf32>
    %c0_56 = arith.constant 0 : index
    %c0_57 = arith.constant 0 : index
    %c0_58 = arith.constant 0 : index
    %133 = vector.load %arg14[%c0_56, %c0_57, %c0_58] : memref<1x8x32xf32, #tpu.memory_space<vmem>>, vector<1x8x32xf32>
    %134 = vector.shape_cast %133 : vector<1x8x32xf32> to vector<8x32xf32>
    %135 = vector.shape_cast %132 : vector<8x32xf32> to vector<1x8x32xf32>
    tpu.vector_store %arg14[%c0_56, %c0_57, %c0_58], %135 {strides = array<i32>} : memref<1x8x32xf32, #tpu.memory_space<vmem>>, vector<1x8x32xf32>,
    return
  }
  func.func @transform_0(%arg0: i32, %arg1: i32) -> (i32, i32, i32) {
    %c0_i32 = arith.constant 0 : i32
    %c0_i32_0 = arith.constant 0 : i32
    return %arg0, %arg1, %c0_i32 : i32, i32, i32
  }
  func.func @transform_1(%arg0: i32, %arg1: i32) -> (i32, i32, i32) {
    %c0_i32 = arith.constant 0 : i32
    %c0_i32_0 = arith.constant 0 : i32
    %c0_i32_1 = arith.constant 0 : i32
    return %arg0, %c0_i32, %c0_i32_0 : i32, i32, i32
  }
  func.func @transform_2(%arg0: i32, %arg1: i32) -> (i32, i32) {
    %c0_i32 = arith.constant 0 : i32
    %c0_i32_0 = arith.constant 0 : i32
    %c0_i32_1 = arith.constant 0 : i32
    return %c0_i32, %c0_i32_0 : i32, i32
  }
  func.func @transform_3(%arg0: i32, %arg1: i32) -> (i32, i32) {
    %c0_i32 = arith.constant 0 : i32
    %c0_i32_0 = arith.constant 0 : i32
    %c0_i32_1 = arith.constant 0 : i32
    return %c0_i32, %c0_i32_0 : i32, i32
  }
  func.func @transform_4(%arg0: i32, %arg1: i32) -> (i32, i32) {
    %c0_i32 = arith.constant 0 : i32
    %c0_i32_0 = arith.constant 0 : i32
    %c0_i32_1 = arith.constant 0 : i32
    return %c0_i32, %c0_i32_0 : i32, i32
  }
  func.func @transform_5(%arg0: i32, %arg1: i32) -> (i32, i32) {
    %c0_i32 = arith.constant 0 : i32
    %c0_i32_0 = arith.constant 0 : i32
    %c0_i32_1 = arith.constant 0 : i32
    return %c0_i32, %c0_i32_0 : i32, i32
  }
  func.func @transform_6(%arg0: i32, %arg1: i32) -> (i32, i32) {
    %c0_i32 = arith.constant 0 : i32
    %c0_i32_0 = arith.constant 0 : i32
    %c0_i32_1 = arith.constant 0 : i32
    return %c0_i32, %c0_i32_0 : i32, i32
  }
  func.func @transform_7(%arg0: i32, %arg1: i32) -> (i32, i32) {
    %c0_i32 = arith.constant 0 : i32
    %c0_i32_0 = arith.constant 0 : i32
    %c0_i32_1 = arith.constant 0 : i32
    return %c0_i32, %c0_i32_0 : i32, i32
  }
  func.func @transform_8(%arg0: i32, %arg1: i32) -> (i32, i32) {
    %c0_i32 = arith.constant 0 : i32
    %c0_i32_0 = arith.constant 0 : i32
    %c0_i32_1 = arith.constant 0 : i32
    return %c0_i32, %c0_i32_0 : i32, i32
  }
  func.func @transform_9(%arg0: i32, %arg1: i32) -> (i32, i32) {
    %c0_i32 = arith.constant 0 : i32
    %c0_i32_0 = arith.constant 0 : i32
    %c0_i32_1 = arith.constant 0 : i32
    return %c0_i32, %c0_i32_0 : i32, i32
  }
  func.func @transform_10(%arg0: i32, %arg1: i32) -> (i32, i32) {
    %c0_i32 = arith.constant 0 : i32
    %c0_i32_0 = arith.constant 0 : i32
    %c0_i32_1 = arith.constant 0 : i32
    return %c0_i32, %c0_i32_0 : i32, i32
  }
  func.func @transform_11(%arg0: i32, %arg1: i32) -> (i32, i32) {
    %c0_i32 = arith.constant 0 : i32
    %c0_i32_0 = arith.constant 0 : i32
    %c0_i32_1 = arith.constant 0 : i32
    return %c0_i32, %c0_i32_0 : i32, i32
  }
  func.func @transform_12(%arg0: i32, %arg1: i32) -> (i32, i32, i32) {
    %c0_i32 = arith.constant 0 : i32
    %c0_i32_0 = arith.constant 0 : i32
    return %arg0, %arg1, %c0_i32 : i32, i32, i32
  }
}

module attributes {stable_mosaic.version = 11 : i64} {
  func.func @attn_block_kernel(%arg0: i32, %arg1: i32, %arg2: memref<1x8x32xf32, #tpu.memory_space<vmem>>, %arg3: memref<1x8x32xf32, #tpu.memory_space<vmem>>, %arg4: memref<1x1x8xf32, #tpu.memory_space<vmem>>, %arg5: memref<32x32xbf16, #tpu.memory_space<vmem>>, %arg6: memref<1x32xf32, #tpu.memory_space<vmem>>, %arg7: memref<32x32xbf16, #tpu.memory_space<vmem>>, %arg8: memref<1x32xf32, #tpu.memory_space<vmem>>, %arg9: memref<32x32xbf16, #tpu.memory_space<vmem>>, %arg10: memref<1x32xf32, #tpu.memory_space<vmem>>, %arg11: memref<32x32xbf16, #tpu.memory_space<vmem>>, %arg12: memref<1x32xf32, #tpu.memory_space<vmem>>, %arg13: memref<1x32xf32, #tpu.memory_space<vmem>>, %arg14: memref<1x32xf32, #tpu.memory_space<vmem>>, %arg15: memref<1x8x32xf32, #tpu.memory_space<vmem>>, %arg16: memref<8x32xf32, #tpu.memory_space<vmem>>) attributes {dimension_semantics = [#tpu.dimension_semantics<parallel>, #tpu.dimension_semantics<parallel>], iteration_bounds = array<i64: 2, 1>, scalar_prefetch = 0 : i64, scratch_operands = 1 : i64, tpu.core_type = #tpu.core_type<tc>, window_params = [{transform_indices = @transform_0, window_bounds = array<i64: 1, 8, 32>}, {transform_indices = @transform_1, window_bounds = array<i64: 1, 8, 32>}, {transform_indices = @transform_2, window_bounds = array<i64: 1, 1, 8>}, {pipeline_mode = #tpu.pipeline_mode<synchronous>, transform_indices = @transform_3, window_bounds = array<i64: 32, 32>}, {pipeline_mode = #tpu.pipeline_mode<synchronous>, transform_indices = @transform_4, window_bounds = array<i64: 1, 32>}, {pipeline_mode = #tpu.pipeline_mode<synchronous>, transform_indices = @transform_5, window_bounds = array<i64: 32, 32>}, {pipeline_mode = #tpu.pipeline_mode<synchronous>, transform_indices = @transform_6, window_bounds = array<i64: 1, 32>}, {pipeline_mode = #tpu.pipeline_mode<synchronous>, transform_indices = @transform_7, window_bounds = array<i64: 32, 32>}, {pipeline_mode = #tpu.pipeline_mode<synchronous>, transform_indices = @transform_8, window_bounds = array<i64: 1, 32>}, {pipeline_mode = #tpu.pipeline_mode<synchronous>, transform_indices = @transform_9, window_bounds = array<i64: 32, 32>}, {pipeline_mode = #tpu.pipeline_mode<synchronous>, transform_indices = @transform_10, window_bounds = array<i64: 1, 32>}, {pipeline_mode = #tpu.pipeline_mode<synchronous>, transform_indices = @transform_11, window_bounds = array<i64: 1, 32>}, {pipeline_mode = #tpu.pipeline_mode<synchronous>, transform_indices = @transform_12, window_bounds = array<i64: 1, 32>}, {transform_indices = @transform_13, window_bounds = array<i64: 1, 8, 32>}]} {
    %c0 = arith.constant 0 : index
    %c0_0 = arith.constant 0 : index
    %c0_1 = arith.constant 0 : index
    %0 = vector.load %arg2[%c0, %c0_0, %c0_1] : memref<1x8x32xf32, #tpu.memory_space<vmem>>, vector<1x8x32xf32>
    %1 = vector.shape_cast %0 : vector<1x8x32xf32> to vector<8x32xf32>
    %c0_2 = arith.constant 0 : index
    %c0_3 = arith.constant 0 : index
    %c0_4 = arith.constant 0 : index
    %2 = vector.load %arg3[%c0_2, %c0_3, %c0_4] : memref<1x8x32xf32, #tpu.memory_space<vmem>>, vector<1x8x32xf32>
    %3 = vector.shape_cast %2 : vector<1x8x32xf32> to vector<8x32xf32>
    %4 = arith.truncf %1 : vector<8x32xf32> to vector<8x32xbf16>
    %5 = arith.truncf %3 : vector<8x32xf32> to vector<8x32xbf16>
    %c0_5 = arith.constant 0 : index
    %c0_6 = arith.constant 0 : index
    %6 = vector.load %arg5[%c0_5, %c0_6] : memref<32x32xbf16, #tpu.memory_space<vmem>>, vector<32x32xbf16>
    %cst = arith.constant dense<0.000000e+00> : vector<8x32xf32>
    %7 = tpu.matmul %4, %6, %cst {dimension_numbers = #tpu.dot_dimension_numbers<[1], [0], [0], [1], [0, 0, 1, 1], [], []>} : vector<8x32xbf16>, vector<32x32xbf16>, vector<8x32xf32> -> vector<8x32xf32>
    %c0_7 = arith.constant 0 : index
    %c0_8 = arith.constant 0 : index
    %8 = vector.load %arg6[%c0_7, %c0_8] : memref<1x32xf32, #tpu.memory_space<vmem>>, vector<1x32xf32>
    %9 = vector.broadcast %8 : vector<1x32xf32> to vector<8x32xf32>
    %10 = arith.addf %7, %9 : vector<8x32xf32>
    %c0_9 = arith.constant 0 : index
    %c0_10 = arith.constant 0 : index
    %11 = vector.load %arg7[%c0_9, %c0_10] : memref<32x32xbf16, #tpu.memory_space<vmem>>, vector<32x32xbf16>
    %cst_11 = arith.constant dense<0.000000e+00> : vector<8x32xf32>
    %12 = tpu.matmul %5, %11, %cst_11 {dimension_numbers = #tpu.dot_dimension_numbers<[1], [0], [0], [1], [0, 0, 1, 1], [], []>} : vector<8x32xbf16>, vector<32x32xbf16>, vector<8x32xf32> -> vector<8x32xf32>
    %c0_12 = arith.constant 0 : index
    %c0_13 = arith.constant 0 : index
    %13 = vector.load %arg8[%c0_12, %c0_13] : memref<1x32xf32, #tpu.memory_space<vmem>>, vector<1x32xf32>
    %14 = vector.broadcast %13 : vector<1x32xf32> to vector<8x32xf32>
    %15 = arith.addf %12, %14 : vector<8x32xf32>
    %c0_14 = arith.constant 0 : index
    %c0_15 = arith.constant 0 : index
    %16 = vector.load %arg9[%c0_14, %c0_15] : memref<32x32xbf16, #tpu.memory_space<vmem>>, vector<32x32xbf16>
    %cst_16 = arith.constant dense<0.000000e+00> : vector<8x32xf32>
    %17 = tpu.matmul %5, %16, %cst_16 {dimension_numbers = #tpu.dot_dimension_numbers<[1], [0], [0], [1], [0, 0, 1, 1], [], []>} : vector<8x32xbf16>, vector<32x32xbf16>, vector<8x32xf32> -> vector<8x32xf32>
    %c0_17 = arith.constant 0 : index
    %c0_18 = arith.constant 0 : index
    %18 = vector.load %arg10[%c0_17, %c0_18] : memref<1x32xf32, #tpu.memory_space<vmem>>, vector<1x32xf32>
    %19 = vector.broadcast %18 : vector<1x32xf32> to vector<8x32xf32>
    %20 = arith.addf %17, %19 : vector<8x32xf32>
    %c0_19 = arith.constant 0 : index
    %c0_20 = arith.constant 0 : index
    %c0_21 = arith.constant 0 : index
    %21 = vector.load %arg4[%c0_19, %c0_20, %c0_21] : memref<1x1x8xf32, #tpu.memory_space<vmem>>, vector<1x1x8xf32>
    %22 = vector.shape_cast %21 : vector<1x1x8xf32> to vector<1x8xf32>
    %23 = vector.extract_strided_slice %10 {offsets = [0, 0], sizes = [8, 8], strides = [1, 1]} : vector<8x32xf32> to vector<8x8xf32>
    %24 = arith.truncf %23 : vector<8x8xf32> to vector<8x8xbf16>
    %25 = vector.extract_strided_slice %15 {offsets = [0, 0], sizes = [8, 8], strides = [1, 1]} : vector<8x32xf32> to vector<8x8xf32>
    %26 = arith.truncf %25 : vector<8x8xf32> to vector<8x8xbf16>
    %27 = vector.extract_strided_slice %20 {offsets = [0, 0], sizes = [8, 8], strides = [1, 1]} : vector<8x32xf32> to vector<8x8xf32>
    %28 = arith.truncf %27 : vector<8x8xf32> to vector<8x8xbf16>
    %cst_22 = arith.constant dense<0.000000e+00> : vector<8x8xf32>
    %29 = tpu.matmul %24, %26, %cst_22 {dimension_numbers = #tpu.dot_dimension_numbers<[1], [1], [0], [0], [0, 0, 1, 0], [], []>} : vector<8x8xbf16>, vector<8x8xbf16>, vector<8x8xf32> -> vector<8x8xf32>
    %30 = vector.broadcast %22 : vector<1x8xf32> to vector<8x8xf32>
    %31 = arith.addf %29, %30 : vector<8x8xf32>
    %cst_23 = arith.constant dense<0xFF800000> : vector<8xf32>
    %32 = vector.multi_reduction <maximumf>, %31, %cst_23 [1] : vector<8x8xf32> to vector<8xf32>
    %33 = vector.shape_cast %32 : vector<8xf32> to vector<8x1xf32>
    %34 = vector.broadcast %33 : vector<8x1xf32> to vector<8x8xf32>
    %35 = arith.subf %31, %34 : vector<8x8xf32>
    %36 = math.exp %35 : vector<8x8xf32>
    %cst_24 = arith.constant dense<0.000000e+00> : vector<8xf32>
    %37 = vector.multi_reduction <add>, %36, %cst_24 [1] : vector<8x8xf32> to vector<8xf32>
    %38 = vector.shape_cast %37 : vector<8xf32> to vector<8x1xf32>
    %39 = tpu.reciprocal %38 {approx = true} : vector<8x1xf32> -> vector<8x1xf32>
    %40 = arith.truncf %36 : vector<8x8xf32> to vector<8x8xbf16>
    %cst_25 = arith.constant dense<0.000000e+00> : vector<8x8xf32>
    %41 = tpu.matmul %40, %28, %cst_25 {dimension_numbers = #tpu.dot_dimension_numbers<[1], [0], [0], [1], [0, 0, 1, 1], [], []>} : vector<8x8xbf16>, vector<8x8xbf16>, vector<8x8xf32> -> vector<8x8xf32>
    %42 = vector.broadcast %39 : vector<8x1xf32> to vector<8x8xf32>
    %43 = arith.mulf %41, %42 : vector<8x8xf32>
    %c0_26 = arith.constant 0 : index
    %c0_27 = arith.constant 0 : index
    %44 = vector.load %arg16[%c0_26, %c0_27] : memref<8x32xf32, #tpu.memory_space<vmem>>, vector<8x8xf32>
    tpu.vector_store %arg16[%c0_26, %c0_27], %43 {strides = array<i32>} : memref<8x32xf32, #tpu.memory_space<vmem>>, vector<8x8xf32>,
    %45 = vector.extract_strided_slice %10 {offsets = [0, 8], sizes = [8, 8], strides = [1, 1]} : vector<8x32xf32> to vector<8x8xf32>
    %46 = arith.truncf %45 : vector<8x8xf32> to vector<8x8xbf16>
    %47 = vector.extract_strided_slice %15 {offsets = [0, 8], sizes = [8, 8], strides = [1, 1]} : vector<8x32xf32> to vector<8x8xf32>
    %48 = arith.truncf %47 : vector<8x8xf32> to vector<8x8xbf16>
    %49 = vector.extract_strided_slice %20 {offsets = [0, 8], sizes = [8, 8], strides = [1, 1]} : vector<8x32xf32> to vector<8x8xf32>
    %50 = arith.truncf %49 : vector<8x8xf32> to vector<8x8xbf16>
    %cst_28 = arith.constant dense<0.000000e+00> : vector<8x8xf32>
    %51 = tpu.matmul %46, %48, %cst_28 {dimension_numbers = #tpu.dot_dimension_numbers<[1], [1], [0], [0], [0, 0, 1, 0], [], []>} : vector<8x8xbf16>, vector<8x8xbf16>, vector<8x8xf32> -> vector<8x8xf32>
    %52 = vector.broadcast %22 : vector<1x8xf32> to vector<8x8xf32>
    %53 = arith.addf %51, %52 : vector<8x8xf32>
    %cst_29 = arith.constant dense<0xFF800000> : vector<8xf32>
    %54 = vector.multi_reduction <maximumf>, %53, %cst_29 [1] : vector<8x8xf32> to vector<8xf32>
    %55 = vector.shape_cast %54 : vector<8xf32> to vector<8x1xf32>
    %56 = vector.broadcast %55 : vector<8x1xf32> to vector<8x8xf32>
    %57 = arith.subf %53, %56 : vector<8x8xf32>
    %58 = math.exp %57 : vector<8x8xf32>
    %cst_30 = arith.constant dense<0.000000e+00> : vector<8xf32>
    %59 = vector.multi_reduction <add>, %58, %cst_30 [1] : vector<8x8xf32> to vector<8xf32>
    %60 = vector.shape_cast %59 : vector<8xf32> to vector<8x1xf32>
    %61 = tpu.reciprocal %60 {approx = true} : vector<8x1xf32> -> vector<8x1xf32>
    %62 = arith.truncf %58 : vector<8x8xf32> to vector<8x8xbf16>
    %cst_31 = arith.constant dense<0.000000e+00> : vector<8x8xf32>
    %63 = tpu.matmul %62, %50, %cst_31 {dimension_numbers = #tpu.dot_dimension_numbers<[1], [0], [0], [1], [0, 0, 1, 1], [], []>} : vector<8x8xbf16>, vector<8x8xbf16>, vector<8x8xf32> -> vector<8x8xf32>
    %64 = vector.broadcast %61 : vector<8x1xf32> to vector<8x8xf32>
    %65 = arith.mulf %63, %64 : vector<8x8xf32>
    %c0_32 = arith.constant 0 : index
    %c8 = arith.constant 8 : index
    %66 = vector.load %arg16[%c0_32, %c8] : memref<8x32xf32, #tpu.memory_space<vmem>>, vector<8x8xf32>
    tpu.vector_store %arg16[%c0_32, %c8], %65 {strides = array<i32>} : memref<8x32xf32, #tpu.memory_space<vmem>>, vector<8x8xf32>,
    %67 = vector.extract_strided_slice %10 {offsets = [0, 16], sizes = [8, 8], strides = [1, 1]} : vector<8x32xf32> to vector<8x8xf32>
    %68 = arith.truncf %67 : vector<8x8xf32> to vector<8x8xbf16>
    %69 = vector.extract_strided_slice %15 {offsets = [0, 16], sizes = [8, 8], strides = [1, 1]} : vector<8x32xf32> to vector<8x8xf32>
    %70 = arith.truncf %69 : vector<8x8xf32> to vector<8x8xbf16>
    %71 = vector.extract_strided_slice %20 {offsets = [0, 16], sizes = [8, 8], strides = [1, 1]} : vector<8x32xf32> to vector<8x8xf32>
    %72 = arith.truncf %71 : vector<8x8xf32> to vector<8x8xbf16>
    %cst_33 = arith.constant dense<0.000000e+00> : vector<8x8xf32>
    %73 = tpu.matmul %68, %70, %cst_33 {dimension_numbers = #tpu.dot_dimension_numbers<[1], [1], [0], [0], [0, 0, 1, 0], [], []>} : vector<8x8xbf16>, vector<8x8xbf16>, vector<8x8xf32> -> vector<8x8xf32>
    %74 = vector.broadcast %22 : vector<1x8xf32> to vector<8x8xf32>
    %75 = arith.addf %73, %74 : vector<8x8xf32>
    %cst_34 = arith.constant dense<0xFF800000> : vector<8xf32>
    %76 = vector.multi_reduction <maximumf>, %75, %cst_34 [1] : vector<8x8xf32> to vector<8xf32>
    %77 = vector.shape_cast %76 : vector<8xf32> to vector<8x1xf32>
    %78 = vector.broadcast %77 : vector<8x1xf32> to vector<8x8xf32>
    %79 = arith.subf %75, %78 : vector<8x8xf32>
    %80 = math.exp %79 : vector<8x8xf32>
    %cst_35 = arith.constant dense<0.000000e+00> : vector<8xf32>
    %81 = vector.multi_reduction <add>, %80, %cst_35 [1] : vector<8x8xf32> to vector<8xf32>
    %82 = vector.shape_cast %81 : vector<8xf32> to vector<8x1xf32>
    %83 = tpu.reciprocal %82 {approx = true} : vector<8x1xf32> -> vector<8x1xf32>
    %84 = arith.truncf %80 : vector<8x8xf32> to vector<8x8xbf16>
    %cst_36 = arith.constant dense<0.000000e+00> : vector<8x8xf32>
    %85 = tpu.matmul %84, %72, %cst_36 {dimension_numbers = #tpu.dot_dimension_numbers<[1], [0], [0], [1], [0, 0, 1, 1], [], []>} : vector<8x8xbf16>, vector<8x8xbf16>, vector<8x8xf32> -> vector<8x8xf32>
    %86 = vector.broadcast %83 : vector<8x1xf32> to vector<8x8xf32>
    %87 = arith.mulf %85, %86 : vector<8x8xf32>
    %c0_37 = arith.constant 0 : index
    %c16 = arith.constant 16 : index
    %88 = vector.load %arg16[%c0_37, %c16] : memref<8x32xf32, #tpu.memory_space<vmem>>, vector<8x8xf32>
    tpu.vector_store %arg16[%c0_37, %c16], %87 {strides = array<i32>} : memref<8x32xf32, #tpu.memory_space<vmem>>, vector<8x8xf32>,
    %89 = vector.extract_strided_slice %10 {offsets = [0, 24], sizes = [8, 8], strides = [1, 1]} : vector<8x32xf32> to vector<8x8xf32>
    %90 = arith.truncf %89 : vector<8x8xf32> to vector<8x8xbf16>
    %91 = vector.extract_strided_slice %15 {offsets = [0, 24], sizes = [8, 8], strides = [1, 1]} : vector<8x32xf32> to vector<8x8xf32>
    %92 = arith.truncf %91 : vector<8x8xf32> to vector<8x8xbf16>
    %93 = vector.extract_strided_slice %20 {offsets = [0, 24], sizes = [8, 8], strides = [1, 1]} : vector<8x32xf32> to vector<8x8xf32>
    %94 = arith.truncf %93 : vector<8x8xf32> to vector<8x8xbf16>
    %cst_38 = arith.constant dense<0.000000e+00> : vector<8x8xf32>
    %95 = tpu.matmul %90, %92, %cst_38 {dimension_numbers = #tpu.dot_dimension_numbers<[1], [1], [0], [0], [0, 0, 1, 0], [], []>} : vector<8x8xbf16>, vector<8x8xbf16>, vector<8x8xf32> -> vector<8x8xf32>
    %96 = vector.broadcast %22 : vector<1x8xf32> to vector<8x8xf32>
    %97 = arith.addf %95, %96 : vector<8x8xf32>
    %cst_39 = arith.constant dense<0xFF800000> : vector<8xf32>
    %98 = vector.multi_reduction <maximumf>, %97, %cst_39 [1] : vector<8x8xf32> to vector<8xf32>
    %99 = vector.shape_cast %98 : vector<8xf32> to vector<8x1xf32>
    %100 = vector.broadcast %99 : vector<8x1xf32> to vector<8x8xf32>
    %101 = arith.subf %97, %100 : vector<8x8xf32>
    %102 = math.exp %101 : vector<8x8xf32>
    %cst_40 = arith.constant dense<0.000000e+00> : vector<8xf32>
    %103 = vector.multi_reduction <add>, %102, %cst_40 [1] : vector<8x8xf32> to vector<8xf32>
    %104 = vector.shape_cast %103 : vector<8xf32> to vector<8x1xf32>
    %105 = tpu.reciprocal %104 {approx = true} : vector<8x1xf32> -> vector<8x1xf32>
    %106 = arith.truncf %102 : vector<8x8xf32> to vector<8x8xbf16>
    %cst_41 = arith.constant dense<0.000000e+00> : vector<8x8xf32>
    %107 = tpu.matmul %106, %94, %cst_41 {dimension_numbers = #tpu.dot_dimension_numbers<[1], [0], [0], [1], [0, 0, 1, 1], [], []>} : vector<8x8xbf16>, vector<8x8xbf16>, vector<8x8xf32> -> vector<8x8xf32>
    %108 = vector.broadcast %105 : vector<8x1xf32> to vector<8x8xf32>
    %109 = arith.mulf %107, %108 : vector<8x8xf32>
    %c0_42 = arith.constant 0 : index
    %c24 = arith.constant 24 : index
    %110 = vector.load %arg16[%c0_42, %c24] : memref<8x32xf32, #tpu.memory_space<vmem>>, vector<8x8xf32>
    tpu.vector_store %arg16[%c0_42, %c24], %109 {strides = array<i32>} : memref<8x32xf32, #tpu.memory_space<vmem>>, vector<8x8xf32>,
    %c0_43 = arith.constant 0 : index
    %c0_44 = arith.constant 0 : index
    %111 = vector.load %arg12[%c0_43, %c0_44] : memref<1x32xf32, #tpu.memory_space<vmem>>, vector<1x32xf32>
    %112 = vector.broadcast %111 : vector<1x32xf32> to vector<8x32xf32>
    %113 = arith.addf %1, %112 : vector<8x32xf32>
    %c0_45 = arith.constant 0 : index
    %c0_46 = arith.constant 0 : index
    %114 = vector.load %arg16[%c0_45, %c0_46] : memref<8x32xf32, #tpu.memory_space<vmem>>, vector<8x32xf32>
    %115 = arith.truncf %114 : vector<8x32xf32> to vector<8x32xbf16>
    %c0_47 = arith.constant 0 : index
    %c0_48 = arith.constant 0 : index
    %116 = vector.load %arg11[%c0_47, %c0_48] : memref<32x32xbf16, #tpu.memory_space<vmem>>, vector<32x32xbf16>
    %cst_49 = arith.constant dense<0.000000e+00> : vector<8x32xf32>
    %117 = tpu.matmul %115, %116, %cst_49 {dimension_numbers = #tpu.dot_dimension_numbers<[1], [0], [0], [1], [0, 0, 1, 1], [], []>} : vector<8x32xbf16>, vector<32x32xbf16>, vector<8x32xf32> -> vector<8x32xf32>
    %118 = arith.addf %113, %117 : vector<8x32xf32>
    %cst_50 = arith.constant dense<0.000000e+00> : vector<8xf32>
    %119 = vector.multi_reduction <add>, %118, %cst_50 [1] : vector<8x32xf32> to vector<8xf32>
    %120 = vector.shape_cast %119 : vector<8xf32> to vector<8x1xf32>
    %cst_51 = arith.constant 3.200000e+01 : f32
    %121 = vector.broadcast %cst_51 : f32 to vector<8x1xf32>
    %122 = arith.divf %120, %121 : vector<8x1xf32>
    %123 = vector.broadcast %122 : vector<8x1xf32> to vector<8x32xf32>
    %124 = arith.subf %118, %123 : vector<8x32xf32>
    %125 = arith.mulf %124, %124 : vector<8x32xf32>
    %cst_52 = arith.constant dense<0.000000e+00> : vector<8xf32>
    %126 = vector.multi_reduction <add>, %125, %cst_52 [1] : vector<8x32xf32> to vector<8xf32>
    %127 = vector.shape_cast %126 : vector<8xf32> to vector<8x1xf32>
    %cst_53 = arith.constant 3.200000e+01 : f32
    %128 = vector.broadcast %cst_53 : f32 to vector<8x1xf32>
    %129 = arith.divf %127, %128 : vector<8x1xf32>
    %130 = vector.broadcast %122 : vector<8x1xf32> to vector<8x32xf32>
    %131 = arith.subf %118, %130 : vector<8x32xf32>
    %cst_54 = arith.constant 9.99999974E-6 : f32
    %132 = vector.broadcast %cst_54 : f32 to vector<8x1xf32>
    %133 = arith.addf %129, %132 : vector<8x1xf32>
    %134 = math.rsqrt %133 : vector<8x1xf32>
    %135 = vector.broadcast %134 : vector<8x1xf32> to vector<8x32xf32>
    %136 = arith.mulf %131, %135 : vector<8x32xf32>
    %c0_55 = arith.constant 0 : index
    %c0_56 = arith.constant 0 : index
    %137 = vector.load %arg13[%c0_55, %c0_56] : memref<1x32xf32, #tpu.memory_space<vmem>>, vector<1x32xf32>
    %138 = vector.broadcast %137 : vector<1x32xf32> to vector<8x32xf32>
    %139 = arith.mulf %136, %138 : vector<8x32xf32>
    %c0_57 = arith.constant 0 : index
    %c0_58 = arith.constant 0 : index
    %140 = vector.load %arg14[%c0_57, %c0_58] : memref<1x32xf32, #tpu.memory_space<vmem>>, vector<1x32xf32>
    %141 = vector.broadcast %140 : vector<1x32xf32> to vector<8x32xf32>
    %142 = arith.addf %139, %141 : vector<8x32xf32>
    %c0_59 = arith.constant 0 : index
    %c0_60 = arith.constant 0 : index
    %c0_61 = arith.constant 0 : index
    %143 = vector.load %arg15[%c0_59, %c0_60, %c0_61] : memref<1x8x32xf32, #tpu.memory_space<vmem>>, vector<1x8x32xf32>
    %144 = vector.shape_cast %143 : vector<1x8x32xf32> to vector<8x32xf32>
    %145 = vector.shape_cast %142 : vector<8x32xf32> to vector<1x8x32xf32>
    tpu.vector_store %arg15[%c0_59, %c0_60, %c0_61], %145 {strides = array<i32>} : memref<1x8x32xf32, #tpu.memory_space<vmem>>, vector<1x8x32xf32>,
    return
  }
  func.func @transform_0(%arg0: i32, %arg1: i32) -> (i32, i32, i32) {
    %c0_i32 = arith.constant 0 : i32
    %c0_i32_0 = arith.constant 0 : i32
    return %arg0, %arg1, %c0_i32 : i32, i32, i32
  }
  func.func @transform_1(%arg0: i32, %arg1: i32) -> (i32, i32, i32) {
    %c0_i32 = arith.constant 0 : i32
    %c0_i32_0 = arith.constant 0 : i32
    %c0_i32_1 = arith.constant 0 : i32
    return %arg0, %c0_i32, %c0_i32_0 : i32, i32, i32
  }
  func.func @transform_2(%arg0: i32, %arg1: i32) -> (i32, i32, i32) {
    %c0_i32 = arith.constant 0 : i32
    %c0_i32_0 = arith.constant 0 : i32
    %c0_i32_1 = arith.constant 0 : i32
    return %arg0, %c0_i32, %c0_i32_0 : i32, i32, i32
  }
  func.func @transform_3(%arg0: i32, %arg1: i32) -> (i32, i32) {
    %c0_i32 = arith.constant 0 : i32
    %c0_i32_0 = arith.constant 0 : i32
    %c0_i32_1 = arith.constant 0 : i32
    return %c0_i32, %c0_i32_0 : i32, i32
  }
  func.func @transform_4(%arg0: i32, %arg1: i32) -> (i32, i32) {
    %c0_i32 = arith.constant 0 : i32
    %c0_i32_0 = arith.constant 0 : i32
    %c0_i32_1 = arith.constant 0 : i32
    return %c0_i32, %c0_i32_0 : i32, i32
  }
  func.func @transform_5(%arg0: i32, %arg1: i32) -> (i32, i32) {
    %c0_i32 = arith.constant 0 : i32
    %c0_i32_0 = arith.constant 0 : i32
    %c0_i32_1 = arith.constant 0 : i32
    return %c0_i32, %c0_i32_0 : i32, i32
  }
  func.func @transform_6(%arg0: i32, %arg1: i32) -> (i32, i32) {
    %c0_i32 = arith.constant 0 : i32
    %c0_i32_0 = arith.constant 0 : i32
    %c0_i32_1 = arith.constant 0 : i32
    return %c0_i32, %c0_i32_0 : i32, i32
  }
  func.func @transform_7(%arg0: i32, %arg1: i32) -> (i32, i32) {
    %c0_i32 = arith.constant 0 : i32
    %c0_i32_0 = arith.constant 0 : i32
    %c0_i32_1 = arith.constant 0 : i32
    return %c0_i32, %c0_i32_0 : i32, i32
  }
  func.func @transform_8(%arg0: i32, %arg1: i32) -> (i32, i32) {
    %c0_i32 = arith.constant 0 : i32
    %c0_i32_0 = arith.constant 0 : i32
    %c0_i32_1 = arith.constant 0 : i32
    return %c0_i32, %c0_i32_0 : i32, i32
  }
  func.func @transform_9(%arg0: i32, %arg1: i32) -> (i32, i32) {
    %c0_i32 = arith.constant 0 : i32
    %c0_i32_0 = arith.constant 0 : i32
    %c0_i32_1 = arith.constant 0 : i32
    return %c0_i32, %c0_i32_0 : i32, i32
  }
  func.func @transform_10(%arg0: i32, %arg1: i32) -> (i32, i32) {
    %c0_i32 = arith.constant 0 : i32
    %c0_i32_0 = arith.constant 0 : i32
    %c0_i32_1 = arith.constant 0 : i32
    return %c0_i32, %c0_i32_0 : i32, i32
  }
  func.func @transform_11(%arg0: i32, %arg1: i32) -> (i32, i32) {
    %c0_i32 = arith.constant 0 : i32
    %c0_i32_0 = arith.constant 0 : i32
    %c0_i32_1 = arith.constant 0 : i32
    return %c0_i32, %c0_i32_0 : i32, i32
  }
  func.func @transform_12(%arg0: i32, %arg1: i32) -> (i32, i32) {
    %c0_i32 = arith.constant 0 : i32
    %c0_i32_0 = arith.constant 0 : i32
    %c0_i32_1 = arith.constant 0 : i32
    return %c0_i32, %c0_i32_0 : i32, i32
  }
  func.func @transform_13(%arg0: i32, %arg1: i32) -> (i32, i32, i32) {
    %c0_i32 = arith.constant 0 : i32
    %c0_i32_0 = arith.constant 0 : i32
    return %arg0, %arg1, %c0_i32 : i32, i32, i32
  }
}

module attributes {stable_mosaic.version = 11 : i64} {
  func.func @ffn_block_kernel(%arg0: i32, %arg1: i32, %arg2: memref<16x32xf32, #tpu.memory_space<vmem>>, %arg3: memref<32x64xbf16, #tpu.memory_space<vmem>>, %arg4: memref<1x64xf32, #tpu.memory_space<vmem>>, %arg5: memref<64x32xbf16, #tpu.memory_space<vmem>>, %arg6: memref<1x32xf32, #tpu.memory_space<vmem>>, %arg7: memref<1x32xf32, #tpu.memory_space<vmem>>, %arg8: memref<1x32xf32, #tpu.memory_space<vmem>>, %arg9: memref<16x32xf32, #tpu.memory_space<vmem>>, %arg10: memref<16x32xf32, #tpu.memory_space<vmem>>) attributes {dimension_semantics = [#tpu.dimension_semantics<parallel>, #tpu.dimension_semantics<arbitrary>], iteration_bounds = array<i64: 1, 1>, scalar_prefetch = 0 : i64, scratch_operands = 1 : i64, tpu.core_type = #tpu.core_type<tc>, window_params = [{transform_indices = @transform_0, window_bounds = array<i64: 16, 32>}, {transform_indices = @transform_1, window_bounds = array<i64: 32, 64>}, {transform_indices = @transform_2, window_bounds = array<i64: 1, 64>}, {transform_indices = @transform_3, window_bounds = array<i64: 64, 32>}, {pipeline_mode = #tpu.pipeline_mode<synchronous>, transform_indices = @transform_4, window_bounds = array<i64: 1, 32>}, {pipeline_mode = #tpu.pipeline_mode<synchronous>, transform_indices = @transform_5, window_bounds = array<i64: 1, 32>}, {pipeline_mode = #tpu.pipeline_mode<synchronous>, transform_indices = @transform_6, window_bounds = array<i64: 1, 32>}, {transform_indices = @transform_7, window_bounds = array<i64: 16, 32>}]} {
    %c0_i32 = arith.constant 0 : i32
    %0 = arith.cmpi eq, %arg1, %c0_i32 : i32
    %1 = arith.extui %0 : i1 to i32
    %c0_i32_0 = arith.constant 0 : i32
    %2 = arith.cmpi ne, %1, %c0_i32_0 : i32
    scf.if %2 {
      %cst_16 = arith.constant 0.000000e+00 : f32
      %21 = vector.broadcast %cst_16 : f32 to vector<16x32xf32>
      %c0_17 = arith.constant 0 : index
      %c0_18 = arith.constant 0 : index
      %22 = vector.load %arg10[%c0_17, %c0_18] : memref<16x32xf32, #tpu.memory_space<vmem>>, vector<16x32xf32>
      tpu.vector_store %arg10[%c0_17, %c0_18], %21 {strides = array<i32>} : memref<16x32xf32, #tpu.memory_space<vmem>>, vector<16x32xf32>,
    } else {
    }
    %c0 = arith.constant 0 : index
    %c0_1 = arith.constant 0 : index
    %3 = vector.load %arg2[%c0, %c0_1] : memref<16x32xf32, #tpu.memory_space<vmem>>, vector<16x32xf32>
    %4 = arith.truncf %3 : vector<16x32xf32> to vector<16x32xbf16>
    %c0_2 = arith.constant 0 : index
    %c0_3 = arith.constant 0 : index
    %5 = vector.load %arg3[%c0_2, %c0_3] : memref<32x64xbf16, #tpu.memory_space<vmem>>, vector<32x64xbf16>
    %cst = arith.constant dense<0.000000e+00> : vector<16x64xf32>
    %6 = tpu.matmul %4, %5, %cst {dimension_numbers = #tpu.dot_dimension_numbers<[1], [0], [0], [1], [0, 0, 1, 1], [], []>} : vector<16x32xbf16>, vector<32x64xbf16>, vector<16x64xf32> -> vector<16x64xf32>
    %c0_4 = arith.constant 0 : index
    %c0_5 = arith.constant 0 : index
    %7 = vector.load %arg4[%c0_4, %c0_5] : memref<1x64xf32, #tpu.memory_space<vmem>>, vector<1x64xf32>
    %8 = vector.broadcast %7 : vector<1x64xf32> to vector<16x64xf32>
    %9 = arith.addf %6, %8 : vector<16x64xf32>
    %cst_6 = arith.constant 0.000000e+00 : f32
    %10 = vector.broadcast %cst_6 : f32 to vector<16x64xf32>
    %11 = arith.maximumf %9, %10 : vector<16x64xf32>
    %c0_7 = arith.constant 0 : index
    %c0_8 = arith.constant 0 : index
    %12 = vector.load %arg10[%c0_7, %c0_8] : memref<16x32xf32, #tpu.memory_space<vmem>>, vector<16x32xf32>
    %13 = arith.truncf %11 : vector<16x64xf32> to vector<16x64xbf16>
    %c0_9 = arith.constant 0 : index
    %c0_10 = arith.constant 0 : index
    %14 = vector.load %arg5[%c0_9, %c0_10] : memref<64x32xbf16, #tpu.memory_space<vmem>>, vector<64x32xbf16>
    %cst_11 = arith.constant dense<0.000000e+00> : vector<16x32xf32>
    %15 = tpu.matmul %13, %14, %cst_11 {dimension_numbers = #tpu.dot_dimension_numbers<[1], [0], [0], [1], [0, 0, 1, 1], [], []>} : vector<16x64xbf16>, vector<64x32xbf16>, vector<16x32xf32> -> vector<16x32xf32>
    %16 = arith.addf %12, %15 : vector<16x32xf32>
    %c0_12 = arith.constant 0 : index
    %c0_13 = arith.constant 0 : index
    %17 = vector.load %arg10[%c0_12, %c0_13] : memref<16x32xf32, #tpu.memory_space<vmem>>, vector<16x32xf32>
    tpu.vector_store %arg10[%c0_12, %c0_13], %16 {strides = array<i32>} : memref<16x32xf32, #tpu.memory_space<vmem>>, vector<16x32xf32>,
    %c0_i32_14 = arith.constant 0 : i32
    %18 = arith.cmpi eq, %arg1, %c0_i32_14 : i32
    %19 = arith.extui %18 : i1 to i32
    %c0_i32_15 = arith.constant 0 : i32
    %20 = arith.cmpi ne, %19, %c0_i32_15 : i32
    scf.if %20 {
      %c0_16 = arith.constant 0 : index
      %c0_17 = arith.constant 0 : index
      %21 = vector.load %arg10[%c0_16, %c0_17] : memref<16x32xf32, #tpu.memory_space<vmem>>, vector<16x32xf32>
      %c0_18 = arith.constant 0 : index
      %c0_19 = arith.constant 0 : index
      %22 = vector.load %arg6[%c0_18, %c0_19] : memref<1x32xf32, #tpu.memory_space<vmem>>, vector<1x32xf32>
      %23 = vector.broadcast %22 : vector<1x32xf32> to vector<16x32xf32>
      %24 = arith.addf %21, %23 : vector<16x32xf32>
      %25 = arith.addf %24, %3 : vector<16x32xf32>
      %cst_20 = arith.constant dense<0.000000e+00> : vector<16xf32>
      %26 = vector.multi_reduction <add>, %25, %cst_20 [1] : vector<16x32xf32> to vector<16xf32>
      %27 = vector.shape_cast %26 : vector<16xf32> to vector<16x1xf32>
      %cst_21 = arith.constant 3.200000e+01 : f32
      %28 = vector.broadcast %cst_21 : f32 to vector<16x1xf32>
      %29 = arith.divf %27, %28 : vector<16x1xf32>
      %30 = vector.broadcast %29 : vector<16x1xf32> to vector<16x32xf32>
      %31 = arith.subf %25, %30 : vector<16x32xf32>
      %32 = arith.mulf %31, %31 : vector<16x32xf32>
      %cst_22 = arith.constant dense<0.000000e+00> : vector<16xf32>
      %33 = vector.multi_reduction <add>, %32, %cst_22 [1] : vector<16x32xf32> to vector<16xf32>
      %34 = vector.shape_cast %33 : vector<16xf32> to vector<16x1xf32>
      %cst_23 = arith.constant 3.200000e+01 : f32
      %35 = vector.broadcast %cst_23 : f32 to vector<16x1xf32>
      %36 = arith.divf %34, %35 : vector<16x1xf32>
      %37 = vector.broadcast %29 : vector<16x1xf32> to vector<16x32xf32>
      %38 = arith.subf %25, %37 : vector<16x32xf32>
      %cst_24 = arith.constant 9.99999974E-6 : f32
      %39 = vector.broadcast %cst_24 : f32 to vector<16x1xf32>
      %40 = arith.addf %36, %39 : vector<16x1xf32>
      %41 = math.rsqrt %40 : vector<16x1xf32>
      %42 = vector.broadcast %41 : vector<16x1xf32> to vector<16x32xf32>
      %43 = arith.mulf %38, %42 : vector<16x32xf32>
      %c0_25 = arith.constant 0 : index
      %c0_26 = arith.constant 0 : index
      %44 = vector.load %arg7[%c0_25, %c0_26] : memref<1x32xf32, #tpu.memory_space<vmem>>, vector<1x32xf32>
      %45 = vector.broadcast %44 : vector<1x32xf32> to vector<16x32xf32>
      %46 = arith.mulf %43, %45 : vector<16x32xf32>
      %c0_27 = arith.constant 0 : index
      %c0_28 = arith.constant 0 : index
      %47 = vector.load %arg8[%c0_27, %c0_28] : memref<1x32xf32, #tpu.memory_space<vmem>>, vector<1x32xf32>
      %48 = vector.broadcast %47 : vector<1x32xf32> to vector<16x32xf32>
      %49 = arith.addf %46, %48 : vector<16x32xf32>
      %c0_29 = arith.constant 0 : index
      %c0_30 = arith.constant 0 : index
      %50 = vector.load %arg9[%c0_29, %c0_30] : memref<16x32xf32, #tpu.memory_space<vmem>>, vector<16x32xf32>
      tpu.vector_store %arg9[%c0_29, %c0_30], %49 {strides = array<i32>} : memref<16x32xf32, #tpu.memory_space<vmem>>, vector<16x32xf32>,
    } else {
    }
    return
  }
  func.func @transform_0(%arg0: i32, %arg1: i32) -> (i32, i32) {
    %c0_i32 = arith.constant 0 : i32
    %c0_i32_0 = arith.constant 0 : i32
    return %arg0, %c0_i32 : i32, i32
  }
  func.func @transform_1(%arg0: i32, %arg1: i32) -> (i32, i32) {
    %c0_i32 = arith.constant 0 : i32
    %c0_i32_0 = arith.constant 0 : i32
    return %c0_i32, %arg1 : i32, i32
  }
  func.func @transform_2(%arg0: i32, %arg1: i32) -> (i32, i32) {
    %c0_i32 = arith.constant 0 : i32
    %c0_i32_0 = arith.constant 0 : i32
    return %c0_i32, %arg1 : i32, i32
  }
  func.func @transform_3(%arg0: i32, %arg1: i32) -> (i32, i32) {
    %c0_i32 = arith.constant 0 : i32
    %c0_i32_0 = arith.constant 0 : i32
    return %arg1, %c0_i32 : i32, i32
  }
  func.func @transform_4(%arg0: i32, %arg1: i32) -> (i32, i32) {
    %c0_i32 = arith.constant 0 : i32
    %c0_i32_0 = arith.constant 0 : i32
    %c0_i32_1 = arith.constant 0 : i32
    return %c0_i32, %c0_i32_0 : i32, i32
  }
  func.func @transform_5(%arg0: i32, %arg1: i32) -> (i32, i32) {
    %c0_i32 = arith.constant 0 : i32
    %c0_i32_0 = arith.constant 0 : i32
    %c0_i32_1 = arith.constant 0 : i32
    return %c0_i32, %c0_i32_0 : i32, i32
  }
  func.func @transform_6(%arg0: i32, %arg1: i32) -> (i32, i32) {
    %c0_i32 = arith.constant 0 : i32
    %c0_i32_0 = arith.constant 0 : i32
    %c0_i32_1 = arith.constant 0 : i32
    return %c0_i32, %c0_i32_0 : i32, i32
  }
  func.func @transform_7(%arg0: i32, %arg1: i32) -> (i32, i32) {
    %c0_i32 = arith.constant 0 : i32
    %c0_i32_0 = arith.constant 0 : i32
    return %arg0, %c0_i32 : i32, i32
  }
}

module attributes {stable_mosaic.version = 11 : i64} {
  func.func @attn_block_kernel(%arg0: i32, %arg1: i32, %arg2: memref<1x8x32xf32, #tpu.memory_space<vmem>>, %arg3: memref<1x8x32xf32, #tpu.memory_space<vmem>>, %arg4: memref<32x32xbf16, #tpu.memory_space<vmem>>, %arg5: memref<1x32xf32, #tpu.memory_space<vmem>>, %arg6: memref<32x32xbf16, #tpu.memory_space<vmem>>, %arg7: memref<1x32xf32, #tpu.memory_space<vmem>>, %arg8: memref<32x32xbf16, #tpu.memory_space<vmem>>, %arg9: memref<1x32xf32, #tpu.memory_space<vmem>>, %arg10: memref<32x32xbf16, #tpu.memory_space<vmem>>, %arg11: memref<1x32xf32, #tpu.memory_space<vmem>>, %arg12: memref<1x32xf32, #tpu.memory_space<vmem>>, %arg13: memref<1x32xf32, #tpu.memory_space<vmem>>, %arg14: memref<1x8x32xf32, #tpu.memory_space<vmem>>, %arg15: memref<8x32xf32, #tpu.memory_space<vmem>>) attributes {dimension_semantics = [#tpu.dimension_semantics<parallel>, #tpu.dimension_semantics<parallel>], iteration_bounds = array<i64: 2, 1>, scalar_prefetch = 0 : i64, scratch_operands = 1 : i64, tpu.core_type = #tpu.core_type<tc>, window_params = [{transform_indices = @transform_0, window_bounds = array<i64: 1, 8, 32>}, {transform_indices = @transform_1, window_bounds = array<i64: 1, 8, 32>}, {pipeline_mode = #tpu.pipeline_mode<synchronous>, transform_indices = @transform_2, window_bounds = array<i64: 32, 32>}, {pipeline_mode = #tpu.pipeline_mode<synchronous>, transform_indices = @transform_3, window_bounds = array<i64: 1, 32>}, {pipeline_mode = #tpu.pipeline_mode<synchronous>, transform_indices = @transform_4, window_bounds = array<i64: 32, 32>}, {pipeline_mode = #tpu.pipeline_mode<synchronous>, transform_indices = @transform_5, window_bounds = array<i64: 1, 32>}, {pipeline_mode = #tpu.pipeline_mode<synchronous>, transform_indices = @transform_6, window_bounds = array<i64: 32, 32>}, {pipeline_mode = #tpu.pipeline_mode<synchronous>, transform_indices = @transform_7, window_bounds = array<i64: 1, 32>}, {pipeline_mode = #tpu.pipeline_mode<synchronous>, transform_indices = @transform_8, window_bounds = array<i64: 32, 32>}, {pipeline_mode = #tpu.pipeline_mode<synchronous>, transform_indices = @transform_9, window_bounds = array<i64: 1, 32>}, {pipeline_mode = #tpu.pipeline_mode<synchronous>, transform_indices = @transform_10, window_bounds = array<i64: 1, 32>}, {pipeline_mode = #tpu.pipeline_mode<synchronous>, transform_indices = @transform_11, window_bounds = array<i64: 1, 32>}, {transform_indices = @transform_12, window_bounds = array<i64: 1, 8, 32>}]} {
    %c0 = arith.constant 0 : index
    %c0_0 = arith.constant 0 : index
    %c0_1 = arith.constant 0 : index
    %0 = vector.load %arg2[%c0, %c0_0, %c0_1] : memref<1x8x32xf32, #tpu.memory_space<vmem>>, vector<1x8x32xf32>
    %1 = vector.shape_cast %0 : vector<1x8x32xf32> to vector<8x32xf32>
    %c0_2 = arith.constant 0 : index
    %c0_3 = arith.constant 0 : index
    %c0_4 = arith.constant 0 : index
    %2 = vector.load %arg3[%c0_2, %c0_3, %c0_4] : memref<1x8x32xf32, #tpu.memory_space<vmem>>, vector<1x8x32xf32>
    %3 = vector.shape_cast %2 : vector<1x8x32xf32> to vector<8x32xf32>
    %4 = arith.truncf %1 : vector<8x32xf32> to vector<8x32xbf16>
    %5 = arith.truncf %3 : vector<8x32xf32> to vector<8x32xbf16>
    %c0_5 = arith.constant 0 : index
    %c0_6 = arith.constant 0 : index
    %6 = vector.load %arg4[%c0_5, %c0_6] : memref<32x32xbf16, #tpu.memory_space<vmem>>, vector<32x32xbf16>
    %cst = arith.constant dense<0.000000e+00> : vector<8x32xf32>
    %7 = tpu.matmul %4, %6, %cst {dimension_numbers = #tpu.dot_dimension_numbers<[1], [0], [0], [1], [0, 0, 1, 1], [], []>} : vector<8x32xbf16>, vector<32x32xbf16>, vector<8x32xf32> -> vector<8x32xf32>
    %c0_7 = arith.constant 0 : index
    %c0_8 = arith.constant 0 : index
    %8 = vector.load %arg5[%c0_7, %c0_8] : memref<1x32xf32, #tpu.memory_space<vmem>>, vector<1x32xf32>
    %9 = vector.broadcast %8 : vector<1x32xf32> to vector<8x32xf32>
    %10 = arith.addf %7, %9 : vector<8x32xf32>
    %c0_9 = arith.constant 0 : index
    %c0_10 = arith.constant 0 : index
    %11 = vector.load %arg6[%c0_9, %c0_10] : memref<32x32xbf16, #tpu.memory_space<vmem>>, vector<32x32xbf16>
    %cst_11 = arith.constant dense<0.000000e+00> : vector<8x32xf32>
    %12 = tpu.matmul %5, %11, %cst_11 {dimension_numbers = #tpu.dot_dimension_numbers<[1], [0], [0], [1], [0, 0, 1, 1], [], []>} : vector<8x32xbf16>, vector<32x32xbf16>, vector<8x32xf32> -> vector<8x32xf32>
    %c0_12 = arith.constant 0 : index
    %c0_13 = arith.constant 0 : index
    %13 = vector.load %arg7[%c0_12, %c0_13] : memref<1x32xf32, #tpu.memory_space<vmem>>, vector<1x32xf32>
    %14 = vector.broadcast %13 : vector<1x32xf32> to vector<8x32xf32>
    %15 = arith.addf %12, %14 : vector<8x32xf32>
    %c0_14 = arith.constant 0 : index
    %c0_15 = arith.constant 0 : index
    %16 = vector.load %arg8[%c0_14, %c0_15] : memref<32x32xbf16, #tpu.memory_space<vmem>>, vector<32x32xbf16>
    %cst_16 = arith.constant dense<0.000000e+00> : vector<8x32xf32>
    %17 = tpu.matmul %5, %16, %cst_16 {dimension_numbers = #tpu.dot_dimension_numbers<[1], [0], [0], [1], [0, 0, 1, 1], [], []>} : vector<8x32xbf16>, vector<32x32xbf16>, vector<8x32xf32> -> vector<8x32xf32>
    %c0_17 = arith.constant 0 : index
    %c0_18 = arith.constant 0 : index
    %18 = vector.load %arg9[%c0_17, %c0_18] : memref<1x32xf32, #tpu.memory_space<vmem>>, vector<1x32xf32>
    %19 = vector.broadcast %18 : vector<1x32xf32> to vector<8x32xf32>
    %20 = arith.addf %17, %19 : vector<8x32xf32>
    %21 = vector.extract_strided_slice %10 {offsets = [0, 0], sizes = [8, 8], strides = [1, 1]} : vector<8x32xf32> to vector<8x8xf32>
    %22 = arith.truncf %21 : vector<8x8xf32> to vector<8x8xbf16>
    %23 = vector.extract_strided_slice %15 {offsets = [0, 0], sizes = [8, 8], strides = [1, 1]} : vector<8x32xf32> to vector<8x8xf32>
    %24 = arith.truncf %23 : vector<8x8xf32> to vector<8x8xbf16>
    %25 = vector.extract_strided_slice %20 {offsets = [0, 0], sizes = [8, 8], strides = [1, 1]} : vector<8x32xf32> to vector<8x8xf32>
    %26 = arith.truncf %25 : vector<8x8xf32> to vector<8x8xbf16>
    %cst_19 = arith.constant dense<0.000000e+00> : vector<8x8xf32>
    %27 = tpu.matmul %22, %24, %cst_19 {dimension_numbers = #tpu.dot_dimension_numbers<[1], [1], [0], [0], [0, 0, 1, 0], [], []>} : vector<8x8xbf16>, vector<8x8xbf16>, vector<8x8xf32> -> vector<8x8xf32>
    %cst_20 = arith.constant dense<0xFF800000> : vector<8xf32>
    %28 = vector.multi_reduction <maximumf>, %27, %cst_20 [1] : vector<8x8xf32> to vector<8xf32>
    %29 = vector.shape_cast %28 : vector<8xf32> to vector<8x1xf32>
    %30 = vector.broadcast %29 : vector<8x1xf32> to vector<8x8xf32>
    %31 = arith.subf %27, %30 : vector<8x8xf32>
    %32 = math.exp %31 : vector<8x8xf32>
    %cst_21 = arith.constant dense<0.000000e+00> : vector<8xf32>
    %33 = vector.multi_reduction <add>, %32, %cst_21 [1] : vector<8x8xf32> to vector<8xf32>
    %34 = vector.shape_cast %33 : vector<8xf32> to vector<8x1xf32>
    %35 = tpu.reciprocal %34 {approx = true} : vector<8x1xf32> -> vector<8x1xf32>
    %36 = arith.truncf %32 : vector<8x8xf32> to vector<8x8xbf16>
    %cst_22 = arith.constant dense<0.000000e+00> : vector<8x8xf32>
    %37 = tpu.matmul %36, %26, %cst_22 {dimension_numbers = #tpu.dot_dimension_numbers<[1], [0], [0], [1], [0, 0, 1, 1], [], []>} : vector<8x8xbf16>, vector<8x8xbf16>, vector<8x8xf32> -> vector<8x8xf32>
    %38 = vector.broadcast %35 : vector<8x1xf32> to vector<8x8xf32>
    %39 = arith.mulf %37, %38 : vector<8x8xf32>
    %c0_23 = arith.constant 0 : index
    %c0_24 = arith.constant 0 : index
    %40 = vector.load %arg15[%c0_23, %c0_24] : memref<8x32xf32, #tpu.memory_space<vmem>>, vector<8x8xf32>
    tpu.vector_store %arg15[%c0_23, %c0_24], %39 {strides = array<i32>} : memref<8x32xf32, #tpu.memory_space<vmem>>, vector<8x8xf32>,
    %41 = vector.extract_strided_slice %10 {offsets = [0, 8], sizes = [8, 8], strides = [1, 1]} : vector<8x32xf32> to vector<8x8xf32>
    %42 = arith.truncf %41 : vector<8x8xf32> to vector<8x8xbf16>
    %43 = vector.extract_strided_slice %15 {offsets = [0, 8], sizes = [8, 8], strides = [1, 1]} : vector<8x32xf32> to vector<8x8xf32>
    %44 = arith.truncf %43 : vector<8x8xf32> to vector<8x8xbf16>
    %45 = vector.extract_strided_slice %20 {offsets = [0, 8], sizes = [8, 8], strides = [1, 1]} : vector<8x32xf32> to vector<8x8xf32>
    %46 = arith.truncf %45 : vector<8x8xf32> to vector<8x8xbf16>
    %cst_25 = arith.constant dense<0.000000e+00> : vector<8x8xf32>
    %47 = tpu.matmul %42, %44, %cst_25 {dimension_numbers = #tpu.dot_dimension_numbers<[1], [1], [0], [0], [0, 0, 1, 0], [], []>} : vector<8x8xbf16>, vector<8x8xbf16>, vector<8x8xf32> -> vector<8x8xf32>
    %cst_26 = arith.constant dense<0xFF800000> : vector<8xf32>
    %48 = vector.multi_reduction <maximumf>, %47, %cst_26 [1] : vector<8x8xf32> to vector<8xf32>
    %49 = vector.shape_cast %48 : vector<8xf32> to vector<8x1xf32>
    %50 = vector.broadcast %49 : vector<8x1xf32> to vector<8x8xf32>
    %51 = arith.subf %47, %50 : vector<8x8xf32>
    %52 = math.exp %51 : vector<8x8xf32>
    %cst_27 = arith.constant dense<0.000000e+00> : vector<8xf32>
    %53 = vector.multi_reduction <add>, %52, %cst_27 [1] : vector<8x8xf32> to vector<8xf32>
    %54 = vector.shape_cast %53 : vector<8xf32> to vector<8x1xf32>
    %55 = tpu.reciprocal %54 {approx = true} : vector<8x1xf32> -> vector<8x1xf32>
    %56 = arith.truncf %52 : vector<8x8xf32> to vector<8x8xbf16>
    %cst_28 = arith.constant dense<0.000000e+00> : vector<8x8xf32>
    %57 = tpu.matmul %56, %46, %cst_28 {dimension_numbers = #tpu.dot_dimension_numbers<[1], [0], [0], [1], [0, 0, 1, 1], [], []>} : vector<8x8xbf16>, vector<8x8xbf16>, vector<8x8xf32> -> vector<8x8xf32>
    %58 = vector.broadcast %55 : vector<8x1xf32> to vector<8x8xf32>
    %59 = arith.mulf %57, %58 : vector<8x8xf32>
    %c0_29 = arith.constant 0 : index
    %c8 = arith.constant 8 : index
    %60 = vector.load %arg15[%c0_29, %c8] : memref<8x32xf32, #tpu.memory_space<vmem>>, vector<8x8xf32>
    tpu.vector_store %arg15[%c0_29, %c8], %59 {strides = array<i32>} : memref<8x32xf32, #tpu.memory_space<vmem>>, vector<8x8xf32>,
    %61 = vector.extract_strided_slice %10 {offsets = [0, 16], sizes = [8, 8], strides = [1, 1]} : vector<8x32xf32> to vector<8x8xf32>
    %62 = arith.truncf %61 : vector<8x8xf32> to vector<8x8xbf16>
    %63 = vector.extract_strided_slice %15 {offsets = [0, 16], sizes = [8, 8], strides = [1, 1]} : vector<8x32xf32> to vector<8x8xf32>
    %64 = arith.truncf %63 : vector<8x8xf32> to vector<8x8xbf16>
    %65 = vector.extract_strided_slice %20 {offsets = [0, 16], sizes = [8, 8], strides = [1, 1]} : vector<8x32xf32> to vector<8x8xf32>
    %66 = arith.truncf %65 : vector<8x8xf32> to vector<8x8xbf16>
    %cst_30 = arith.constant dense<0.000000e+00> : vector<8x8xf32>
    %67 = tpu.matmul %62, %64, %cst_30 {dimension_numbers = #tpu.dot_dimension_numbers<[1], [1], [0], [0], [0, 0, 1, 0], [], []>} : vector<8x8xbf16>, vector<8x8xbf16>, vector<8x8xf32> -> vector<8x8xf32>
    %cst_31 = arith.constant dense<0xFF800000> : vector<8xf32>
    %68 = vector.multi_reduction <maximumf>, %67, %cst_31 [1] : vector<8x8xf32> to vector<8xf32>
    %69 = vector.shape_cast %68 : vector<8xf32> to vector<8x1xf32>
    %70 = vector.broadcast %69 : vector<8x1xf32> to vector<8x8xf32>
    %71 = arith.subf %67, %70 : vector<8x8xf32>
    %72 = math.exp %71 : vector<8x8xf32>
    %cst_32 = arith.constant dense<0.000000e+00> : vector<8xf32>
    %73 = vector.multi_reduction <add>, %72, %cst_32 [1] : vector<8x8xf32> to vector<8xf32>
    %74 = vector.shape_cast %73 : vector<8xf32> to vector<8x1xf32>
    %75 = tpu.reciprocal %74 {approx = true} : vector<8x1xf32> -> vector<8x1xf32>
    %76 = arith.truncf %72 : vector<8x8xf32> to vector<8x8xbf16>
    %cst_33 = arith.constant dense<0.000000e+00> : vector<8x8xf32>
    %77 = tpu.matmul %76, %66, %cst_33 {dimension_numbers = #tpu.dot_dimension_numbers<[1], [0], [0], [1], [0, 0, 1, 1], [], []>} : vector<8x8xbf16>, vector<8x8xbf16>, vector<8x8xf32> -> vector<8x8xf32>
    %78 = vector.broadcast %75 : vector<8x1xf32> to vector<8x8xf32>
    %79 = arith.mulf %77, %78 : vector<8x8xf32>
    %c0_34 = arith.constant 0 : index
    %c16 = arith.constant 16 : index
    %80 = vector.load %arg15[%c0_34, %c16] : memref<8x32xf32, #tpu.memory_space<vmem>>, vector<8x8xf32>
    tpu.vector_store %arg15[%c0_34, %c16], %79 {strides = array<i32>} : memref<8x32xf32, #tpu.memory_space<vmem>>, vector<8x8xf32>,
    %81 = vector.extract_strided_slice %10 {offsets = [0, 24], sizes = [8, 8], strides = [1, 1]} : vector<8x32xf32> to vector<8x8xf32>
    %82 = arith.truncf %81 : vector<8x8xf32> to vector<8x8xbf16>
    %83 = vector.extract_strided_slice %15 {offsets = [0, 24], sizes = [8, 8], strides = [1, 1]} : vector<8x32xf32> to vector<8x8xf32>
    %84 = arith.truncf %83 : vector<8x8xf32> to vector<8x8xbf16>
    %85 = vector.extract_strided_slice %20 {offsets = [0, 24], sizes = [8, 8], strides = [1, 1]} : vector<8x32xf32> to vector<8x8xf32>
    %86 = arith.truncf %85 : vector<8x8xf32> to vector<8x8xbf16>
    %cst_35 = arith.constant dense<0.000000e+00> : vector<8x8xf32>
    %87 = tpu.matmul %82, %84, %cst_35 {dimension_numbers = #tpu.dot_dimension_numbers<[1], [1], [0], [0], [0, 0, 1, 0], [], []>} : vector<8x8xbf16>, vector<8x8xbf16>, vector<8x8xf32> -> vector<8x8xf32>
    %cst_36 = arith.constant dense<0xFF800000> : vector<8xf32>
    %88 = vector.multi_reduction <maximumf>, %87, %cst_36 [1] : vector<8x8xf32> to vector<8xf32>
    %89 = vector.shape_cast %88 : vector<8xf32> to vector<8x1xf32>
    %90 = vector.broadcast %89 : vector<8x1xf32> to vector<8x8xf32>
    %91 = arith.subf %87, %90 : vector<8x8xf32>
    %92 = math.exp %91 : vector<8x8xf32>
    %cst_37 = arith.constant dense<0.000000e+00> : vector<8xf32>
    %93 = vector.multi_reduction <add>, %92, %cst_37 [1] : vector<8x8xf32> to vector<8xf32>
    %94 = vector.shape_cast %93 : vector<8xf32> to vector<8x1xf32>
    %95 = tpu.reciprocal %94 {approx = true} : vector<8x1xf32> -> vector<8x1xf32>
    %96 = arith.truncf %92 : vector<8x8xf32> to vector<8x8xbf16>
    %cst_38 = arith.constant dense<0.000000e+00> : vector<8x8xf32>
    %97 = tpu.matmul %96, %86, %cst_38 {dimension_numbers = #tpu.dot_dimension_numbers<[1], [0], [0], [1], [0, 0, 1, 1], [], []>} : vector<8x8xbf16>, vector<8x8xbf16>, vector<8x8xf32> -> vector<8x8xf32>
    %98 = vector.broadcast %95 : vector<8x1xf32> to vector<8x8xf32>
    %99 = arith.mulf %97, %98 : vector<8x8xf32>
    %c0_39 = arith.constant 0 : index
    %c24 = arith.constant 24 : index
    %100 = vector.load %arg15[%c0_39, %c24] : memref<8x32xf32, #tpu.memory_space<vmem>>, vector<8x8xf32>
    tpu.vector_store %arg15[%c0_39, %c24], %99 {strides = array<i32>} : memref<8x32xf32, #tpu.memory_space<vmem>>, vector<8x8xf32>,
    %c0_40 = arith.constant 0 : index
    %c0_41 = arith.constant 0 : index
    %101 = vector.load %arg11[%c0_40, %c0_41] : memref<1x32xf32, #tpu.memory_space<vmem>>, vector<1x32xf32>
    %102 = vector.broadcast %101 : vector<1x32xf32> to vector<8x32xf32>
    %103 = arith.addf %1, %102 : vector<8x32xf32>
    %c0_42 = arith.constant 0 : index
    %c0_43 = arith.constant 0 : index
    %104 = vector.load %arg15[%c0_42, %c0_43] : memref<8x32xf32, #tpu.memory_space<vmem>>, vector<8x32xf32>
    %105 = arith.truncf %104 : vector<8x32xf32> to vector<8x32xbf16>
    %c0_44 = arith.constant 0 : index
    %c0_45 = arith.constant 0 : index
    %106 = vector.load %arg10[%c0_44, %c0_45] : memref<32x32xbf16, #tpu.memory_space<vmem>>, vector<32x32xbf16>
    %cst_46 = arith.constant dense<0.000000e+00> : vector<8x32xf32>
    %107 = tpu.matmul %105, %106, %cst_46 {dimension_numbers = #tpu.dot_dimension_numbers<[1], [0], [0], [1], [0, 0, 1, 1], [], []>} : vector<8x32xbf16>, vector<32x32xbf16>, vector<8x32xf32> -> vector<8x32xf32>
    %108 = arith.addf %103, %107 : vector<8x32xf32>
    %cst_47 = arith.constant dense<0.000000e+00> : vector<8xf32>
    %109 = vector.multi_reduction <add>, %108, %cst_47 [1] : vector<8x32xf32> to vector<8xf32>
    %110 = vector.shape_cast %109 : vector<8xf32> to vector<8x1xf32>
    %cst_48 = arith.constant 3.200000e+01 : f32
    %111 = vector.broadcast %cst_48 : f32 to vector<8x1xf32>
    %112 = arith.divf %110, %111 : vector<8x1xf32>
    %113 = vector.broadcast %112 : vector<8x1xf32> to vector<8x32xf32>
    %114 = arith.subf %108, %113 : vector<8x32xf32>
    %115 = arith.mulf %114, %114 : vector<8x32xf32>
    %cst_49 = arith.constant dense<0.000000e+00> : vector<8xf32>
    %116 = vector.multi_reduction <add>, %115, %cst_49 [1] : vector<8x32xf32> to vector<8xf32>
    %117 = vector.shape_cast %116 : vector<8xf32> to vector<8x1xf32>
    %cst_50 = arith.constant 3.200000e+01 : f32
    %118 = vector.broadcast %cst_50 : f32 to vector<8x1xf32>
    %119 = arith.divf %117, %118 : vector<8x1xf32>
    %120 = vector.broadcast %112 : vector<8x1xf32> to vector<8x32xf32>
    %121 = arith.subf %108, %120 : vector<8x32xf32>
    %cst_51 = arith.constant 9.99999974E-6 : f32
    %122 = vector.broadcast %cst_51 : f32 to vector<8x1xf32>
    %123 = arith.addf %119, %122 : vector<8x1xf32>
    %124 = math.rsqrt %123 : vector<8x1xf32>
    %125 = vector.broadcast %124 : vector<8x1xf32> to vector<8x32xf32>
    %126 = arith.mulf %121, %125 : vector<8x32xf32>
    %c0_52 = arith.constant 0 : index
    %c0_53 = arith.constant 0 : index
    %127 = vector.load %arg12[%c0_52, %c0_53] : memref<1x32xf32, #tpu.memory_space<vmem>>, vector<1x32xf32>
    %128 = vector.broadcast %127 : vector<1x32xf32> to vector<8x32xf32>
    %129 = arith.mulf %126, %128 : vector<8x32xf32>
    %c0_54 = arith.constant 0 : index
    %c0_55 = arith.constant 0 : index
    %130 = vector.load %arg13[%c0_54, %c0_55] : memref<1x32xf32, #tpu.memory_space<vmem>>, vector<1x32xf32>
    %131 = vector.broadcast %130 : vector<1x32xf32> to vector<8x32xf32>
    %132 = arith.addf %129, %131 : vector<8x32xf32>
    %c0_56 = arith.constant 0 : index
    %c0_57 = arith.constant 0 : index
    %c0_58 = arith.constant 0 : index
    %133 = vector.load %arg14[%c0_56, %c0_57, %c0_58] : memref<1x8x32xf32, #tpu.memory_space<vmem>>, vector<1x8x32xf32>
    %134 = vector.shape_cast %133 : vector<1x8x32xf32> to vector<8x32xf32>
    %135 = vector.shape_cast %132 : vector<8x32xf32> to vector<1x8x32xf32>
    tpu.vector_store %arg14[%c0_56, %c0_57, %c0_58], %135 {strides = array<i32>} : memref<1x8x32xf32, #tpu.memory_space<vmem>>, vector<1x8x32xf32>,
    return
  }
  func.func @transform_0(%arg0: i32, %arg1: i32) -> (i32, i32, i32) {
    %c0_i32 = arith.constant 0 : i32
    %c0_i32_0 = arith.constant 0 : i32
    return %arg0, %arg1, %c0_i32 : i32, i32, i32
  }
  func.func @transform_1(%arg0: i32, %arg1: i32) -> (i32, i32, i32) {
    %c0_i32 = arith.constant 0 : i32
    %c0_i32_0 = arith.constant 0 : i32
    %c0_i32_1 = arith.constant 0 : i32
    return %arg0, %c0_i32, %c0_i32_0 : i32, i32, i32
  }
  func.func @transform_2(%arg0: i32, %arg1: i32) -> (i32, i32) {
    %c0_i32 = arith.constant 0 : i32
    %c0_i32_0 = arith.constant 0 : i32
    %c0_i32_1 = arith.constant 0 : i32
    return %c0_i32, %c0_i32_0 : i32, i32
  }
  func.func @transform_3(%arg0: i32, %arg1: i32) -> (i32, i32) {
    %c0_i32 = arith.constant 0 : i32
    %c0_i32_0 = arith.constant 0 : i32
    %c0_i32_1 = arith.constant 0 : i32
    return %c0_i32, %c0_i32_0 : i32, i32
  }
  func.func @transform_4(%arg0: i32, %arg1: i32) -> (i32, i32) {
    %c0_i32 = arith.constant 0 : i32
    %c0_i32_0 = arith.constant 0 : i32
    %c0_i32_1 = arith.constant 0 : i32
    return %c0_i32, %c0_i32_0 : i32, i32
  }
  func.func @transform_5(%arg0: i32, %arg1: i32) -> (i32, i32) {
    %c0_i32 = arith.constant 0 : i32
    %c0_i32_0 = arith.constant 0 : i32
    %c0_i32_1 = arith.constant 0 : i32
    return %c0_i32, %c0_i32_0 : i32, i32
  }
  func.func @transform_6(%arg0: i32, %arg1: i32) -> (i32, i32) {
    %c0_i32 = arith.constant 0 : i32
    %c0_i32_0 = arith.constant 0 : i32
    %c0_i32_1 = arith.constant 0 : i32
    return %c0_i32, %c0_i32_0 : i32, i32
  }
  func.func @transform_7(%arg0: i32, %arg1: i32) -> (i32, i32) {
    %c0_i32 = arith.constant 0 : i32
    %c0_i32_0 = arith.constant 0 : i32
    %c0_i32_1 = arith.constant 0 : i32
    return %c0_i32, %c0_i32_0 : i32, i32
  }
  func.func @transform_8(%arg0: i32, %arg1: i32) -> (i32, i32) {
    %c0_i32 = arith.constant 0 : i32
    %c0_i32_0 = arith.constant 0 : i32
    %c0_i32_1 = arith.constant 0 : i32
    return %c0_i32, %c0_i32_0 : i32, i32
  }
  func.func @transform_9(%arg0: i32, %arg1: i32) -> (i32, i32) {
    %c0_i32 = arith.constant 0 : i32
    %c0_i32_0 = arith.constant 0 : i32
    %c0_i32_1 = arith.constant 0 : i32
    return %c0_i32, %c0_i32_0 : i32, i32
  }
  func.func @transform_10(%arg0: i32, %arg1: i32) -> (i32, i32) {
    %c0_i32 = arith.constant 0 : i32
    %c0_i32_0 = arith.constant 0 : i32
    %c0_i32_1 = arith.constant 0 : i32
    return %c0_i32, %c0_i32_0 : i32, i32
  }
  func.func @transform_11(%arg0: i32, %arg1: i32) -> (i32, i32) {
    %c0_i32 = arith.constant 0 : i32
    %c0_i32_0 = arith.constant 0 : i32
    %c0_i32_1 = arith.constant 0 : i32
    return %c0_i32, %c0_i32_0 : i32, i32
  }
  func.func @transform_12(%arg0: i32, %arg1: i32) -> (i32, i32, i32) {
    %c0_i32 = arith.constant 0 : i32
    %c0_i32_0 = arith.constant 0 : i32
    return %arg0, %arg1, %c0_i32 : i32, i32, i32
  }
}

module attributes {stable_mosaic.version = 11 : i64} {
  func.func @ffn_block_kernel(%arg0: i32, %arg1: i32, %arg2: memref<16x32xf32, #tpu.memory_space<vmem>>, %arg3: memref<32x64xbf16, #tpu.memory_space<vmem>>, %arg4: memref<1x64xf32, #tpu.memory_space<vmem>>, %arg5: memref<64x32xbf16, #tpu.memory_space<vmem>>, %arg6: memref<1x32xf32, #tpu.memory_space<vmem>>, %arg7: memref<1x32xf32, #tpu.memory_space<vmem>>, %arg8: memref<1x32xf32, #tpu.memory_space<vmem>>, %arg9: memref<1x32xf32, #tpu.memory_space<vmem>>, %arg10: memref<1x32xf32, #tpu.memory_space<vmem>>, %arg11: memref<16x32xf32, #tpu.memory_space<vmem>>, %arg12: memref<16x32xf32, #tpu.memory_space<vmem>>) attributes {dimension_semantics = [#tpu.dimension_semantics<parallel>, #tpu.dimension_semantics<arbitrary>], iteration_bounds = array<i64: 1, 1>, scalar_prefetch = 0 : i64, scratch_operands = 1 : i64, tpu.core_type = #tpu.core_type<tc>, window_params = [{transform_indices = @transform_0, window_bounds = array<i64: 16, 32>}, {transform_indices = @transform_1, window_bounds = array<i64: 32, 64>}, {transform_indices = @transform_2, window_bounds = array<i64: 1, 64>}, {transform_indices = @transform_3, window_bounds = array<i64: 64, 32>}, {pipeline_mode = #tpu.pipeline_mode<synchronous>, transform_indices = @transform_4, window_bounds = array<i64: 1, 32>}, {pipeline_mode = #tpu.pipeline_mode<synchronous>, transform_indices = @transform_5, window_bounds = array<i64: 1, 32>}, {pipeline_mode = #tpu.pipeline_mode<synchronous>, transform_indices = @transform_6, window_bounds = array<i64: 1, 32>}, {pipeline_mode = #tpu.pipeline_mode<synchronous>, transform_indices = @transform_7, window_bounds = array<i64: 1, 32>}, {pipeline_mode = #tpu.pipeline_mode<synchronous>, transform_indices = @transform_8, window_bounds = array<i64: 1, 32>}, {transform_indices = @transform_9, window_bounds = array<i64: 16, 32>}]} {
    %c0_i32 = arith.constant 0 : i32
    %0 = arith.cmpi eq, %arg1, %c0_i32 : i32
    %1 = arith.extui %0 : i1 to i32
    %c0_i32_0 = arith.constant 0 : i32
    %2 = arith.cmpi ne, %1, %c0_i32_0 : i32
    scf.if %2 {
      %cst_16 = arith.constant 0.000000e+00 : f32
      %21 = vector.broadcast %cst_16 : f32 to vector<16x32xf32>
      %c0_17 = arith.constant 0 : index
      %c0_18 = arith.constant 0 : index
      %22 = vector.load %arg12[%c0_17, %c0_18] : memref<16x32xf32, #tpu.memory_space<vmem>>, vector<16x32xf32>
      tpu.vector_store %arg12[%c0_17, %c0_18], %21 {strides = array<i32>} : memref<16x32xf32, #tpu.memory_space<vmem>>, vector<16x32xf32>,
    } else {
    }
    %c0 = arith.constant 0 : index
    %c0_1 = arith.constant 0 : index
    %3 = vector.load %arg2[%c0, %c0_1] : memref<16x32xf32, #tpu.memory_space<vmem>>, vector<16x32xf32>
    %4 = arith.truncf %3 : vector<16x32xf32> to vector<16x32xbf16>
    %c0_2 = arith.constant 0 : index
    %c0_3 = arith.constant 0 : index
    %5 = vector.load %arg3[%c0_2, %c0_3] : memref<32x64xbf16, #tpu.memory_space<vmem>>, vector<32x64xbf16>
    %cst = arith.constant dense<0.000000e+00> : vector<16x64xf32>
    %6 = tpu.matmul %4, %5, %cst {dimension_numbers = #tpu.dot_dimension_numbers<[1], [0], [0], [1], [0, 0, 1, 1], [], []>} : vector<16x32xbf16>, vector<32x64xbf16>, vector<16x64xf32> -> vector<16x64xf32>
    %c0_4 = arith.constant 0 : index
    %c0_5 = arith.constant 0 : index
    %7 = vector.load %arg4[%c0_4, %c0_5] : memref<1x64xf32, #tpu.memory_space<vmem>>, vector<1x64xf32>
    %8 = vector.broadcast %7 : vector<1x64xf32> to vector<16x64xf32>
    %9 = arith.addf %6, %8 : vector<16x64xf32>
    %cst_6 = arith.constant 0.000000e+00 : f32
    %10 = vector.broadcast %cst_6 : f32 to vector<16x64xf32>
    %11 = arith.maximumf %9, %10 : vector<16x64xf32>
    %c0_7 = arith.constant 0 : index
    %c0_8 = arith.constant 0 : index
    %12 = vector.load %arg12[%c0_7, %c0_8] : memref<16x32xf32, #tpu.memory_space<vmem>>, vector<16x32xf32>
    %13 = arith.truncf %11 : vector<16x64xf32> to vector<16x64xbf16>
    %c0_9 = arith.constant 0 : index
    %c0_10 = arith.constant 0 : index
    %14 = vector.load %arg5[%c0_9, %c0_10] : memref<64x32xbf16, #tpu.memory_space<vmem>>, vector<64x32xbf16>
    %cst_11 = arith.constant dense<0.000000e+00> : vector<16x32xf32>
    %15 = tpu.matmul %13, %14, %cst_11 {dimension_numbers = #tpu.dot_dimension_numbers<[1], [0], [0], [1], [0, 0, 1, 1], [], []>} : vector<16x64xbf16>, vector<64x32xbf16>, vector<16x32xf32> -> vector<16x32xf32>
    %16 = arith.addf %12, %15 : vector<16x32xf32>
    %c0_12 = arith.constant 0 : index
    %c0_13 = arith.constant 0 : index
    %17 = vector.load %arg12[%c0_12, %c0_13] : memref<16x32xf32, #tpu.memory_space<vmem>>, vector<16x32xf32>
    tpu.vector_store %arg12[%c0_12, %c0_13], %16 {strides = array<i32>} : memref<16x32xf32, #tpu.memory_space<vmem>>, vector<16x32xf32>,
    %c0_i32_14 = arith.constant 0 : i32
    %18 = arith.cmpi eq, %arg1, %c0_i32_14 : i32
    %19 = arith.extui %18 : i1 to i32
    %c0_i32_15 = arith.constant 0 : i32
    %20 = arith.cmpi ne, %19, %c0_i32_15 : i32
    scf.if %20 {
      %c0_16 = arith.constant 0 : index
      %c0_17 = arith.constant 0 : index
      %21 = vector.load %arg12[%c0_16, %c0_17] : memref<16x32xf32, #tpu.memory_space<vmem>>, vector<16x32xf32>
      %c0_18 = arith.constant 0 : index
      %c0_19 = arith.constant 0 : index
      %22 = vector.load %arg6[%c0_18, %c0_19] : memref<1x32xf32, #tpu.memory_space<vmem>>, vector<1x32xf32>
      %23 = vector.broadcast %22 : vector<1x32xf32> to vector<16x32xf32>
      %24 = arith.addf %21, %23 : vector<16x32xf32>
      %25 = arith.addf %24, %3 : vector<16x32xf32>
      %cst_20 = arith.constant dense<0.000000e+00> : vector<16xf32>
      %26 = vector.multi_reduction <add>, %25, %cst_20 [1] : vector<16x32xf32> to vector<16xf32>
      %27 = vector.shape_cast %26 : vector<16xf32> to vector<16x1xf32>
      %cst_21 = arith.constant 3.200000e+01 : f32
      %28 = vector.broadcast %cst_21 : f32 to vector<16x1xf32>
      %29 = arith.divf %27, %28 : vector<16x1xf32>
      %30 = vector.broadcast %29 : vector<16x1xf32> to vector<16x32xf32>
      %31 = arith.subf %25, %30 : vector<16x32xf32>
      %32 = arith.mulf %31, %31 : vector<16x32xf32>
      %cst_22 = arith.constant dense<0.000000e+00> : vector<16xf32>
      %33 = vector.multi_reduction <add>, %32, %cst_22 [1] : vector<16x32xf32> to vector<16xf32>
      %34 = vector.shape_cast %33 : vector<16xf32> to vector<16x1xf32>
      %cst_23 = arith.constant 3.200000e+01 : f32
      %35 = vector.broadcast %cst_23 : f32 to vector<16x1xf32>
      %36 = arith.divf %34, %35 : vector<16x1xf32>
      %37 = vector.broadcast %29 : vector<16x1xf32> to vector<16x32xf32>
      %38 = arith.subf %25, %37 : vector<16x32xf32>
      %cst_24 = arith.constant 9.99999974E-6 : f32
      %39 = vector.broadcast %cst_24 : f32 to vector<16x1xf32>
      %40 = arith.addf %36, %39 : vector<16x1xf32>
      %41 = math.rsqrt %40 : vector<16x1xf32>
      %42 = vector.broadcast %41 : vector<16x1xf32> to vector<16x32xf32>
      %43 = arith.mulf %38, %42 : vector<16x32xf32>
      %c0_25 = arith.constant 0 : index
      %c0_26 = arith.constant 0 : index
      %44 = vector.load %arg7[%c0_25, %c0_26] : memref<1x32xf32, #tpu.memory_space<vmem>>, vector<1x32xf32>
      %45 = vector.broadcast %44 : vector<1x32xf32> to vector<16x32xf32>
      %46 = arith.mulf %43, %45 : vector<16x32xf32>
      %c0_27 = arith.constant 0 : index
      %c0_28 = arith.constant 0 : index
      %47 = vector.load %arg8[%c0_27, %c0_28] : memref<1x32xf32, #tpu.memory_space<vmem>>, vector<1x32xf32>
      %48 = vector.broadcast %47 : vector<1x32xf32> to vector<16x32xf32>
      %49 = arith.addf %46, %48 : vector<16x32xf32>
      %cst_29 = arith.constant dense<0.000000e+00> : vector<16xf32>
      %50 = vector.multi_reduction <add>, %49, %cst_29 [1] : vector<16x32xf32> to vector<16xf32>
      %51 = vector.shape_cast %50 : vector<16xf32> to vector<16x1xf32>
      %cst_30 = arith.constant 3.200000e+01 : f32
      %52 = vector.broadcast %cst_30 : f32 to vector<16x1xf32>
      %53 = arith.divf %51, %52 : vector<16x1xf32>
      %54 = vector.broadcast %53 : vector<16x1xf32> to vector<16x32xf32>
      %55 = arith.subf %49, %54 : vector<16x32xf32>
      %56 = arith.mulf %55, %55 : vector<16x32xf32>
      %cst_31 = arith.constant dense<0.000000e+00> : vector<16xf32>
      %57 = vector.multi_reduction <add>, %56, %cst_31 [1] : vector<16x32xf32> to vector<16xf32>
      %58 = vector.shape_cast %57 : vector<16xf32> to vector<16x1xf32>
      %cst_32 = arith.constant 3.200000e+01 : f32
      %59 = vector.broadcast %cst_32 : f32 to vector<16x1xf32>
      %60 = arith.divf %58, %59 : vector<16x1xf32>
      %61 = vector.broadcast %53 : vector<16x1xf32> to vector<16x32xf32>
      %62 = arith.subf %49, %61 : vector<16x32xf32>
      %cst_33 = arith.constant 9.99999974E-6 : f32
      %63 = vector.broadcast %cst_33 : f32 to vector<16x1xf32>
      %64 = arith.addf %60, %63 : vector<16x1xf32>
      %65 = math.rsqrt %64 : vector<16x1xf32>
      %66 = vector.broadcast %65 : vector<16x1xf32> to vector<16x32xf32>
      %67 = arith.mulf %62, %66 : vector<16x32xf32>
      %c0_34 = arith.constant 0 : index
      %c0_35 = arith.constant 0 : index
      %68 = vector.load %arg9[%c0_34, %c0_35] : memref<1x32xf32, #tpu.memory_space<vmem>>, vector<1x32xf32>
      %69 = vector.broadcast %68 : vector<1x32xf32> to vector<16x32xf32>
      %70 = arith.mulf %67, %69 : vector<16x32xf32>
      %c0_36 = arith.constant 0 : index
      %c0_37 = arith.constant 0 : index
      %71 = vector.load %arg10[%c0_36, %c0_37] : memref<1x32xf32, #tpu.memory_space<vmem>>, vector<1x32xf32>
      %72 = vector.broadcast %71 : vector<1x32xf32> to vector<16x32xf32>
      %73 = arith.addf %70, %72 : vector<16x32xf32>
      %c0_38 = arith.constant 0 : index
      %c0_39 = arith.constant 0 : index
      %74 = vector.load %arg11[%c0_38, %c0_39] : memref<16x32xf32, #tpu.memory_space<vmem>>, vector<16x32xf32>
      tpu.vector_store %arg11[%c0_38, %c0_39], %73 {strides = array<i32>} : memref<16x32xf32, #tpu.memory_space<vmem>>, vector<16x32xf32>,
    } else {
    }
    return
  }
  func.func @transform_0(%arg0: i32, %arg1: i32) -> (i32, i32) {
    %c0_i32 = arith.constant 0 : i32
    %c0_i32_0 = arith.constant 0 : i32
    return %arg0, %c0_i32 : i32, i32
  }
  func.func @transform_1(%arg0: i32, %arg1: i32) -> (i32, i32) {
    %c0_i32 = arith.constant 0 : i32
    %c0_i32_0 = arith.constant 0 : i32
    return %c0_i32, %arg1 : i32, i32
  }
  func.func @transform_2(%arg0: i32, %arg1: i32) -> (i32, i32) {
    %c0_i32 = arith.constant 0 : i32
    %c0_i32_0 = arith.constant 0 : i32
    return %c0_i32, %arg1 : i32, i32
  }
  func.func @transform_3(%arg0: i32, %arg1: i32) -> (i32, i32) {
    %c0_i32 = arith.constant 0 : i32
    %c0_i32_0 = arith.constant 0 : i32
    return %arg1, %c0_i32 : i32, i32
  }
  func.func @transform_4(%arg0: i32, %arg1: i32) -> (i32, i32) {
    %c0_i32 = arith.constant 0 : i32
    %c0_i32_0 = arith.constant 0 : i32
    %c0_i32_1 = arith.constant 0 : i32
    return %c0_i32, %c0_i32_0 : i32, i32
  }
  func.func @transform_5(%arg0: i32, %arg1: i32) -> (i32, i32) {
    %c0_i32 = arith.constant 0 : i32
    %c0_i32_0 = arith.constant 0 : i32
    %c0_i32_1 = arith.constant 0 : i32
    return %c0_i32, %c0_i32_0 : i32, i32
  }
  func.func @transform_6(%arg0: i32, %arg1: i32) -> (i32, i32) {
    %c0_i32 = arith.constant 0 : i32
    %c0_i32_0 = arith.constant 0 : i32
    %c0_i32_1 = arith.constant 0 : i32
    return %c0_i32, %c0_i32_0 : i32, i32
  }
  func.func @transform_7(%arg0: i32, %arg1: i32) -> (i32, i32) {
    %c0_i32 = arith.constant 0 : i32
    %c0_i32_0 = arith.constant 0 : i32
    %c0_i32_1 = arith.constant 0 : i32
    return %c0_i32, %c0_i32_0 : i32, i32
  }
  func.func @transform_8(%arg0: i32, %arg1: i32) -> (i32, i32) {
    %c0_i32 = arith.constant 0 : i32
    %c0_i32_0 = arith.constant 0 : i32
    %c0_i32_1 = arith.constant 0 : i32
    return %c0_i32, %c0_i32_0 : i32, i32
  }
  func.func @transform_9(%arg0: i32, %arg1: i32) -> (i32, i32) {
    %c0_i32 = arith.constant 0 : i32
    %c0_i32_0 = arith.constant 0 : i32
    return %arg0, %c0_i32 : i32, i32
  }
}

</mosaic_0001>

<llo_original>
// kernel: transformer_decoder.7
$region0: #{transformer_decoder.7}
  #allocation0 [shape = 'u32[]', space=smem, size = 0x4, offset = 0x4, fixed_abs, tag = 'smem constant byte address 0x4 - core index']
  #allocation1 [shape = 'u32[144,128]{1,0:T(1,128)}', space=vmem, size = 0x12000, scoped, tag = 'internal scratch']
  #allocation2 [shape = 'f32[8,32]{1,0:T(8,128)}', space=vmem, size = 0x1000, scoped, tag = 'scratch operand']
  %s0 = inlined_call_operand.vmem [shape: f32[2,8,32], index: 0, kind: input, shape index: {}]
  %s1 = inlined_call_operand.vmem [shape: f32[2,8,32], index: 1, kind: input, shape index: {}]
  %s2 = inlined_call_operand.vmem [shape: f32[2,1,8], index: 2, kind: input, shape index: {}]
  %s3 = inlined_call_operand.vmem [shape: bf16[32,32], index: 3, kind: input, shape index: {}]
  %s4 = inlined_call_operand.vmem [shape: f32[1,32], index: 4, kind: input, shape index: {}]
  %s5 = inlined_call_operand.vmem [shape: bf16[32,32], index: 5, kind: input, shape index: {}]
  %s6 = inlined_call_operand.vmem [shape: f32[1,32], index: 6, kind: input, shape index: {}]
  %s7 = inlined_call_operand.vmem [shape: bf16[32,32], index: 7, kind: input, shape index: {}]
  %s8 = inlined_call_operand.vmem [shape: f32[1,32], index: 8, kind: input, shape index: {}]
  %s9 = inlined_call_operand.vmem [shape: bf16[32,32], index: 9, kind: input, shape index: {}]
  %s10 = inlined_call_operand.vmem [shape: f32[1,32], index: 10, kind: input, shape index: {}]
  %s11 = inlined_call_operand.vmem [shape: f32[1,32], index: 11, kind: input, shape index: {}]
  %s12 = inlined_call_operand.vmem [shape: f32[1,32], index: 12, kind: input, shape index: {}]
  %s13 = inlined_call_operand.vmem [shape: f32[2,8,32], index: 13, kind: output, shape index: {}]
  %s14 = sld [smem:[#allocation0]]
  $region85: #{transformer_decoder.7} parent=0
    _
  %s16 = ssub.s32 1, %s14
  %s17 = scalar_select 0, %s16, %s14
  loop: start=0, step=1, limit=4
  $region2: #{transformer_decoder.7} parent=0 // loop_pre_header
    _
  $region3: #{transformer_decoder.7} parent=0 // loop_header
    %s19 = sphi 0, %s23
    %p20 = scmp.ge.s32.totalorder %s19, 4
    %s26 = sphi 0, %s38
    %s27 = sphi 0, %s34
    %s28 = sphi 0, %s26
    %s29 = sphi 0, %s27
    %s30 = sphi 0, %s28
    %s31 = sphi 0, %s29
    %s43 = sphi 0, %s45
    %s46 = sphi 0, %s43
    %s47 = sphi 0, %s46
    %s63 = sphi 0, %s47
    %s69 = sphi 0, %s71
    %s72 = sphi 0, %s69
    %s73 = sphi 0, %s72
    %s89 = sphi 0, %s73
    %s95 = sphi 0, %s97
    %s98 = sphi 0, %s95
    %s99 = sphi 0, %s98
    %s115 = sphi 0, %s99
    %s119 = sphi 0, %s119
    %s121 = sphi 0, %s119
    %s122 = sphi 0, %s121
    %s136 = sphi 0, %s122
    %s140 = sphi 0, %s140
    %s142 = sphi 0, %s140
    %s143 = sphi 0, %s142
    %s157 = sphi 0, %s143
    %s161 = sphi 0, %s161
    %s163 = sphi 0, %s161
    %s164 = sphi 0, %s163
    %s178 = sphi 0, %s164
    %s182 = sphi 0, %s182
    %s184 = sphi 0, %s182
    %s185 = sphi 0, %s184
    %s199 = sphi 0, %s185
    %s203 = sphi 0, %s203
    %s205 = sphi 0, %s203
    %s206 = sphi 0, %s205
    %s220 = sphi 0, %s206
    %s224 = sphi 0, %s224
    %s226 = sphi 0, %s224
    %s227 = sphi 0, %s226
    %s241 = sphi 0, %s227
    %s245 = sphi 0, %s245
    %s247 = sphi 0, %s245
    %s248 = sphi 0, %s247
    %s262 = sphi 0, %s248
    %s266 = sphi 0, %s266
    %s268 = sphi 0, %s266
    %s269 = sphi 0, %s268
    %s283 = sphi 0, %s269
    %s287 = sphi 0, %s287
    %s289 = sphi 0, %s287
    %s290 = sphi 0, %s289
    %s304 = sphi 0, %s290
    %s308 = sphi 0, %s308
    %s310 = sphi 0, %s308
    %s311 = sphi 0, %s310
    %s325 = sphi 0, %s311
    %s333 = sphi 0, %s335
    %s336 = sphi 0, %s333
    %s337 = sphi 0, %s336
    %s353 = sphi 0, %s337
  $region4: #{transformer_decoder.7} parent=0 // loop_header_branch
    %22 = sbr.rel (%p20) target = $region8
  $region5: #{transformer_decoder.7} parent=0 // loop_body
    %s24 = ssub.s32 %s19, 1
    %s25 = ssub.s32 %s19, 2
    %s32 = sadd.s32 1, %s27
    %p33 = scmp.ge.s32.totalorder %s32, 1
    %s34 = scalar_select %p33, 0, %s32
    %s35 = sadd.s32 1, %s26
    %s36 = scalar_select %p33, %s35, %s26
    %p37 = scmp.ge.s32.totalorder %s36, 2
    %s38 = scalar_select %p37, 0, %s36
    %s39 = ssub.s32 %s26, %s38
    %s40 = ssub.s32 %s27, %s34
    %s41 = sor.u32 %s39, %s40
    %p42 = scmp.eq.s32.totalorder %s41, 0
    %s44 = sadd.s32 %s43, 1
    %s45 = scalar_select %p42, %s43, %s44
    %p48 = pneg %p42
    %p49 = scmp.eq.s32.totalorder %s19, 1
    %p50 = por %p48, %p49
    %p51 = scmp.ne.s32.totalorder %s43, %s46
    %p52 = scmp.eq.s32.totalorder %s19, 0
    %p53 = por %p51, %p52
    %p54 = scmp.ne.s32.totalorder %s43, %s46
    %p55 = scmp.eq.s32.totalorder %s24, 1
    %p56 = por %p54, %p55
    %p57 = scmp.ne.s32.totalorder %s46, %s47
    %p58 = scmp.eq.s32.totalorder %s24, 0
    %p59 = por %p57, %p58
    %p60 = scmp.ne.s32.totalorder %s46, %s47
    %p61 = scmp.eq.s32.totalorder %s25, 1
    %p62 = por %p60, %p61
    %p64 = scmp.ne.s32.totalorder %s47, %s63
    %p65 = scmp.eq.s32.totalorder %s25, 0
    %p66 = por %p64, %p65
    %s67 = ssub.s32 %s26, %s38
    %p68 = scmp.eq.s32.totalorder %s67, 0
    %s70 = sadd.s32 %s69, 1
    %s71 = scalar_select %p68, %s69, %s70
    %p74 = pneg %p68
    %p75 = scmp.eq.s32.totalorder %s19, 1
    %p76 = por %p74, %p75
    %p77 = scmp.ne.s32.totalorder %s69, %s72
    %p78 = scmp.eq.s32.totalorder %s19, 0
    %p79 = por %p77, %p78
    %p80 = scmp.ne.s32.totalorder %s69, %s72
    %p81 = scmp.eq.s32.totalorder %s24, 1
    %p82 = por %p80, %p81
    %p83 = scmp.ne.s32.totalorder %s72, %s73
    %p84 = scmp.eq.s32.totalorder %s24, 0
    %p85 = por %p83, %p84
    %p86 = scmp.ne.s32.totalorder %s72, %s73
    %p87 = scmp.eq.s32.totalorder %s25, 1
    %p88 = por %p86, %p87
    %p90 = scmp.ne.s32.totalorder %s73, %s89
    %p91 = scmp.eq.s32.totalorder %s25, 0
    %p92 = por %p90, %p91
    %s93 = ssub.s32 %s26, %s38
    %p94 = scmp.eq.s32.totalorder %s93, 0
    %s96 = sadd.s32 %s95, 1
    %s97 = scalar_select %p94, %s95, %s96
    %p100 = pneg %p94
    %p101 = scmp.eq.s32.totalorder %s19, 1
    %p102 = por %p100, %p101
    %p103 = scmp.ne.s32.totalorder %s95, %s98
    %p104 = scmp.eq.s32.totalorder %s19, 0
    %p105 = por %p103, %p104
    %p106 = scmp.ne.s32.totalorder %s95, %s98
    %p107 = scmp.eq.s32.totalorder %s24, 1
    %p108 = por %p106, %p107
    %p109 = scmp.ne.s32.totalorder %s98, %s99
    %p110 = scmp.eq.s32.totalorder %s24, 0
    %p111 = por %p109, %p110
    %p112 = scmp.ne.s32.totalorder %s98, %s99
    %p113 = scmp.eq.s32.totalorder %s25, 1
    %p114 = por %p112, %p113
    %p116 = scmp.ne.s32.totalorder %s99, %s115
    %p117 = scmp.eq.s32.totalorder %s25, 0
    %p118 = por %p116, %p117
    %s120 = sadd.s32 %s119, 1
    %p123 = scmp.eq.s32.totalorder %s19, 1
    %p124 = scmp.ne.s32.totalorder %s119, %s121
    %p125 = scmp.eq.s32.totalorder %s19, 0
    %p126 = por %p124, %p125
    %p127 = scmp.ne.s32.totalorder %s119, %s121
    %p128 = scmp.eq.s32.totalorder %s24, 1
    %p129 = por %p127, %p128
    %p130 = scmp.ne.s32.totalorder %s121, %s122
    %p131 = scmp.eq.s32.totalorder %s24, 0
    %p132 = por %p130, %p131
    %p133 = scmp.ne.s32.totalorder %s121, %s122
    %p134 = scmp.eq.s32.totalorder %s25, 1
    %p135 = por %p133, %p134
    %p137 = scmp.ne.s32.totalorder %s122, %s136
    %p138 = scmp.eq.s32.totalorder %s25, 0
    %p139 = por %p137, %p138
    %s141 = sadd.s32 %s140, 1
    %p144 = scmp.eq.s32.totalorder %s19, 1
    %p145 = scmp.ne.s32.totalorder %s140, %s142
    %p146 = scmp.eq.s32.totalorder %s19, 0
    %p147 = por %p145, %p146
    %p148 = scmp.ne.s32.totalorder %s140, %s142
    %p149 = scmp.eq.s32.totalorder %s24, 1
    %p150 = por %p148, %p149
    %p151 = scmp.ne.s32.totalorder %s142, %s143
    %p152 = scmp.eq.s32.totalorder %s24, 0
    %p153 = por %p151, %p152
    %p154 = scmp.ne.s32.totalorder %s142, %s143
    %p155 = scmp.eq.s32.totalorder %s25, 1
    %p156 = por %p154, %p155
    %p158 = scmp.ne.s32.totalorder %s143, %s157
    %p159 = scmp.eq.s32.totalorder %s25, 0
    %p160 = por %p158, %p159
    %s162 = sadd.s32 %s161, 1
    %p165 = scmp.eq.s32.totalorder %s19, 1
    %p166 = scmp.ne.s32.totalorder %s161, %s163
    %p167 = scmp.eq.s32.totalorder %s19, 0
    %p168 = por %p166, %p167
    %p169 = scmp.ne.s32.totalorder %s161, %s163
    %p170 = scmp.eq.s32.totalorder %s24, 1
    %p171 = por %p169, %p170
    %p172 = scmp.ne.s32.totalorder %s163, %s164
    %p173 = scmp.eq.s32.totalorder %s24, 0
    %p174 = por %p172, %p173
    %p175 = scmp.ne.s32.totalorder %s163, %s164
    %p176 = scmp.eq.s32.totalorder %s25, 1
    %p177 = por %p175, %p176
    %p179 = scmp.ne.s32.totalorder %s164, %s178
    %p180 = scmp.eq.s32.totalorder %s25, 0
    %p181 = por %p179, %p180
    %s183 = sadd.s32 %s182, 1
    %p186 = scmp.eq.s32.totalorder %s19, 1
    %p187 = scmp.ne.s32.totalorder %s182, %s184
    %p188 = scmp.eq.s32.totalorder %s19, 0
    %p189 = por %p187, %p188
    %p190 = scmp.ne.s32.totalorder %s182, %s184
    %p191 = scmp.eq.s32.totalorder %s24, 1
    %p192 = por %p190, %p191
    %p193 = scmp.ne.s32.totalorder %s184, %s185
    %p194 = scmp.eq.s32.totalorder %s24, 0
    %p195 = por %p193, %p194
    %p196 = scmp.ne.s32.totalorder %s184, %s185
    %p197 = scmp.eq.s32.totalorder %s25, 1
    %p198 = por %p196, %p197
    %p200 = scmp.ne.s32.totalorder %s185, %s199
    %p201 = scmp.eq.s32.totalorder %s25, 0
    %p202 = por %p200, %p201
    %s204 = sadd.s32 %s203, 1
    %p207 = scmp.eq.s32.totalorder %s19, 1
    %p208 = scmp.ne.s32.totalorder %s203, %s205
    %p209 = scmp.eq.s32.totalorder %s19, 0
    %p210 = por %p208, %p209
    %p211 = scmp.ne.s32.totalorder %s203, %s205
    %p212 = scmp.eq.s32.totalorder %s24, 1
    %p213 = por %p211, %p212
    %p214 = scmp.ne.s32.totalorder %s205, %s206
    %p215 = scmp.eq.s32.totalorder %s24, 0
    %p216 = por %p214, %p215
    %p217 = scmp.ne.s32.totalorder %s205, %s206
    %p218 = scmp.eq.s32.totalorder %s25, 1
    %p219 = por %p217, %p218
    %p221 = scmp.ne.s32.totalorder %s206, %s220
    %p222 = scmp.eq.s32.totalorder %s25, 0
    %p223 = por %p221, %p222
    %s225 = sadd.s32 %s224, 1
    %p228 = scmp.eq.s32.totalorder %s19, 1
    %p229 = scmp.ne.s32.totalorder %s224, %s226
    %p230 = scmp.eq.s32.totalorder %s19, 0
    %p231 = por %p229, %p230
    %p232 = scmp.ne.s32.totalorder %s224, %s226
    %p233 = scmp.eq.s32.totalorder %s24, 1
    %p234 = por %p232, %p233
    %p235 = scmp.ne.s32.totalorder %s226, %s227
    %p236 = scmp.eq.s32.totalorder %s24, 0
    %p237 = por %p235, %p236
    %p238 = scmp.ne.s32.totalorder %s226, %s227
    %p239 = scmp.eq.s32.totalorder %s25, 1
    %p240 = por %p238, %p239
    %p242 = scmp.ne.s32.totalorder %s227, %s241
    %p243 = scmp.eq.s32.totalorder %s25, 0
    %p244 = por %p242, %p243
    %s246 = sadd.s32 %s245, 1
    %p249 = scmp.eq.s32.totalorder %s19, 1
    %p250 = scmp.ne.s32.totalorder %s245, %s247
    %p251 = scmp.eq.s32.totalorder %s19, 0
    %p252 = por %p250, %p251
    %p253 = scmp.ne.s32.totalorder %s245, %s247
    %p254 = scmp.eq.s32.totalorder %s24, 1
    %p255 = por %p253, %p254
    %p256 = scmp.ne.s32.totalorder %s247, %s248
    %p257 = scmp.eq.s32.totalorder %s24, 0
    %p258 = por %p256, %p257
    %p259 = scmp.ne.s32.totalorder %s247, %s248
    %p260 = scmp.eq.s32.totalorder %s25, 1
    %p261 = por %p259, %p260
    %p263 = scmp.ne.s32.totalorder %s248, %s262
    %p264 = scmp.eq.s32.totalorder %s25, 0
    %p265 = por %p263, %p264
    %s267 = sadd.s32 %s266, 1
    %p270 = scmp.eq.s32.totalorder %s19, 1
    %p271 = scmp.ne.s32.totalorder %s266, %s268
    %p272 = scmp.eq.s32.totalorder %s19, 0
    %p273 = por %p271, %p272
    %p274 = scmp.ne.s32.totalorder %s266, %s268
    %p275 = scmp.eq.s32.totalorder %s24, 1
    %p276 = por %p274, %p275
    %p277 = scmp.ne.s32.totalorder %s268, %s269
    %p278 = scmp.eq.s32.totalorder %s24, 0
    %p279 = por %p277, %p278
    %p280 = scmp.ne.s32.totalorder %s268, %s269
    %p281 = scmp.eq.s32.totalorder %s25, 1
    %p282 = por %p280, %p281
    %p284 = scmp.ne.s32.totalorder %s269, %s283
    %p285 = scmp.eq.s32.totalorder %s25, 0
    %p286 = por %p284, %p285
    %s288 = sadd.s32 %s287, 1
    %p291 = scmp.eq.s32.totalorder %s19, 1
    %p292 = scmp.ne.s32.totalorder %s287, %s289
    %p293 = scmp.eq.s32.totalorder %s19, 0
    %p294 = por %p292, %p293
    %p295 = scmp.ne.s32.totalorder %s287, %s289
    %p296 = scmp.eq.s32.totalorder %s24, 1
    %p297 = por %p295, %p296
    %p298 = scmp.ne.s32.totalorder %s289, %s290
    %p299 = scmp.eq.s32.totalorder %s24, 0
    %p300 = por %p298, %p299
    %p301 = scmp.ne.s32.totalorder %s289, %s290
    %p302 = scmp.eq.s32.totalorder %s25, 1
    %p303 = por %p301, %p302
    %p305 = scmp.ne.s32.totalorder %s290, %s304
    %p306 = scmp.eq.s32.totalorder %s25, 0
    %p307 = por %p305, %p306
    %s309 = sadd.s32 %s308, 1
    %p312 = scmp.eq.s32.totalorder %s19, 1
    %p313 = scmp.ne.s32.totalorder %s308, %s310
    %p314 = scmp.eq.s32.totalorder %s19, 0
    %p315 = por %p313, %p314
    %p316 = scmp.ne.s32.totalorder %s308, %s310
    %p317 = scmp.eq.s32.totalorder %s24, 1
    %p318 = por %p316, %p317
    %p319 = scmp.ne.s32.totalorder %s310, %s311
    %p320 = scmp.eq.s32.totalorder %s24, 0
    %p321 = por %p319, %p320
    %p322 = scmp.ne.s32.totalorder %s310, %s311
    %p323 = scmp.eq.s32.totalorder %s25, 1
    %p324 = por %p322, %p323
    %p326 = scmp.ne.s32.totalorder %s311, %s325
    %p327 = scmp.eq.s32.totalorder %s25, 0
    %p328 = por %p326, %p327
    %s329 = ssub.s32 %s26, %s38
    %s330 = ssub.s32 %s27, %s34
    %s331 = sor.u32 %s329, %s330
    %p332 = scmp.eq.s32.totalorder %s331, 0
    %s334 = sadd.s32 %s333, 1
    %s335 = scalar_select %p332, %s333, %s334
    %p338 = pneg %p332
    %p339 = scmp.eq.s32.totalorder %s19, 1
    %p340 = por %p338, %p339
    %p341 = scmp.ne.s32.totalorder %s333, %s336
    %p342 = scmp.eq.s32.totalorder %s19, 0
    %p343 = por %p341, %p342
    %p344 = scmp.ne.s32.totalorder %s333, %s336
    %p345 = scmp.eq.s32.totalorder %s24, 1
    %p346 = por %p344, %p345
    %p347 = scmp.ne.s32.totalorder %s336, %s337
    %p348 = scmp.eq.s32.totalorder %s24, 0
    %p349 = por %p347, %p348
    %p350 = scmp.ne.s32.totalorder %s336, %s337
    %p351 = scmp.eq.s32.totalorder %s25, 1
    %p352 = por %p350, %p351
    %p354 = scmp.ne.s32.totalorder %s337, %s353
    %p355 = scmp.eq.s32.totalorder %s25, 0
    %p356 = por %p354, %p355
    %p357 = scmp.le.s32.totalorder 1, %s19
    %p358 = scmp.lt.s32.totalorder %s19, 3
    %p359 = pnand %p357, %p358
    %p360 = pneg %p359
    // Predicated region
    $region9: #{transformer_decoder.7} parent=5 // pred_check
      _
    $region10: #{transformer_decoder.7} parent=5 // pred_check_branch
      %362 = sbr.rel (%p359) target = $region12
    $region11: #{transformer_decoder.7} parent=5 // pred_region
      %s363 = ssub.s32 %s19, 1
      // Predicated region
      $region13: #{transformer_decoder.7} parent=11 // pred_check
        %p364 = pneg %p132
      $region14: #{transformer_decoder.7} parent=11 // pred_check_branch
        %366 = sbr.rel (%p364) target = $region16
      $region15: #{transformer_decoder.7} parent=11 // pred_region
        _
      $region16: #{transformer_decoder.7} parent=11 // pred_fallthru
        _
      // Predicated region
      $region17: #{transformer_decoder.7} parent=11 // pred_check
        %p367 = pneg %p153
      $region18: #{transformer_decoder.7} parent=11 // pred_check_branch
        %369 = sbr.rel (%p367) target = $region20
      $region19: #{transformer_decoder.7} parent=11 // pred_region
        _
      $region20: #{transformer_decoder.7} parent=11 // pred_fallthru
        _
      // Predicated region
      $region21: #{transformer_decoder.7} parent=11 // pred_check
        %p370 = pneg %p174
      $region22: #{transformer_decoder.7} parent=11 // pred_check_branch
        %372 = sbr.rel (%p370) target = $region24
      $region23: #{transformer_decoder.7} parent=11 // pred_region
        _
      $region24: #{transformer_decoder.7} parent=11 // pred_fallthru
        _
      // Predicated region
      $region25: #{transformer_decoder.7} parent=11 // pred_check
        %p373 = pneg %p195
      $region26: #{transformer_decoder.7} parent=11 // pred_check_branch
        %375 = sbr.rel (%p373) target = $region28
      $region27: #{transformer_decoder.7} parent=11 // pred_region
        _
      $region28: #{transformer_decoder.7} parent=11 // pred_fallthru
        _
      // Predicated region
      $region29: #{transformer_decoder.7} parent=11 // pred_check
        %p376 = pneg %p216
      $region30: #{transformer_decoder.7} parent=11 // pred_check_branch
        %378 = sbr.rel (%p376) target = $region32
      $region31: #{transformer_decoder.7} parent=11 // pred_region
        _
      $region32: #{transformer_decoder.7} parent=11 // pred_fallthru
        _
      // Predicated region
      $region33: #{transformer_decoder.7} parent=11 // pred_check
        %p379 = pneg %p237
      $region34: #{transformer_decoder.7} parent=11 // pred_check_branch
        %381 = sbr.rel (%p379) target = $region36
      $region35: #{transformer_decoder.7} parent=11 // pred_region
        _
      $region36: #{transformer_decoder.7} parent=11 // pred_fallthru
        _
      // Predicated region
      $region37: #{transformer_decoder.7} parent=11 // pred_check
        %p382 = pneg %p258
      $region38: #{transformer_decoder.7} parent=11 // pred_check_branch
        %384 = sbr.rel (%p382) target = $region40
      $region39: #{transformer_decoder.7} parent=11 // pred_region
        _
      $region40: #{transformer_decoder.7} parent=11 // pred_fallthru
        _
      // Predicated region
      $region41: #{transformer_decoder.7} parent=11 // pred_check
        %p385 = pneg %p279
      $region42: #{transformer_decoder.7} parent=11 // pred_check_branch
        %387 = sbr.rel (%p385) target = $region44
      $region43: #{transformer_decoder.7} parent=11 // pred_region
        _
      $region44: #{transformer_decoder.7} parent=11 // pred_fallthru
        _
      // Predicated region
      $region45: #{transformer_decoder.7} parent=11 // pred_check
        %p388 = pneg %p300
      $region46: #{transformer_decoder.7} parent=11 // pred_check_branch
        %390 = sbr.rel (%p388) target = $region48
      $region47: #{transformer_decoder.7} parent=11 // pred_region
        _
      $region48: #{transformer_decoder.7} parent=11 // pred_fallthru
        _
      // Predicated region
      $region49: #{transformer_decoder.7} parent=11 // pred_check
        %p391 = pneg %p321
      $region50: #{transformer_decoder.7} parent=11 // pred_check_branch
        %393 = sbr.rel (%p391) target = $region52
      $region51: #{transformer_decoder.7} parent=11 // pred_region
        _
      $region52: #{transformer_decoder.7} parent=11 // pred_fallthru
        _
    $region12: #{transformer_decoder.7} parent=5 // pred_fallthru
      _
    %p394 = scmp.lt.s32.totalorder %s19, 2
    // Predicated region
    $region53: #{transformer_decoder.7} parent=5 // pred_check
      %p395 = pneg %p394
    $region54: #{transformer_decoder.7} parent=5 // pred_check_branch
      %397 = sbr.rel (%p395) target = $region56
    $region55: #{transformer_decoder.7} parent=5 // pred_region
      // Predicated region
      $region57: #{transformer_decoder.7} parent=55 // pred_check
        %p398 = pneg %p53
      $region58: #{transformer_decoder.7} parent=55 // pred_check_branch
        %400 = sbr.rel (%p398) target = $region60
      $region59: #{transformer_decoder.7} parent=55 // pred_region
        %p401 = scmp.lt.s32.totalorder %s26, 1
        %s402 = scalar_select %p401, %s26, 1
        %p403 = scmp.lt.s32.totalorder %s27, 0
        %s404 = scalar_select %p403, %s27, 0
        %s405 = sadd.s32 %s404, %s402
        %s406 = smul.addr %s405, 8
        %s407 = scalar_lea.vmem %s0, %s406
      $region60: #{transformer_decoder.7} parent=55 // pred_fallthru
        _
      // Predicated region
      $region61: #{transformer_decoder.7} parent=55 // pred_check
        %p408 = pneg %p79
      $region62: #{transformer_decoder.7} parent=55 // pred_check_branch
        %410 = sbr.rel (%p408) target = $region64
      $region63: #{transformer_decoder.7} parent=55 // pred_region
        %p411 = scmp.lt.s32.totalorder %s26, 1
        %s412 = scalar_select %p411, %s26, 1
        %s413 = smul.addr %s412, 8
        %s414 = scalar_lea.vmem %s1, %s413
      $region64: #{transformer_decoder.7} parent=55 // pred_fallthru
        _
      // Predicated region
      $region65: #{transformer_decoder.7} parent=55 // pred_check
        %p415 = pneg %p105
      $region66: #{transformer_decoder.7} parent=55 // pred_check_branch
        %417 = sbr.rel (%p415) target = $region68
      $region67: #{transformer_decoder.7} parent=55 // pred_region
        %p418 = scmp.lt.s32.totalorder %s26, 1
        %s419 = scalar_select %p418, %s26, 1
        %s420 = scalar_lea.vmem %s2, %s419
      $region68: #{transformer_decoder.7} parent=55 // pred_fallthru
        _
    $region56: #{transformer_decoder.7} parent=5 // pred_fallthru
      _
    %p421 = scmp.le.s32.totalorder 1, %s19
    %p422 = scmp.lt.s32.totalorder %s19, 3
    %p423 = pnand %p421, %p422
    %p424 = pneg %p423
    // Predicated region
    $region69: #{transformer_decoder.7} parent=5 // pred_check
      _
    $region70: #{transformer_decoder.7} parent=5 // pred_check_branch
      %426 = sbr.rel (%p423) target = $region72
    $region71: #{transformer_decoder.7} parent=5 // pred_region
      %s427 = ssub.s32 %s19, 1
      %p428 = scmp.lt.s32.totalorder %s28, 1
      %s429 = scalar_select %p428, %s28, 1
      %p430 = scmp.lt.s32.totalorder %s29, 0
      %s431 = scalar_select %p430, %s29, 0
      %s432 = sadd.s32 %s431, %s429
      %s433 = smul.addr %s432, 8
      %s434 = scalar_lea.vmem %s0, %s433
      %p435 = pneg %p59
      %p436 = pneg %p56
      %p437 = scmp.lt.s32.totalorder %s28, 1
      %s438 = scalar_select %p437, %s28, 1
      %s439 = smul.addr %s438, 8
      %s440 = scalar_lea.vmem %s1, %s439
      %p441 = pneg %p85
      %p442 = pneg %p82
      %p443 = scmp.lt.s32.totalorder %s28, 1
      %s444 = scalar_select %p443, %s28, 1
      %s445 = scalar_lea.vmem %s2, %s444
      %p446 = pneg %p111
      %p447 = pneg %p108
      %p448 = pneg %p132
      %p449 = pneg %p129
      %p450 = pneg %p153
      %p451 = pneg %p150
      %p452 = pneg %p174
      %p453 = pneg %p171
      %p454 = pneg %p195
      %p455 = pneg %p192
      %p456 = pneg %p216
      %p457 = pneg %p213
      %p458 = pneg %p237
      %p459 = pneg %p234
      %p460 = pneg %p258
      %p461 = pneg %p255
      %p462 = pneg %p279
      %p463 = pneg %p276
      %p464 = pneg %p300
      %p465 = pneg %p297
      %p466 = pneg %p321
      %p467 = pneg %p318
      %p468 = pneg %p349
      %p469 = pneg %p346
      %p470 = scmp.lt.s32.totalorder %s28, 1
      %s471 = scalar_select %p470, %s28, 1
      %p472 = scmp.lt.s32.totalorder %s29, 0
      %s473 = scalar_select %p472, %s29, 0
      %s474 = sadd.s32 %s473, %s471
      %s475 = smul.addr %s474, 8
      %s476 = scalar_lea.vmem %s13, %s475
      %p477 = scmp.lt.s32.totalorder %s28, 1
      %s478 = scalar_select %p477, %s28, 1
      %p479 = scmp.lt.s32.totalorder %s29, 0
      %s480 = scalar_select %p479, %s29, 0
      %s481 = sadd.s32 %s480, %s478
      %s482 = smul.addr %s481, 8
      %s483 = scalar_lea.vmem %s0, %s482
      %p484 = scmp.lt.s32.totalorder %s28, 1
      %s485 = scalar_select %p484, %s28, 1
      %s486 = smul.addr %s485, 8
      %s487 = scalar_lea.vmem %s1, %s486
      %p488 = scmp.lt.s32.totalorder %s28, 1
      %s489 = scalar_select %p488, %s28, 1
      %s490 = scalar_lea.vmem %s2, %s489
      %p491 = scmp.lt.s32.totalorder %s28, 1
      %s492 = scalar_select %p491, %s28, 1
      %p493 = scmp.lt.s32.totalorder %s29, 0
      %s494 = scalar_select %p493, %s29, 0
      %s495 = sadd.s32 %s494, %s492
      %s496 = smul.addr %s495, 8
      %s497 = scalar_lea.vmem %s13, %s496
      %v499 = vld [vmem:[%s483] sm:$0xff]
      %v500 = vld [vmem:[%s487] sm:$0xff]
      %v501 = vpack.c.bf16 %v499, %v499
      %v502 = vpack.c.bf16 %v500, %v500
      %v503 = vld [vmem:[%s3] sm:$0xf]
      %v504 = vld [vmem:[%s3 + $0x4] sm:$0xf]
      %v505 = vld [vmem:[%s3 + $0x8] sm:$0xf]
      %v506 = vld [vmem:[%s3 + $0xc] sm:$0xf]
      %v507 = vld [vmem:[%s4] sm:$0x1]
      %v509 = vlaneseq
      %v510 = vshrl.u32 %v509, 7
      %v511 = vsub.s32 0, %v510
      %v512 = vrot.slane %v507, %v511
      %v518 = vunpack.c.l.b16 %v503
      %v519 = vunpack.c.l.b16 %v504
      %v520 = vunpack.c.l.b16 %v505
      %v521 = vunpack.c.l.b16 %v506
      %v522 = vpack.c.b16 %v519, %v518
      %v523 = vpack.c.b16 %v521, %v520
      %vm526 = vcmask 261120
      %v528 = vsel %vm526, %v501, 0
      %530 = vmatprep.subr.bf16.mxu0 0
      %531 = vmatpush1.bf16.msra.mxu0 0
      %532 = vmatprep.subr.bf16.mxu0 0
      %533 = vmatpush1.bf16.msra.mxu0 0
      %534 = vmatprep.subr.bf16.mxu0 0
      %535 = vmatpush1.bf16.msra.mxu0 0
      %536 = vmatprep.subr.bf16.mxu0 0
      %537 = vmatpush1.bf16.msra.mxu0 0
      %538 = vmatprep.subr.bf16.mxu0 0
      %539 = vmatpush1.bf16.msra.mxu0 0
      %540 = vmatprep.subr.bf16.mxu0 0
      %541 = vmatpush1.bf16.msra.mxu0 0
      %542 = vmatprep.subr.bf16.mxu0 0
      %543 = vmatpush1.bf16.msra.mxu0 %v523
      %544 = vmatprep.subr.bf16.mxu0 0
      %545 = vmatpush1.bf16.msra.mxu0 %v522
      %546 = vmatprep.subr.bf16.mxu0 0
      %547 = vmatpush2.bf16.msra.mxu0 0
      %548 = vmatprep.subr.bf16.mxu0 0
      %549 = vmatpush2.bf16.msra.mxu0 0
      %550 = vmatprep.subr.bf16.mxu0 0
      %551 = vmatpush2.bf16.msra.mxu0 0
      %552 = vmatprep.subr.bf16.mxu0 0
      %553 = vmatpush2.bf16.msra.mxu0 0
      %554 = vmatprep.subr.bf16.mxu0 0
      %555 = vmatpush2.bf16.msra.mxu0 0
      %556 = vmatprep.subr.bf16.mxu0 0
      %557 = vmatpush2.bf16.msra.mxu0 0
      %558 = vmatprep.subr.bf16.mxu0 0
      %559 = vmatpush2.bf16.msra.mxu0 0
      %560 = vmatprep.subr.bf16.mxu0 0
      %561 = vmatpush2.bf16.msra.mxu0 0
      %562 = vmatprep.mubr.bf16.mxu0 0
      %563 = vmatmul.mubr.bf16.gmra.mxu0 %v528
      %v564 = vpop.f32.mrf.mxu0
      %v565 = vadd.f32 %v512, %v564
      %v566 = vpop.f32.mrf.mxu0
      %v567 = vpop.f32.mrf.mxu0
      %v568 = vpop.f32.mrf.mxu0
      %569 = vdwg.mxu0
      %v570 = vld [vmem:[%s5] sm:$0xf]
      %v571 = vld [vmem:[%s5 + $0x4] sm:$0xf]
      %v572 = vld [vmem:[%s5 + $0x8] sm:$0xf]
      %v573 = vld [vmem:[%s5 + $0xc] sm:$0xf]
      %v574 = vld [vmem:[%s6] sm:$0x1]
      %v576 = vlaneseq
      %v577 = vshrl.u32 %v576, 7
      %v578 = vsub.s32 0, %v577
      %v579 = vrot.slane %v574, %v578
      %v585 = vunpack.c.l.b16 %v570
      %v586 = vunpack.c.l.b16 %v571
      %v587 = vunpack.c.l.b16 %v572
      %v588 = vunpack.c.l.b16 %v573
      %v589 = vpack.c.b16 %v586, %v585
      %v590 = vpack.c.b16 %v588, %v587
      %v594 = vsel %vm526, %v502, 0
      %596 = vmatprep.subr.bf16.mxu0 0
      %597 = vmatpush1.bf16.msra.mxu0 0
      %598 = vmatprep.subr.bf16.mxu0 0
      %599 = vmatpush1.bf16.msra.mxu0 0
      %600 = vmatprep.subr.bf16.mxu0 0
      %601 = vmatpush1.bf16.msra.mxu0 0
      %602 = vmatprep.subr.bf16.mxu0 0
      %603 = vmatpush1.bf16.msra.mxu0 0
      %604 = vmatprep.subr.bf16.mxu0 0
      %605 = vmatpush1.bf16.msra.mxu0 0
      %606 = vmatprep.subr.bf16.mxu0 0
      %607 = vmatpush1.bf16.msra.mxu0 0
      %608 = vmatprep.subr.bf16.mxu0 0
      %609 = vmatpush1.bf16.msra.mxu0 %v590
      %610 = vmatprep.subr.bf16.mxu0 0
      %611 = vmatpush1.bf16.msra.mxu0 %v589
      %612 = vmatprep.subr.bf16.mxu0 0
      %613 = vmatpush2.bf16.msra.mxu0 0
      %614 = vmatprep.subr.bf16.mxu0 0
      %615 = vmatpush2.bf16.msra.mxu0 0
      %616 = vmatprep.subr.bf16.mxu0 0
      %617 = vmatpush2.bf16.msra.mxu0 0
      %618 = vmatprep.subr.bf16.mxu0 0
      %619 = vmatpush2.bf16.msra.mxu0 0
      %620 = vmatprep.subr.bf16.mxu0 0
      %621 = vmatpush2.bf16.msra.mxu0 0
      %622 = vmatprep.subr.bf16.mxu0 0
      %623 = vmatpush2.bf16.msra.mxu0 0
      %624 = vmatprep.subr.bf16.mxu0 0
      %625 = vmatpush2.bf16.msra.mxu0 0
      %626 = vmatprep.subr.bf16.mxu0 0
      %627 = vmatpush2.bf16.msra.mxu0 0
      %628 = vmatprep.mubr.bf16.mxu0 0
      %629 = vmatmul.mubr.bf16.gmra.mxu0 %v594
      %v630 = vpop.f32.mrf.mxu0
      %v631 = vadd.f32 %v579, %v630
      %v632 = vpop.f32.mrf.mxu0
      %v633 = vpop.f32.mrf.mxu0
      %v634 = vpop.f32.mrf.mxu0
      %635 = vdwg.mxu0
      %v636 = vld [vmem:[%s7] sm:$0xf]
      %v637 = vld [vmem:[%s7 + $0x4] sm:$0xf]
      %v638 = vld [vmem:[%s7 + $0x8] sm:$0xf]
      %v639 = vld [vmem:[%s7 + $0xc] sm:$0xf]
      %v640 = vld [vmem:[%s8] sm:$0x1]
      %v642 = vlaneseq
      %v643 = vshrl.u32 %v642, 7
      %v644 = vsub.s32 0, %v643
      %v645 = vrot.slane %v640, %v644
      %v651 = vunpack.c.l.b16 %v636
      %v652 = vunpack.c.l.b16 %v637
      %v653 = vunpack.c.l.b16 %v638
      %v654 = vunpack.c.l.b16 %v639
      %v655 = vpack.c.b16 %v652, %v651
      %v656 = vpack.c.b16 %v654, %v653
      %659 = vmatprep.subr.bf16.mxu0 0
      %660 = vmatpush1.bf16.msra.mxu0 0
      %661 = vmatprep.subr.bf16.mxu0 0
      %662 = vmatpush1.bf16.msra.mxu0 0
      %663 = vmatprep.subr.bf16.mxu0 0
      %664 = vmatpush1.bf16.msra.mxu0 0
      %665 = vmatprep.subr.bf16.mxu0 0
      %666 = vmatpush1.bf16.msra.mxu0 0
      %667 = vmatprep.subr.bf16.mxu0 0
      %668 = vmatpush1.bf16.msra.mxu0 0
      %669 = vmatprep.subr.bf16.mxu0 0
      %670 = vmatpush1.bf16.msra.mxu0 0
      %671 = vmatprep.subr.bf16.mxu0 0
      %672 = vmatpush1.bf16.msra.mxu0 %v656
      %673 = vmatprep.subr.bf16.mxu0 0
      %674 = vmatpush1.bf16.msra.mxu0 %v655
      %675 = vmatprep.subr.bf16.mxu0 0
      %676 = vmatpush2.bf16.msra.mxu0 0
      %677 = vmatprep.subr.bf16.mxu0 0
      %678 = vmatpush2.bf16.msra.mxu0 0
      %679 = vmatprep.subr.bf16.mxu0 0
      %680 = vmatpush2.bf16.msra.mxu0 0
      %681 = vmatprep.subr.bf16.mxu0 0
      %682 = vmatpush2.bf16.msra.mxu0 0
      %683 = vmatprep.subr.bf16.mxu0 0
      %684 = vmatpush2.bf16.msra.mxu0 0
      %685 = vmatprep.subr.bf16.mxu0 0
      %686 = vmatpush2.bf16.msra.mxu0 0
      %687 = vmatprep.subr.bf16.mxu0 0
      %688 = vmatpush2.bf16.msra.mxu0 0
      %689 = vmatprep.subr.bf16.mxu0 0
      %690 = vmatpush2.bf16.msra.mxu0 0
      %691 = vmatprep.mubr.bf16.mxu0 0
      %692 = vmatmul.mubr.bf16.gmra.mxu0 %v594
      %v693 = vpop.f32.mrf.mxu0
      %v694 = vadd.f32 %v645, %v693
      %v695 = vpop.f32.mrf.mxu0
      %v696 = vpop.f32.mrf.mxu0
      %v697 = vpop.f32.mrf.mxu0
      %698 = vdwg.mxu0
      %v699 = vld [vmem:[%s490] sm:$0x1]
      %v700 = vpack.c.bf16 %v565, %v565
      %v701 = vpack.c.bf16 %v631, %v631
      %v702 = vpack.c.bf16 %v694, %v694
      %v704 = vlaneseq
      %v705 = vshrl.u32 %v704, 7
      %v706 = vsub.s32 0, %v705
      %v707 = vrot.slane %v699, %v706
      %vm709 = vcmask 64512
      %v711 = vsel %vm709, %v700, 0
      %v714 = vsel %vm709, %v701, 0
      %716 = vmatprep.subr.bf16.mxu0 0
      %717 = vmatpush1.bf16.xpose.msra.mxu0 0
      %718 = vmatprep.subr.bf16.mxu0 0
      %719 = vmatpush1.bf16.xpose.msra.mxu0 0
      %720 = vmatprep.subr.bf16.mxu0 0
      %721 = vmatpush1.bf16.xpose.msra.mxu0 0
      %722 = vmatprep.subr.bf16.mxu0 0
      %723 = vmatpush1.bf16.xpose.msra.mxu0 0
      %724 = vmatprep.subr.bf16.mxu0 0
      %725 = vmatpush1.bf16.xpose.msra.mxu0 0
      %726 = vmatprep.subr.bf16.mxu0 0
      %727 = vmatpush1.bf16.xpose.msra.mxu0 0
      %728 = vmatprep.subr.bf16.mxu0 0
      %729 = vmatpush1.bf16.xpose.msra.mxu0 0
      %730 = vmatprep.subr.bf16.mxu0 0
      %731 = vmatpush1.bf16.xpose.msra.mxu0 %v714
      %732 = vmatprep.subr.bf16.mxu0 0
      %733 = vmatpush2.bf16.xpose.msra.mxu0 0
      %734 = vmatprep.subr.bf16.mxu0 0
      %735 = vmatpush2.bf16.xpose.msra.mxu0 0
      %736 = vmatprep.subr.bf16.mxu0 0
      %737 = vmatpush2.bf16.xpose.msra.mxu0 0
      %738 = vmatprep.subr.bf16.mxu0 0
      %739 = vmatpush2.bf16.xpose.msra.mxu0 0
      %740 = vmatprep.subr.bf16.mxu0 0
      %741 = vmatpush2.bf16.xpose.msra.mxu0 0
      %742 = vmatprep.subr.bf16.mxu0 0
      %743 = vmatpush2.bf16.xpose.msra.mxu0 0
      %744 = vmatprep.subr.bf16.mxu0 0
      %745 = vmatpush2.bf16.xpose.msra.mxu0 0
      %746 = vmatprep.subr.bf16.mxu0 0
      %747 = vmatpush2.bf16.xpose.msra.mxu0 0
      %748 = vmatprep.mubr.bf16.mxu0 0
      %749 = vmatmul.mubr.bf16.gmra.mxu0 %v711
      %v750 = vpop.f32.mrf.mxu0
      %v751 = vadd.f32 %v707, %v750
      %v752 = vpop.f32.mrf.mxu0
      %v753 = vpop.f32.mrf.mxu0
      %v754 = vpop.f32.mrf.mxu0
      %755 = vdwg.mxu0
      %v756 = vsel %vm709, %v751, -inf
      %757 = vmax.xlane.f32.xlu0 %v756
      %v758 = vpop.xlane.xlu0 %757
      %v759 = vsub.f32 %v751, %v758
      %v760 = vmul.f32 %v759, 1.442695
      %v761 = vpow.pop %v760
      %v762 = vsel %vm709, %v761, 0.0
      %763 = vadd.xlane.f32.xlu0 %v762
      %v764 = vpop.xlane.xlu0 %763
      %v765 = vrcp.pop %v764
      %v766 = vpack.c.bf16 %v761, %v761
      %v768 = vsel %vm709, %v766, 0
      %vm770 = vcmask 1043456
      %v772 = vsel %vm770, %v702, 0
      %774 = vmatprep.subr.bf16.mxu0 0
      %775 = vmatpush1.bf16.msra.mxu0 0
      %776 = vmatprep.subr.bf16.mxu0 0
      %777 = vmatpush1.bf16.msra.mxu0 0
      %778 = vmatprep.subr.bf16.mxu0 0
      %779 = vmatpush1.bf16.msra.mxu0 0
      %780 = vmatprep.subr.bf16.mxu0 0
      %781 = vmatpush1.bf16.msra.mxu0 0
      %782 = vmatprep.subr.bf16.mxu0 0
      %783 = vmatpush1.bf16.msra.mxu0 0
      %784 = vmatprep.subr.bf16.mxu0 0
      %785 = vmatpush1.bf16.msra.mxu0 0
      %786 = vmatprep.subr.bf16.mxu0 0
      %787 = vmatpush1.bf16.msra.mxu0 0
      %788 = vmatprep.subr.bf16.mxu0 0
      %789 = vmatpush1.bf16.msra.mxu0 %v772
      %790 = vmatprep.subr.bf16.mxu0 0
      %791 = vmatpush2.bf16.msra.mxu0 0
      %792 = vmatprep.subr.bf16.mxu0 0
      %793 = vmatpush2.bf16.msra.mxu0 0
      %794 = vmatprep.subr.bf16.mxu0 0
      %795 = vmatpush2.bf16.msra.mxu0 0
      %796 = vmatprep.subr.bf16.mxu0 0
      %797 = vmatpush2.bf16.msra.mxu0 0
      %798 = vmatprep.subr.bf16.mxu0 0
      %799 = vmatpush2.bf16.msra.mxu0 0
      %800 = vmatprep.subr.bf16.mxu0 0
      %801 = vmatpush2.bf16.msra.mxu0 0
      %802 = vmatprep.subr.bf16.mxu0 0
      %803 = vmatpush2.bf16.msra.mxu0 0
      %804 = vmatprep.subr.bf16.mxu0 0
      %805 = vmatpush2.bf16.msra.mxu0 0
      %806 = vmatprep.mubr.bf16.mxu0 0
      %807 = vmatmul.mubr.bf16.gmra.mxu0 %v768
      %v808 = vpop.f32.mrf.mxu0
      %v809 = vadd.f32 0.0, %v808
      %v810 = vpop.f32.mrf.mxu0
      %v811 = vpop.f32.mrf.mxu0
      %v812 = vpop.f32.mrf.mxu0
      %813 = vdwg.mxu0
      %v814 = vmul.f32 %v809, %v765
      %815 = vst.msk [vmem:[#allocation2] sm:$0xff] %vm709, %v814
      %817 = vrot.lane.b32.xlu0 %v700, 120
      %v818 = vpop.permute.xlu0 %817
      %820 = vrot.lane.b32.xlu0 %v701, 120
      %v821 = vpop.permute.xlu0 %820
      %v823 = vsel %vm709, %v818, 0
      %v826 = vsel %vm709, %v821, 0
      %828 = vmatprep.subr.bf16.mxu0 0
      %829 = vmatpush1.bf16.xpose.msra.mxu0 0
      %830 = vmatprep.subr.bf16.mxu0 0
      %831 = vmatpush1.bf16.xpose.msra.mxu0 0
      %832 = vmatprep.subr.bf16.mxu0 0
      %833 = vmatpush1.bf16.xpose.msra.mxu0 0
      %834 = vmatprep.subr.bf16.mxu0 0
      %835 = vmatpush1.bf16.xpose.msra.mxu0 0
      %836 = vmatprep.subr.bf16.mxu0 0
      %837 = vmatpush1.bf16.xpose.msra.mxu0 0
      %838 = vmatprep.subr.bf16.mxu0 0
      %839 = vmatpush1.bf16.xpose.msra.mxu0 0
      %840 = vmatprep.subr.bf16.mxu0 0
      %841 = vmatpush1.bf16.xpose.msra.mxu0 0
      %842 = vmatprep.subr.bf16.mxu0 0
      %843 = vmatpush1.bf16.xpose.msra.mxu0 %v826
      %844 = vmatprep.subr.bf16.mxu0 0
      %845 = vmatpush2.bf16.xpose.msra.mxu0 0
      %846 = vmatprep.subr.bf16.mxu0 0
      %847 = vmatpush2.bf16.xpose.msra.mxu0 0
      %848 = vmatprep.subr.bf16.mxu0 0
      %849 = vmatpush2.bf16.xpose.msra.mxu0 0
      %850 = vmatprep.subr.bf16.mxu0 0
      %851 = vmatpush2.bf16.xpose.msra.mxu0 0
      %852 = vmatprep.subr.bf16.mxu0 0
      %853 = vmatpush2.bf16.xpose.msra.mxu0 0
      %854 = vmatprep.subr.bf16.mxu0 0
      %855 = vmatpush2.bf16.xpose.msra.mxu0 0
      %856 = vmatprep.subr.bf16.mxu0 0
      %857 = vmatpush2.bf16.xpose.msra.mxu0 0
      %858 = vmatprep.subr.bf16.mxu0 0
      %859 = vmatpush2.bf16.xpose.msra.mxu0 0
      %860 = vmatprep.mubr.bf16.mxu0 0
      %861 = vmatmul.mubr.bf16.gmra.mxu0 %v823
      %v862 = vpop.f32.mrf.mxu0
      %v863 = vadd.f32 %v707, %v862
      %v864 = vpop.f32.mrf.mxu0
      %v865 = vpop.f32.mrf.mxu0
      %v866 = vpop.f32.mrf.mxu0
      %867 = vdwg.mxu0
      %v868 = vsel %vm709, %v863, -inf
      %869 = vmax.xlane.f32.xlu0 %v868
      %v870 = vpop.xlane.xlu0 %869
      %v871 = vsub.f32 %v863, %v870
      %v872 = vmul.f32 %v871, 1.442695
      %v873 = vpow.pop %v872
      %v874 = vsel %vm709, %v873, 0.0
      %875 = vadd.xlane.f32.xlu0 %v874
      %v876 = vpop.xlane.xlu0 %875
      %v877 = vrcp.pop %v876
      %v878 = vpack.c.bf16 %v873, %v873
      %880 = vrot.lane.b32.xlu0 %v702, 120
      %v881 = vpop.permute.xlu0 %880
      %v883 = vsel %vm709, %v878, 0
      %v886 = vsel %vm770, %v881, 0
      %888 = vmatprep.subr.bf16.mxu0 0
      %889 = vmatpush1.bf16.msra.mxu0 0
      %890 = vmatprep.subr.bf16.mxu0 0
      %891 = vmatpush1.bf16.msra.mxu0 0
      %892 = vmatprep.subr.bf16.mxu0 0
      %893 = vmatpush1.bf16.msra.mxu0 0
      %894 = vmatprep.subr.bf16.mxu0 0
      %895 = vmatpush1.bf16.msra.mxu0 0
      %896 = vmatprep.subr.bf16.mxu0 0
      %897 = vmatpush1.bf16.msra.mxu0 0
      %898 = vmatprep.subr.bf16.mxu0 0
      %899 = vmatpush1.bf16.msra.mxu0 0
      %900 = vmatprep.subr.bf16.mxu0 0
      %901 = vmatpush1.bf16.msra.mxu0 0
      %902 = vmatprep.subr.bf16.mxu0 0
      %903 = vmatpush1.bf16.msra.mxu0 %v886
      %904 = vmatprep.subr.bf16.mxu0 0
      %905 = vmatpush2.bf16.msra.mxu0 0
      %906 = vmatprep.subr.bf16.mxu0 0
      %907 = vmatpush2.bf16.msra.mxu0 0
      %908 = vmatprep.subr.bf16.mxu0 0
      %909 = vmatpush2.bf16.msra.mxu0 0
      %910 = vmatprep.subr.bf16.mxu0 0
      %911 = vmatpush2.bf16.msra.mxu0 0
      %912 = vmatprep.subr.bf16.mxu0 0
      %913 = vmatpush2.bf16.msra.mxu0 0
      %914 = vmatprep.subr.bf16.mxu0 0
      %915 = vmatpush2.bf16.msra.mxu0 0
      %916 = vmatprep.subr.bf16.mxu0 0
      %917 = vmatpush2.bf16.msra.mxu0 0
      %918 = vmatprep.subr.bf16.mxu0 0
      %919 = vmatpush2.bf16.msra.mxu0 0
      %920 = vmatprep.mubr.bf16.mxu0 0
      %921 = vmatmul.mubr.bf16.gmra.mxu0 %v883
      %v922 = vpop.f32.mrf.mxu0
      %v923 = vadd.f32 0.0, %v922
      %v924 = vpop.f32.mrf.mxu0
      %v925 = vpop.f32.mrf.mxu0
      %v926 = vpop.f32.mrf.mxu0
      %927 = vdwg.mxu0
      %v928 = vmul.f32 %v923, %v877
      %930 = vrot.lane.b32.xlu0 %v928, 8
      %v931 = vpop.permute.xlu0 %930
      %vm933 = vcmask 130112
      %934 = vst.msk [vmem:[#allocation2] sm:$0xff] %vm933, %v931
      %935 = vrot.lane.b32.xlu0 %v700, 112
      %v936 = vpop.permute.xlu0 %935
      %937 = vrot.lane.b32.xlu0 %v701, 112
      %v938 = vpop.permute.xlu0 %937
      %v940 = vsel %vm709, %v936, 0
      %v943 = vsel %vm709, %v938, 0
      %945 = vmatprep.subr.bf16.mxu0 0
      %946 = vmatpush1.bf16.xpose.msra.mxu0 0
      %947 = vmatprep.subr.bf16.mxu0 0
      %948 = vmatpush1.bf16.xpose.msra.mxu0 0
      %949 = vmatprep.subr.bf16.mxu0 0
      %950 = vmatpush1.bf16.xpose.msra.mxu0 0
      %951 = vmatprep.subr.bf16.mxu0 0
      %952 = vmatpush1.bf16.xpose.msra.mxu0 0
      %953 = vmatprep.subr.bf16.mxu0 0
      %954 = vmatpush1.bf16.xpose.msra.mxu0 0
      %955 = vmatprep.subr.bf16.mxu0 0
      %956 = vmatpush1.bf16.xpose.msra.mxu0 0
      %957 = vmatprep.subr.bf16.mxu0 0
      %958 = vmatpush1.bf16.xpose.msra.mxu0 0
      %959 = vmatprep.subr.bf16.mxu0 0
      %960 = vmatpush1.bf16.xpose.msra.mxu0 %v943
      %961 = vmatprep.subr.bf16.mxu0 0
      %962 = vmatpush2.bf16.xpose.msra.mxu0 0
      %963 = vmatprep.subr.bf16.mxu0 0
      %964 = vmatpush2.bf16.xpose.msra.mxu0 0
      %965 = vmatprep.subr.bf16.mxu0 0
      %966 = vmatpush2.bf16.xpose.msra.mxu0 0
      %967 = vmatprep.subr.bf16.mxu0 0
      %968 = vmatpush2.bf16.xpose.msra.mxu0 0
      %969 = vmatprep.subr.bf16.mxu0 0
      %970 = vmatpush2.bf16.xpose.msra.mxu0 0
      %971 = vmatprep.subr.bf16.mxu0 0
      %972 = vmatpush2.bf16.xpose.msra.mxu0 0
      %973 = vmatprep.subr.bf16.mxu0 0
      %974 = vmatpush2.bf16.xpose.msra.mxu0 0
      %975 = vmatprep.subr.bf16.mxu0 0
      %976 = vmatpush2.bf16.xpose.msra.mxu0 0
      %977 = vmatprep.mubr.bf16.mxu0 0
      %978 = vmatmul.mubr.bf16.gmra.mxu0 %v940
      %v979 = vpop.f32.mrf.mxu0
      %v980 = vadd.f32 %v707, %v979
      %v981 = vpop.f32.mrf.mxu0
      %v982 = vpop.f32.mrf.mxu0
      %v983 = vpop.f32.mrf.mxu0
      %984 = vdwg.mxu0
      %v985 = vsel %vm709, %v980, -inf
      %986 = vmax.xlane.f32.xlu0 %v985
      %v987 = vpop.xlane.xlu0 %986
      %v988 = vsub.f32 %v980, %v987
      %v989 = vmul.f32 %v988, 1.442695
      %v990 = vpow.pop %v989
      %v991 = vsel %vm709, %v990, 0.0
      %992 = vadd.xlane.f32.xlu0 %v991
      %v993 = vpop.xlane.xlu0 %992
      %v994 = vrcp.pop %v993
      %v995 = vpack.c.bf16 %v990, %v990
      %996 = vrot.lane.b32.xlu0 %v702, 112
      %v997 = vpop.permute.xlu0 %996
      %v999 = vsel %vm709, %v995, 0
      %v1002 = vsel %vm770, %v997, 0
      %1004 = vmatprep.subr.bf16.mxu0 0
      %1005 = vmatpush1.bf16.msra.mxu0 0
      %1006 = vmatprep.subr.bf16.mxu0 0
      %1007 = vmatpush1.bf16.msra.mxu0 0
      %1008 = vmatprep.subr.bf16.mxu0 0
      %1009 = vmatpush1.bf16.msra.mxu0 0
      %1010 = vmatprep.subr.bf16.mxu0 0
      %1011 = vmatpush1.bf16.msra.mxu0 0
      %1012 = vmatprep.subr.bf16.mxu0 0
      %1013 = vmatpush1.bf16.msra.mxu0 0
      %1014 = vmatprep.subr.bf16.mxu0 0
      %1015 = vmatpush1.bf16.msra.mxu0 0
      %1016 = vmatprep.subr.bf16.mxu0 0
      %1017 = vmatpush1.bf16.msra.mxu0 0
      %1018 = vmatprep.subr.bf16.mxu0 0
      %1019 = vmatpush1.bf16.msra.mxu0 %v1002
      %1020 = vmatprep.subr.bf16.mxu0 0
      %1021 = vmatpush2.bf16.msra.mxu0 0
      %1022 = vmatprep.subr.bf16.mxu0 0
      %1023 = vmatpush2.bf16.msra.mxu0 0
      %1024 = vmatprep.subr.bf16.mxu0 0
      %1025 = vmatpush2.bf16.msra.mxu0 0
      %1026 = vmatprep.subr.bf16.mxu0 0
      %1027 = vmatpush2.bf16.msra.mxu0 0
      %1028 = vmatprep.subr.bf16.mxu0 0
      %1029 = vmatpush2.bf16.msra.mxu0 0
      %1030 = vmatprep.subr.bf16.mxu0 0
      %1031 = vmatpush2.bf16.msra.mxu0 0
      %1032 = vmatprep.subr.bf16.mxu0 0
      %1033 = vmatpush2.bf16.msra.mxu0 0
      %1034 = vmatprep.subr.bf16.mxu0 0
      %1035 = vmatpush2.bf16.msra.mxu0 0
      %1036 = vmatprep.mubr.bf16.mxu0 0
      %1037 = vmatmul.mubr.bf16.gmra.mxu0 %v999
      %v1038 = vpop.f32.mrf.mxu0
      %v1039 = vadd.f32 0.0, %v1038
      %v1040 = vpop.f32.mrf.mxu0
      %v1041 = vpop.f32.mrf.mxu0
      %v1042 = vpop.f32.mrf.mxu0
      %1043 = vdwg.mxu0
      %v1044 = vmul.f32 %v1039, %v994
      %1046 = vrot.lane.b32.xlu0 %v1044, 16
      %v1047 = vpop.permute.xlu0 %1046
      %vm1049 = vcmask 195712
      %1050 = vst.msk [vmem:[#allocation2] sm:$0xff] %vm1049, %v1047
      %1051 = vrot.lane.b32.xlu0 %v700, 104
      %v1052 = vpop.permute.xlu0 %1051
      %1053 = vrot.lane.b32.xlu0 %v701, 104
      %v1054 = vpop.permute.xlu0 %1053
      %v1056 = vsel %vm709, %v1052, 0
      %v1059 = vsel %vm709, %v1054, 0
      %1061 = vmatprep.subr.bf16.mxu0 0
      %1062 = vmatpush1.bf16.xpose.msra.mxu0 0
      %1063 = vmatprep.subr.bf16.mxu0 0
      %1064 = vmatpush1.bf16.xpose.msra.mxu0 0
      %1065 = vmatprep.subr.bf16.mxu0 0
      %1066 = vmatpush1.bf16.xpose.msra.mxu0 0
      %1067 = vmatprep.subr.bf16.mxu0 0
      %1068 = vmatpush1.bf16.xpose.msra.mxu0 0
      %1069 = vmatprep.subr.bf16.mxu0 0
      %1070 = vmatpush1.bf16.xpose.msra.mxu0 0
      %1071 = vmatprep.subr.bf16.mxu0 0
      %1072 = vmatpush1.bf16.xpose.msra.mxu0 0
      %1073 = vmatprep.subr.bf16.mxu0 0
      %1074 = vmatpush1.bf16.xpose.msra.mxu0 0
      %1075 = vmatprep.subr.bf16.mxu0 0
      %1076 = vmatpush1.bf16.xpose.msra.mxu0 %v1059
      %1077 = vmatprep.subr.bf16.mxu0 0
      %1078 = vmatpush2.bf16.xpose.msra.mxu0 0
      %1079 = vmatprep.subr.bf16.mxu0 0
      %1080 = vmatpush2.bf16.xpose.msra.mxu0 0
      %1081 = vmatprep.subr.bf16.mxu0 0
      %1082 = vmatpush2.bf16.xpose.msra.mxu0 0
      %1083 = vmatprep.subr.bf16.mxu0 0
      %1084 = vmatpush2.bf16.xpose.msra.mxu0 0
      %1085 = vmatprep.subr.bf16.mxu0 0
      %1086 = vmatpush2.bf16.xpose.msra.mxu0 0
      %1087 = vmatprep.subr.bf16.mxu0 0
      %1088 = vmatpush2.bf16.xpose.msra.mxu0 0
      %1089 = vmatprep.subr.bf16.mxu0 0
      %1090 = vmatpush2.bf16.xpose.msra.mxu0 0
      %1091 = vmatprep.subr.bf16.mxu0 0
      %1092 = vmatpush2.bf16.xpose.msra.mxu0 0
      %1093 = vmatprep.mubr.bf16.mxu0 0
      %1094 = vmatmul.mubr.bf16.gmra.mxu0 %v1056
      %v1095 = vpop.f32.mrf.mxu0
      %v1096 = vadd.f32 %v707, %v1095
      %v1097 = vpop.f32.mrf.mxu0
      %v1098 = vpop.f32.mrf.mxu0
      %v1099 = vpop.f32.mrf.mxu0
      %1100 = vdwg.mxu0
      %v1101 = vsel %vm709, %v1096, -inf
      %1102 = vmax.xlane.f32.xlu0 %v1101
      %v1103 = vpop.xlane.xlu0 %1102
      %v1104 = vsub.f32 %v1096, %v1103
      %v1105 = vmul.f32 %v1104, 1.442695
      %v1106 = vpow.pop %v1105
      %v1107 = vsel %vm709, %v1106, 0.0
      %1108 = vadd.xlane.f32.xlu0 %v1107
      %v1109 = vpop.xlane.xlu0 %1108
      %v1110 = vrcp.pop %v1109
      %v1111 = vpack.c.bf16 %v1106, %v1106
      %1112 = vrot.lane.b32.xlu0 %v702, 104
      %v1113 = vpop.permute.xlu0 %1112
      %v1115 = vsel %vm709, %v1111, 0
      %v1118 = vsel %vm770, %v1113, 0
      %1120 = vmatprep.subr.bf16.mxu0 0
      %1121 = vmatpush1.bf16.msra.mxu0 0
      %1122 = vmatprep.subr.bf16.mxu0 0
      %1123 = vmatpush1.bf16.msra.mxu0 0
      %1124 = vmatprep.subr.bf16.mxu0 0
      %1125 = vmatpush1.bf16.msra.mxu0 0
      %1126 = vmatprep.subr.bf16.mxu0 0
      %1127 = vmatpush1.bf16.msra.mxu0 0
      %1128 = vmatprep.subr.bf16.mxu0 0
      %1129 = vmatpush1.bf16.msra.mxu0 0
      %1130 = vmatprep.subr.bf16.mxu0 0
      %1131 = vmatpush1.bf16.msra.mxu0 0
      %1132 = vmatprep.subr.bf16.mxu0 0
      %1133 = vmatpush1.bf16.msra.mxu0 0
      %1134 = vmatprep.subr.bf16.mxu0 0
      %1135 = vmatpush1.bf16.msra.mxu0 %v1118
      %1136 = vmatprep.subr.bf16.mxu0 0
      %1137 = vmatpush2.bf16.msra.mxu0 0
      %1138 = vmatprep.subr.bf16.mxu0 0
      %1139 = vmatpush2.bf16.msra.mxu0 0
      %1140 = vmatprep.subr.bf16.mxu0 0
      %1141 = vmatpush2.bf16.msra.mxu0 0
      %1142 = vmatprep.subr.bf16.mxu0 0
      %1143 = vmatpush2.bf16.msra.mxu0 0
      %1144 = vmatprep.subr.bf16.mxu0 0
      %1145 = vmatpush2.bf16.msra.mxu0 0
      %1146 = vmatprep.subr.bf16.mxu0 0
      %1147 = vmatpush2.bf16.msra.mxu0 0
      %1148 = vmatprep.subr.bf16.mxu0 0
      %1149 = vmatpush2.bf16.msra.mxu0 0
      %1150 = vmatprep.subr.bf16.mxu0 0
      %1151 = vmatpush2.bf16.msra.mxu0 0
      %1152 = vmatprep.mubr.bf16.mxu0 0
      %1153 = vmatmul.mubr.bf16.gmra.mxu0 %v1115
      %v1154 = vpop.f32.mrf.mxu0
      %v1155 = vadd.f32 0.0, %v1154
      %v1156 = vpop.f32.mrf.mxu0
      %v1157 = vpop.f32.mrf.mxu0
      %v1158 = vpop.f32.mrf.mxu0
      %1159 = vdwg.mxu0
      %v1160 = vmul.f32 %v1155, %v1110
      %1162 = vrot.lane.b32.xlu0 %v1160, 24
      %v1163 = vpop.permute.xlu0 %1162
      %vm1165 = vcmask 261312
      %1166 = vst.msk [vmem:[#allocation2] sm:$0xff] %vm1165, %v1163
      %v1167 = vld [vmem:[%s10] sm:$0x1]
      %v1169 = vlaneseq
      %v1170 = vshrl.u32 %v1169, 7
      %v1171 = vsub.s32 0, %v1170
      %v1172 = vrot.slane %v1167, %v1171
      %v1174 = vadd.f32 %v499, %v1172
      %v1175 = vld [vmem:[#allocation2] sm:$0xff]
      %v1176 = vpack.c.bf16 %v1175, %v1175
      %v1177 = vld [vmem:[%s9] sm:$0xf]
      %v1178 = vld [vmem:[%s9 + $0x4] sm:$0xf]
      %v1179 = vld [vmem:[%s9 + $0x8] sm:$0xf]
      %v1180 = vld [vmem:[%s9 + $0xc] sm:$0xf]
      %v1185 = vunpack.c.l.b16 %v1177
      %v1186 = vunpack.c.l.b16 %v1178
      %v1187 = vunpack.c.l.b16 %v1179
      %v1188 = vunpack.c.l.b16 %v1180
      %v1189 = vpack.c.b16 %v1186, %v1185
      %v1190 = vpack.c.b16 %v1188, %v1187
      %v1194 = vsel %vm526, %v1176, 0
      %1196 = vmatprep.subr.bf16.mxu0 0
      %1197 = vmatpush1.bf16.msra.mxu0 0
      %1198 = vmatprep.subr.bf16.mxu0 0
      %1199 = vmatpush1.bf16.msra.mxu0 0
      %1200 = vmatprep.subr.bf16.mxu0 0
      %1201 = vmatpush1.bf16.msra.mxu0 0
      %1202 = vmatprep.subr.bf16.mxu0 0
      %1203 = vmatpush1.bf16.msra.mxu0 0
      %1204 = vmatprep.subr.bf16.mxu0 0
      %1205 = vmatpush1.bf16.msra.mxu0 0
      %1206 = vmatprep.subr.bf16.mxu0 0
      %1207 = vmatpush1.bf16.msra.mxu0 0
      %1208 = vmatprep.subr.bf16.mxu0 0
      %1209 = vmatpush1.bf16.msra.mxu0 %v1190
      %1210 = vmatprep.subr.bf16.mxu0 0
      %1211 = vmatpush1.bf16.msra.mxu0 %v1189
      %1212 = vmatprep.subr.bf16.mxu0 0
      %1213 = vmatpush2.bf16.msra.mxu0 0
      %1214 = vmatprep.subr.bf16.mxu0 0
      %1215 = vmatpush2.bf16.msra.mxu0 0
      %1216 = vmatprep.subr.bf16.mxu0 0
      %1217 = vmatpush2.bf16.msra.mxu0 0
      %1218 = vmatprep.subr.bf16.mxu0 0
      %1219 = vmatpush2.bf16.msra.mxu0 0
      %1220 = vmatprep.subr.bf16.mxu0 0
      %1221 = vmatpush2.bf16.msra.mxu0 0
      %1222 = vmatprep.subr.bf16.mxu0 0
      %1223 = vmatpush2.bf16.msra.mxu0 0
      %1224 = vmatprep.subr.bf16.mxu0 0
      %1225 = vmatpush2.bf16.msra.mxu0 0
      %1226 = vmatprep.subr.bf16.mxu0 0
      %1227 = vmatpush2.bf16.msra.mxu0 0
      %1228 = vmatprep.mubr.bf16.mxu0 0
      %1229 = vmatmul.mubr.bf16.gmra.mxu0 %v1194
      %v1230 = vpop.f32.mrf.mxu0
      %v1231 = vadd.f32 0.0, %v1230
      %v1232 = vpop.f32.mrf.mxu0
      %v1233 = vpop.f32.mrf.mxu0
      %v1234 = vpop.f32.mrf.mxu0
      %1235 = vdwg.mxu0
      %v1236 = vadd.f32 %v1174, %v1231
      %v1237 = vsel %vm526, %v1236, 0.0
      %1238 = vadd.xlane.f32.xlu0 %v1237
      %v1239 = vpop.xlane.xlu0 %1238
      %v1240 = vrcp.pop 32.0
      %v1241 = vmul.f32 %v1239, %v1240
      %v1242 = vsub.f32 %v1236, %v1241
      %v1243 = vmul.f32 %v1242, %v1242
      %v1244 = vsel %vm526, %v1243, 0.0
      %1245 = vadd.xlane.f32.xlu0 %v1244
      %v1246 = vpop.xlane.xlu0 %1245
      %v1247 = vmul.f32 %v1246, %v1240
      %v1248 = vadd.f32 %v1247, 1e-05
      %v1249 = vrsqrt.pop %v1248
      %v1250 = vmul.f32 %v1242, %v1249
      %v1251 = vld [vmem:[%s11] sm:$0x1]
      %v1253 = vlaneseq
      %v1254 = vshrl.u32 %v1253, 7
      %v1255 = vsub.s32 0, %v1254
      %v1256 = vrot.slane %v1251, %v1255
      %v1258 = vmul.f32 %v1250, %v1256
      %v1259 = vld [vmem:[%s12] sm:$0x1]
      %v1261 = vlaneseq
      %v1262 = vshrl.u32 %v1261, 7
      %v1263 = vsub.s32 0, %v1262
      %v1264 = vrot.slane %v1259, %v1263
      %v1266 = vadd.f32 %v1258, %v1264
      %1267 = vst.msk [vmem:[%s497] sm:$0xff] %vm526, %v1266
      %p1268 = scmp.lt.s32.totalorder %s28, 1
      %s1269 = scalar_select %p1268, %s28, 1
      %p1270 = scmp.lt.s32.totalorder %s29, 0
      %s1271 = scalar_select %p1270, %s29, 0
      %s1272 = sadd.s32 %s1271, %s1269
      %s1273 = smul.addr %s1272, 8
      %s1274 = scalar_lea.vmem %s13, %s1273
      // Predicated region
      $region73: #{transformer_decoder.7} parent=71 // pred_check
        %p1275 = pneg %p346
      $region74: #{transformer_decoder.7} parent=71 // pred_check_branch
        %1277 = sbr.rel (%p1275) target = $region76
      $region75: #{transformer_decoder.7} parent=71 // pred_region
        _
      $region76: #{transformer_decoder.7} parent=71 // pred_fallthru
        _
    $region72: #{transformer_decoder.7} parent=5 // pred_fallthru
      _
    %p1278 = scmp.le.s32.totalorder 2, %s19
    // Predicated region
    $region77: #{transformer_decoder.7} parent=5 // pred_check
      %p1279 = pneg %p1278
    $region78: #{transformer_decoder.7} parent=5 // pred_check_branch
      %1281 = sbr.rel (%p1279) target = $region80
    $region79: #{transformer_decoder.7} parent=5 // pred_region
      %s1282 = ssub.s32 %s19, 2
      // Predicated region
      $region81: #{transformer_decoder.7} parent=79 // pred_check
        %p1283 = pneg %p352
      $region82: #{transformer_decoder.7} parent=79 // pred_check_branch
        %1285 = sbr.rel (%p1283) target = $region84
      $region83: #{transformer_decoder.7} parent=79 // pred_region
        %p1286 = scmp.lt.s32.totalorder %s30, 1
        %s1287 = scalar_select %p1286, %s30, 1
        %p1288 = scmp.lt.s32.totalorder %s31, 0
        %s1289 = scalar_select %p1288, %s31, 0
        %s1290 = sadd.s32 %s1289, %s1287
        %s1291 = smul.addr %s1290, 8
        %s1292 = scalar_lea.vmem %s13, %s1291
      $region84: #{transformer_decoder.7} parent=79 // pred_fallthru
        _
    $region80: #{transformer_decoder.7} parent=5 // pred_fallthru
      _
  $region6: #{transformer_decoder.7} parent=0 // loop_footer
    %s23 = sadd.s32 1, %s19
  $region7: #{transformer_decoder.7} parent=0 // loop_footer_branch
    %18 = sbr.rel target = $region3
  $region8: #{transformer_decoder.7} parent=0 // loop_exit
    _

// kernel: transformer_decoder.8
$region0: #{transformer_decoder.8}
  #allocation0 [shape = 'u32[]', space=smem, size = 0x4, offset = 0x4, fixed_abs, tag = 'smem constant byte address 0x4 - core index']
  #allocation1 [shape = 'u32[144,128]{1,0:T(1,128)}', space=vmem, size = 0x12000, scoped, tag = 'internal scratch']
  #allocation2 [shape = 'f32[16,32]{1,0:T(8,128)}', space=vmem, size = 0x2000, scoped, tag = 'scratch operand']
  %s0 = inlined_call_operand.vmem [shape: f32[16,32], index: 0, kind: input, shape index: {}]
  %s1 = inlined_call_operand.vmem [shape: bf16[32,64], index: 1, kind: input, shape index: {}]
  %s2 = inlined_call_operand.vmem [shape: f32[1,64], index: 2, kind: input, shape index: {}]
  %s3 = inlined_call_operand.vmem [shape: bf16[64,32], index: 3, kind: input, shape index: {}]
  %s4 = inlined_call_operand.vmem [shape: f32[1,32], index: 4, kind: input, shape index: {}]
  %s5 = inlined_call_operand.vmem [shape: f32[1,32], index: 5, kind: input, shape index: {}]
  %s6 = inlined_call_operand.vmem [shape: f32[1,32], index: 6, kind: input, shape index: {}]
  %s7 = inlined_call_operand.vmem [shape: f32[16,32], index: 7, kind: output, shape index: {}]
  %s8 = sld [smem:[#allocation0]]
  $region46: #{transformer_decoder.8} parent=0
    _
  %s10 = ssub.s32 1, %s8
  %s11 = scalar_select 0, %s10, %s8
  // Predicated region
  $region2: #{transformer_decoder.8} parent=0 // pred_check
    _
  $region3: #{transformer_decoder.8} parent=0 // pred_check_branch
    %13 = sbr.rel (0) target = $region5
  $region4: #{transformer_decoder.8} parent=0 // pred_region
    _
  $region5: #{transformer_decoder.8} parent=0 // pred_fallthru
    _
  // Predicated region
  $region6: #{transformer_decoder.8} parent=0 // pred_check
    _
  $region7: #{transformer_decoder.8} parent=0 // pred_check_branch
    %15 = sbr.rel (0) target = $region9
  $region8: #{transformer_decoder.8} parent=0 // pred_region
    _
  $region9: #{transformer_decoder.8} parent=0 // pred_fallthru
    _
  // Predicated region
  $region10: #{transformer_decoder.8} parent=0 // pred_check
    _
  $region11: #{transformer_decoder.8} parent=0 // pred_check_branch
    %17 = sbr.rel (0) target = $region13
  $region12: #{transformer_decoder.8} parent=0 // pred_region
    _
  $region13: #{transformer_decoder.8} parent=0 // pred_fallthru
    _
  // Predicated region
  $region14: #{transformer_decoder.8} parent=0 // pred_check
    _
  $region15: #{transformer_decoder.8} parent=0 // pred_check_branch
    %19 = sbr.rel (0) target = $region17
  $region16: #{transformer_decoder.8} parent=0 // pred_region
    _
  $region17: #{transformer_decoder.8} parent=0 // pred_fallthru
    _
  // Predicated region
  $region18: #{transformer_decoder.8} parent=0 // pred_check
    _
  $region19: #{transformer_decoder.8} parent=0 // pred_check_branch
    %21 = sbr.rel (0) target = $region21
  $region20: #{transformer_decoder.8} parent=0 // pred_region
    _
  $region21: #{transformer_decoder.8} parent=0 // pred_fallthru
    _
  // Predicated region
  $region22: #{transformer_decoder.8} parent=0 // pred_check
    _
  $region23: #{transformer_decoder.8} parent=0 // pred_check_branch
    %23 = sbr.rel (0) target = $region25
  $region24: #{transformer_decoder.8} parent=0 // pred_region
    _
  $region25: #{transformer_decoder.8} parent=0 // pred_fallthru
    _
  // Predicated region
  $region26: #{transformer_decoder.8} parent=0 // pred_check
    _
  $region27: #{transformer_decoder.8} parent=0 // pred_check_branch
    %25 = sbr.rel (0) target = $region29
  $region28: #{transformer_decoder.8} parent=0 // pred_region
    _
  $region29: #{transformer_decoder.8} parent=0 // pred_fallthru
    _
  %p27 = scmp.eq.s32.totalorder 0, 0
  // Predicated region
  $region30: #{transformer_decoder.8} parent=0 // pred_check
    %p28 = pneg %p27
  $region31: #{transformer_decoder.8} parent=0 // pred_check_branch
    %30 = sbr.rel (%p28) target = $region33
  $region32: #{transformer_decoder.8} parent=0 // pred_region
    %vm31 = vcmask 261120
    %32 = vst.msk [vmem:[#allocation2] sm:$0xff] %vm31, 0.0
    %33 = vst.msk [vmem:[#allocation2 + $0x8] sm:$0xff] %vm31, 0.0
  $region33: #{transformer_decoder.8} parent=0 // pred_fallthru
    _
  %v34 = vld [vmem:[%s0] sm:$0xff]
  %v35 = vld [vmem:[%s0 + $0x8] sm:$0xff]
  %v36 = vpack.c.bf16 %v35, %v34
  %v37 = vld [vmem:[%s1] sm:$0xf]
  %v38 = vld [vmem:[%s1 + $0x4] sm:$0xf]
  %v39 = vld [vmem:[%s1 + $0x8] sm:$0xf]
  %v40 = vld [vmem:[%s1 + $0xc] sm:$0xf]
  %v41 = vld [vmem:[%s2] sm:$0x1]
  %v43 = vlaneseq
  %v44 = vshrl.u32 %v43, 7
  %v45 = vsub.s32 0, %v44
  %v46 = vrot.slane %v41, %v45
  %v52 = vunpack.c.l.b16 %v37
  %v53 = vunpack.c.l.b16 %v38
  %v54 = vunpack.c.l.b16 %v39
  %v55 = vunpack.c.l.b16 %v40
  %v56 = vpack.c.b16 %v53, %v52
  %v57 = vpack.c.b16 %v55, %v54
  %vm60 = vcmask 261120
  %v62 = vsel %vm60, %v36, 0
  %64 = vmatprep.subr.bf16.mxu0 0
  %65 = vmatpush1.bf16.msra.mxu0 0
  %66 = vmatprep.subr.bf16.mxu0 0
  %67 = vmatpush1.bf16.msra.mxu0 0
  %68 = vmatprep.subr.bf16.mxu0 0
  %69 = vmatpush1.bf16.msra.mxu0 0
  %70 = vmatprep.subr.bf16.mxu0 0
  %71 = vmatpush1.bf16.msra.mxu0 0
  %72 = vmatprep.subr.bf16.mxu0 0
  %73 = vmatpush1.bf16.msra.mxu0 0
  %74 = vmatprep.subr.bf16.mxu0 0
  %75 = vmatpush1.bf16.msra.mxu0 0
  %76 = vmatprep.subr.bf16.mxu0 0
  %77 = vmatpush1.bf16.msra.mxu0 %v57
  %78 = vmatprep.subr.bf16.mxu0 0
  %79 = vmatpush1.bf16.msra.mxu0 %v56
  %80 = vmatprep.subr.bf16.mxu0 0
  %81 = vmatpush2.bf16.msra.mxu0 0
  %82 = vmatprep.subr.bf16.mxu0 0
  %83 = vmatpush2.bf16.msra.mxu0 0
  %84 = vmatprep.subr.bf16.mxu0 0
  %85 = vmatpush2.bf16.msra.mxu0 0
  %86 = vmatprep.subr.bf16.mxu0 0
  %87 = vmatpush2.bf16.msra.mxu0 0
  %88 = vmatprep.subr.bf16.mxu0 0
  %89 = vmatpush2.bf16.msra.mxu0 0
  %90 = vmatprep.subr.bf16.mxu0 0
  %91 = vmatpush2.bf16.msra.mxu0 0
  %92 = vmatprep.subr.bf16.mxu0 0
  %93 = vmatpush2.bf16.msra.mxu0 0
  %94 = vmatprep.subr.bf16.mxu0 0
  %95 = vmatpush2.bf16.msra.mxu0 0
  %96 = vmatprep.mubr.bf16.mxu0 0
  %97 = vmatmul.mubr.bf16.gmra.mxu0 %v62
  %v98 = vpop.f32.mrf.mxu0
  %v99 = vadd.f32 %v46, %v98
  %v100 = vpop.f32.mrf.mxu0
  %v101 = vpop.f32.mrf.mxu0
  %v102 = vadd.f32 %v46, %v101
  %v103 = vpop.f32.mrf.mxu0
  %104 = vdwg.mxu0
  %v105 = vmax.f32 %v99, 0.0
  %v106 = vmax.f32 %v102, 0.0
  %v107 = vld [vmem:[#allocation2] sm:$0xff]
  %v108 = vld [vmem:[#allocation2 + $0x8] sm:$0xff]
  %v109 = vpack.c.bf16 %v106, %v105
  %v110 = vld [vmem:[%s3] sm:$0xf]
  %v111 = vld [vmem:[%s3 + $0x4] sm:$0xf]
  %v112 = vld [vmem:[%s3 + $0x8] sm:$0xf]
  %v113 = vld [vmem:[%s3 + $0xc] sm:$0xf]
  %v114 = vld [vmem:[%s3 + $0x10] sm:$0xf]
  %v115 = vld [vmem:[%s3 + $0x14] sm:$0xf]
  %v116 = vld [vmem:[%s3 + $0x18] sm:$0xf]
  %v117 = vld [vmem:[%s3 + $0x1c] sm:$0xf]
  %v126 = vunpack.c.l.b16 %v110
  %v127 = vunpack.c.l.b16 %v111
  %v128 = vunpack.c.l.b16 %v112
  %v129 = vunpack.c.l.b16 %v113
  %v130 = vunpack.c.l.b16 %v114
  %v131 = vunpack.c.l.b16 %v115
  %v132 = vunpack.c.l.b16 %v116
  %v133 = vunpack.c.l.b16 %v117
  %v134 = vpack.c.b16 %v127, %v126
  %v135 = vpack.c.b16 %v129, %v128
  %v136 = vpack.c.b16 %v131, %v130
  %v137 = vpack.c.b16 %v133, %v132
  %vm142 = vcmask 523264
  %v144 = vsel %vm142, %v109, 0
  %146 = vmatprep.subr.bf16.mxu0 0
  %147 = vmatpush1.bf16.msra.mxu0 0
  %148 = vmatprep.subr.bf16.mxu0 0
  %149 = vmatpush1.bf16.msra.mxu0 0
  %150 = vmatprep.subr.bf16.mxu0 0
  %151 = vmatpush1.bf16.msra.mxu0 0
  %152 = vmatprep.subr.bf16.mxu0 0
  %153 = vmatpush1.bf16.msra.mxu0 0
  %154 = vmatprep.subr.bf16.mxu0 0
  %155 = vmatpush1.bf16.msra.mxu0 %v137
  %156 = vmatprep.subr.bf16.mxu0 0
  %157 = vmatpush1.bf16.msra.mxu0 %v136
  %158 = vmatprep.subr.bf16.mxu0 0
  %159 = vmatpush1.bf16.msra.mxu0 %v135
  %160 = vmatprep.subr.bf16.mxu0 0
  %161 = vmatpush1.bf16.msra.mxu0 %v134
  %162 = vmatprep.subr.bf16.mxu0 0
  %163 = vmatpush2.bf16.msra.mxu0 0
  %164 = vmatprep.subr.bf16.mxu0 0
  %165 = vmatpush2.bf16.msra.mxu0 0
  %166 = vmatprep.subr.bf16.mxu0 0
  %167 = vmatpush2.bf16.msra.mxu0 0
  %168 = vmatprep.subr.bf16.mxu0 0
  %169 = vmatpush2.bf16.msra.mxu0 0
  %170 = vmatprep.subr.bf16.mxu0 0
  %171 = vmatpush2.bf16.msra.mxu0 0
  %172 = vmatprep.subr.bf16.mxu0 0
  %173 = vmatpush2.bf16.msra.mxu0 0
  %174 = vmatprep.subr.bf16.mxu0 0
  %175 = vmatpush2.bf16.msra.mxu0 0
  %176 = vmatprep.subr.bf16.mxu0 0
  %177 = vmatpush2.bf16.msra.mxu0 0
  %178 = vmatprep.mubr.bf16.mxu0 0
  %179 = vmatmul.mubr.bf16.gmra.mxu0 %v144
  %v180 = vpop.f32.mrf.mxu0
  %v181 = vadd.f32 0.0, %v180
  %v182 = vpop.f32.mrf.mxu0
  %v183 = vpop.f32.mrf.mxu0
  %v184 = vadd.f32 0.0, %v183
  %v185 = vpop.f32.mrf.mxu0
  %186 = vdwg.mxu0
  %v187 = vadd.f32 %v107, %v181
  %v188 = vadd.f32 %v108, %v184
  %189 = vst.msk [vmem:[#allocation2] sm:$0xff] %vm60, %v187
  %190 = vst.msk [vmem:[#allocation2 + $0x8] sm:$0xff] %vm60, %v188
  // Predicated region
  $region34: #{transformer_decoder.8} parent=0 // pred_check
    %p191 = pneg %p27
  $region35: #{transformer_decoder.8} parent=0 // pred_check_branch
    %193 = sbr.rel (%p191) target = $region37
  $region36: #{transformer_decoder.8} parent=0 // pred_region
    %v194 = vld [vmem:[#allocation2] sm:$0xff]
    %v195 = vld [vmem:[#allocation2 + $0x8] sm:$0xff]
    %v196 = vld [vmem:[%s4] sm:$0x1]
    %v198 = vlaneseq
    %v199 = vshrl.u32 %v198, 7
    %v200 = vsub.s32 0, %v199
    %v201 = vrot.slane %v196, %v200
    %v203 = vadd.f32 %v194, %v201
    %v204 = vadd.f32 %v195, %v201
    %v205 = vadd.f32 %v203, %v34
    %v206 = vadd.f32 %v204, %v35
    %v207 = vsel %vm60, %v205, 0.0
    %208 = vadd.xlane.f32.xlu0 %v207
    %v209 = vpop.xlane.xlu0 %208
    %v210 = vsel %vm60, %v206, 0.0
    %211 = vadd.xlane.f32.xlu0 %v210
    %v212 = vpop.xlane.xlu0 %211
    %v213 = vrcp.pop 32.0
    %v214 = vmul.f32 %v209, %v213
    %v215 = vmul.f32 %v212, %v213
    %v216 = vsub.f32 %v205, %v214
    %v217 = vsub.f32 %v206, %v215
    %v218 = vmul.f32 %v216, %v216
    %v219 = vmul.f32 %v217, %v217
    %v220 = vsel %vm60, %v218, 0.0
    %221 = vadd.xlane.f32.xlu0 %v220
    %v222 = vpop.xlane.xlu0 %221
    %v223 = vsel %vm60, %v219, 0.0
    %224 = vadd.xlane.f32.xlu0 %v223
    %v225 = vpop.xlane.xlu0 %224
    %v226 = vmul.f32 %v222, %v213
    %v227 = vmul.f32 %v225, %v213
    %v228 = vadd.f32 %v226, 1e-05
    %v229 = vadd.f32 %v227, 1e-05
    %v230 = vrsqrt.pop %v228
    %v231 = vrsqrt.pop %v229
    %v232 = vmul.f32 %v216, %v230
    %v233 = vmul.f32 %v217, %v231
    %v234 = vld [vmem:[%s5] sm:$0x1]
    %v236 = vlaneseq
    %v237 = vshrl.u32 %v236, 7
    %v238 = vsub.s32 0, %v237
    %v239 = vrot.slane %v234, %v238
    %v241 = vmul.f32 %v232, %v239
    %v242 = vmul.f32 %v233, %v239
    %v243 = vld [vmem:[%s6] sm:$0x1]
    %v245 = vlaneseq
    %v246 = vshrl.u32 %v245, 7
    %v247 = vsub.s32 0, %v246
    %v248 = vrot.slane %v243, %v247
    %v250 = vadd.f32 %v241, %v248
    %v251 = vadd.f32 %v242, %v248
    %252 = vst.msk [vmem:[%s7] sm:$0xff] %vm60, %v250
    %253 = vst.msk [vmem:[%s7 + $0x8] sm:$0xff] %vm60, %v251
  $region37: #{transformer_decoder.8} parent=0 // pred_fallthru
    _
  // Predicated region
  $region38: #{transformer_decoder.8} parent=0 // pred_check
    _
  $region39: #{transformer_decoder.8} parent=0 // pred_check_branch
    %255 = sbr.rel (0) target = $region41
  $region40: #{transformer_decoder.8} parent=0 // pred_region
    _
  $region41: #{transformer_decoder.8} parent=0 // pred_fallthru
    _
  // Predicated region
  $region42: #{transformer_decoder.8} parent=0 // pred_check
    _
  $region43: #{transformer_decoder.8} parent=0 // pred_check_branch
    %257 = sbr.rel (0) target = $region45
  $region44: #{transformer_decoder.8} parent=0 // pred_region
    _
  $region45: #{transformer_decoder.8} parent=0 // pred_fallthru
    _

// kernel: transformer_decoder.6
$region0: #{transformer_decoder.6}
  #allocation0 [shape = 'u32[]', space=smem, size = 0x4, offset = 0x4, fixed_abs, tag = 'smem constant byte address 0x4 - core index']
  #allocation1 [shape = 'u32[144,128]{1,0:T(1,128)}', space=vmem, size = 0x12000, scoped, tag = 'internal scratch']
  #allocation2 [shape = 'f32[8,32]{1,0:T(8,128)}', space=vmem, size = 0x1000, scoped, tag = 'scratch operand']
  %s0 = inlined_call_operand.hbm [shape: f32[2,8,32], index: 0, kind: input, shape index: {}, may-alias: {0,1}]
  %s1 = inlined_call_operand.hbm [shape: f32[2,8,32], index: 1, kind: input, shape index: {}, may-alias: {0,1}]
  %s2 = inlined_call_operand.vmem [shape: bf16[32,32], index: 2, kind: input, shape index: {}]
  %s3 = inlined_call_operand.vmem [shape: f32[1,32], index: 3, kind: input, shape index: {}]
  %s4 = inlined_call_operand.vmem [shape: bf16[32,32], index: 4, kind: input, shape index: {}]
  %s5 = inlined_call_operand.hbm [shape: f32[1,32], index: 5, kind: input, shape index: {}]
  %s6 = inlined_call_operand.vmem [shape: bf16[32,32], index: 6, kind: input, shape index: {}]
  %s7 = inlined_call_operand.hbm [shape: f32[1,32], index: 7, kind: input, shape index: {}]
  %s8 = inlined_call_operand.hbm [shape: bf16[32,32], index: 8, kind: input, shape index: {}]
  %s9 = inlined_call_operand.hbm [shape: f32[1,32], index: 9, kind: input, shape index: {}]
  %s10 = inlined_call_operand.hbm [shape: f32[1,32], index: 10, kind: input, shape index: {}]
  %s11 = inlined_call_operand.hbm [shape: f32[1,32], index: 11, kind: input, shape index: {}]
  %s12 = inlined_call_operand.vmem [shape: f32[2,8,32], index: 12, kind: output, shape index: {}]
  %s13 = sld [smem:[#allocation0]]
  $region113: #{transformer_decoder.6} parent=0
    _
  %s15 = ssub.s32 1, %s13
  %s16 = scalar_select 0, %s15, %s13
  $region1: #{transformer_decoder.6} parent=0
    #allocation3 [shape = 'u8[8192]{0}', space=vmem, size = 0x2000, scoped, tag = 'input window, operand 0']
    #allocation4 [shape = 's32[2]{0}', space=sflag, size = 0x8, scoped, tag = 'scoped memory for transformer_decoder.6']
    #allocation5 [shape = 'u8[8192]{0}', space=vmem, size = 0x2000, scoped, tag = 'input window, operand 1']
    #allocation6 [shape = 's32[2]{0}', space=sflag, size = 0x8, scoped, tag = 'scoped memory for transformer_decoder.6']
    #allocation7 [shape = 'u8[512]{0}', space=vmem, size = 0x400, scoped, tag = 'input window, operand 5, single buffered']
    #allocation8 [shape = 'u8[512]{0}', space=vmem, size = 0x400, scoped, tag = 'input window, operand 7, single buffered']
    #allocation9 [shape = 's32[1]{0}', space=sflag, size = 0x4, scoped, tag = 'scoped memory for transformer_decoder.6']
    #allocation10 [shape = 'u8[8192]{0}', space=vmem, size = 0x2000, scoped, tag = 'input window, operand 8, single buffered']
    #allocation11 [shape = 'u8[512]{0}', space=vmem, size = 0x400, scoped, tag = 'input window, operand 9, single buffered']
    #allocation12 [shape = 's32[1]{0}', space=sflag, size = 0x4, scoped, tag = 'scoped memory for transformer_decoder.6']
    #allocation13 [shape = 'u8[512]{0}', space=vmem, size = 0x400, scoped, tag = 'input window, operand 10, single buffered']
    #allocation14 [shape = 'u8[512]{0}', space=vmem, size = 0x400, scoped, tag = 'input window, operand 11, single buffered']
    #allocation15 [shape = 's32[1]{0}', space=sflag, size = 0x4, scoped, tag = 'scoped memory for transformer_decoder.6']
    %17 = vsyncpa [#allocation4], 0
    %s18 = scalar_lea.sflag [#allocation4], 1
    %19 = vsyncpa %s18, 0
    %20 = vsyncpa [#allocation6], 0
    %s21 = scalar_lea.sflag [#allocation6], 1
    %22 = vsyncpa %s21, 0
    %23 = vsyncpa [#allocation9], 0
    %24 = vsyncpa [#allocation12], 0
    %25 = vsyncpa [#allocation15], 0
    loop: start=0, step=1, limit=4
    $region2: #{transformer_decoder.6} parent=1 // loop_pre_header
      _
    $region3: #{transformer_decoder.6} parent=1 // loop_header
      %s27 = sphi 0, %s31
      %p28 = scmp.ge.s32.totalorder %s27, 4
      %s34 = sphi 0, %s46
      %s35 = sphi 0, %s42
      %s36 = sphi 0, %s34
      %s37 = sphi 0, %s35
      %s38 = sphi 0, %s36
      %s39 = sphi 0, %s37
      %s51 = sphi 0, %s53
      %s54 = sphi 0, %s51
      %s55 = sphi 0, %s54
      %s71 = sphi 0, %s55
      %s77 = sphi 0, %s79
      %s80 = sphi 0, %s77
      %s81 = sphi 0, %s80
      %s97 = sphi 0, %s81
      %s101 = sphi 0, %s101
      %s103 = sphi 0, %s101
      %s104 = sphi 0, %s103
      %s118 = sphi 0, %s104
      %s122 = sphi 0, %s122
      %s124 = sphi 0, %s122
      %s125 = sphi 0, %s124
      %s139 = sphi 0, %s125
      %s143 = sphi 0, %s143
      %s145 = sphi 0, %s143
      %s146 = sphi 0, %s145
      %s160 = sphi 0, %s146
      %s164 = sphi 0, %s164
      %s166 = sphi 0, %s164
      %s167 = sphi 0, %s166
      %s181 = sphi 0, %s167
      %s185 = sphi 0, %s185
      %s187 = sphi 0, %s185
      %s188 = sphi 0, %s187
      %s202 = sphi 0, %s188
      %s206 = sphi 0, %s206
      %s208 = sphi 0, %s206
      %s209 = sphi 0, %s208
      %s223 = sphi 0, %s209
      %s227 = sphi 0, %s227
      %s229 = sphi 0, %s227
      %s230 = sphi 0, %s229
      %s244 = sphi 0, %s230
      %s248 = sphi 0, %s248
      %s250 = sphi 0, %s248
      %s251 = sphi 0, %s250
      %s265 = sphi 0, %s251
      %s269 = sphi 0, %s269
      %s271 = sphi 0, %s269
      %s272 = sphi 0, %s271
      %s286 = sphi 0, %s272
      %s290 = sphi 0, %s290
      %s292 = sphi 0, %s290
      %s293 = sphi 0, %s292
      %s307 = sphi 0, %s293
      %s315 = sphi 0, %s317
      %s318 = sphi 0, %s315
      %s319 = sphi 0, %s318
      %s335 = sphi 0, %s319
    $region4: #{transformer_decoder.6} parent=1 // loop_header_branch
      %30 = sbr.rel (%p28) target = $region8
    $region5: #{transformer_decoder.6} parent=1 // loop_body
      %s32 = ssub.s32 %s27, 1
      %s33 = ssub.s32 %s27, 2
      %s40 = sadd.s32 1, %s35
      %p41 = scmp.ge.s32.totalorder %s40, 1
      %s42 = scalar_select %p41, 0, %s40
      %s43 = sadd.s32 1, %s34
      %s44 = scalar_select %p41, %s43, %s34
      %p45 = scmp.ge.s32.totalorder %s44, 2
      %s46 = scalar_select %p45, 0, %s44
      %s47 = ssub.s32 %s34, %s46
      %s48 = ssub.s32 %s35, %s42
      %s49 = sor.u32 %s47, %s48
      %p50 = scmp.eq.s32.totalorder %s49, 0
      %s52 = sadd.s32 %s51, 1
      %s53 = scalar_select %p50, %s51, %s52
      %p56 = pneg %p50
      %p57 = scmp.eq.s32.totalorder %s27, 1
      %p58 = por %p56, %p57
      %p59 = scmp.ne.s32.totalorder %s51, %s54
      %p60 = scmp.eq.s32.totalorder %s27, 0
      %p61 = por %p59, %p60
      %p62 = scmp.ne.s32.totalorder %s51, %s54
      %p63 = scmp.eq.s32.totalorder %s32, 1
      %p64 = por %p62, %p63
      %p65 = scmp.ne.s32.totalorder %s54, %s55
      %p66 = scmp.eq.s32.totalorder %s32, 0
      %p67 = por %p65, %p66
      %p68 = scmp.ne.s32.totalorder %s54, %s55
      %p69 = scmp.eq.s32.totalorder %s33, 1
      %p70 = por %p68, %p69
      %p72 = scmp.ne.s32.totalorder %s55, %s71
      %p73 = scmp.eq.s32.totalorder %s33, 0
      %p74 = por %p72, %p73
      %s75 = ssub.s32 %s34, %s46
      %p76 = scmp.eq.s32.totalorder %s75, 0
      %s78 = sadd.s32 %s77, 1
      %s79 = scalar_select %p76, %s77, %s78
      %p82 = pneg %p76
      %p83 = scmp.eq.s32.totalorder %s27, 1
      %p84 = por %p82, %p83
      %p85 = scmp.ne.s32.totalorder %s77, %s80
      %p86 = scmp.eq.s32.totalorder %s27, 0
      %p87 = por %p85, %p86
      %p88 = scmp.ne.s32.totalorder %s77, %s80
      %p89 = scmp.eq.s32.totalorder %s32, 1
      %p90 = por %p88, %p89
      %p91 = scmp.ne.s32.totalorder %s80, %s81
      %p92 = scmp.eq.s32.totalorder %s32, 0
      %p93 = por %p91, %p92
      %p94 = scmp.ne.s32.totalorder %s80, %s81
      %p95 = scmp.eq.s32.totalorder %s33, 1
      %p96 = por %p94, %p95
      %p98 = scmp.ne.s32.totalorder %s81, %s97
      %p99 = scmp.eq.s32.totalorder %s33, 0
      %p100 = por %p98, %p99
      %s102 = sadd.s32 %s101, 1
      %p105 = scmp.eq.s32.totalorder %s27, 1
      %p106 = scmp.ne.s32.totalorder %s101, %s103
      %p107 = scmp.eq.s32.totalorder %s27, 0
      %p108 = por %p106, %p107
      %p109 = scmp.ne.s32.totalorder %s101, %s103
      %p110 = scmp.eq.s32.totalorder %s32, 1
      %p111 = por %p109, %p110
      %p112 = scmp.ne.s32.totalorder %s103, %s104
      %p113 = scmp.eq.s32.totalorder %s32, 0
      %p114 = por %p112, %p113
      %p115 = scmp.ne.s32.totalorder %s103, %s104
      %p116 = scmp.eq.s32.totalorder %s33, 1
      %p117 = por %p115, %p116
      %p119 = scmp.ne.s32.totalorder %s104, %s118
      %p120 = scmp.eq.s32.totalorder %s33, 0
      %p121 = por %p119, %p120
      %s123 = sadd.s32 %s122, 1
      %p126 = scmp.eq.s32.totalorder %s27, 1
      %p127 = scmp.ne.s32.totalorder %s122, %s124
      %p128 = scmp.eq.s32.totalorder %s27, 0
      %p129 = por %p127, %p128
      %p130 = scmp.ne.s32.totalorder %s122, %s124
      %p131 = scmp.eq.s32.totalorder %s32, 1
      %p132 = por %p130, %p131
      %p133 = scmp.ne.s32.totalorder %s124, %s125
      %p134 = scmp.eq.s32.totalorder %s32, 0
      %p135 = por %p133, %p134
      %p136 = scmp.ne.s32.totalorder %s124, %s125
      %p137 = scmp.eq.s32.totalorder %s33, 1
      %p138 = por %p136, %p137
      %p140 = scmp.ne.s32.totalorder %s125, %s139
      %p141 = scmp.eq.s32.totalorder %s33, 0
      %p142 = por %p140, %p141
      %s144 = sadd.s32 %s143, 1
      %p147 = scmp.eq.s32.totalorder %s27, 1
      %p148 = scmp.ne.s32.totalorder %s143, %s145
      %p149 = scmp.eq.s32.totalorder %s27, 0
      %p150 = por %p148, %p149
      %p151 = scmp.ne.s32.totalorder %s143, %s145
      %p152 = scmp.eq.s32.totalorder %s32, 1
      %p153 = por %p151, %p152
      %p154 = scmp.ne.s32.totalorder %s145, %s146
      %p155 = scmp.eq.s32.totalorder %s32, 0
      %p156 = por %p154, %p155
      %p157 = scmp.ne.s32.totalorder %s145, %s146
      %p158 = scmp.eq.s32.totalorder %s33, 1
      %p159 = por %p157, %p158
      %p161 = scmp.ne.s32.totalorder %s146, %s160
      %p162 = scmp.eq.s32.totalorder %s33, 0
      %p163 = por %p161, %p162
      %s165 = sadd.s32 %s164, 1
      %p168 = scmp.eq.s32.totalorder %s27, 1
      %p169 = scmp.ne.s32.totalorder %s164, %s166
      %p170 = scmp.eq.s32.totalorder %s27, 0
      %p171 = por %p169, %p170
      %p172 = scmp.ne.s32.totalorder %s164, %s166
      %p173 = scmp.eq.s32.totalorder %s32, 1
      %p174 = por %p172, %p173
      %p175 = scmp.ne.s32.totalorder %s166, %s167
      %p176 = scmp.eq.s32.totalorder %s32, 0
      %p177 = por %p175, %p176
      %p178 = scmp.ne.s32.totalorder %s166, %s167
      %p179 = scmp.eq.s32.totalorder %s33, 1
      %p180 = por %p178, %p179
      %p182 = scmp.ne.s32.totalorder %s167, %s181
      %p183 = scmp.eq.s32.totalorder %s33, 0
      %p184 = por %p182, %p183
      %s186 = sadd.s32 %s185, 1
      %p189 = scmp.eq.s32.totalorder %s27, 1
      %p190 = scmp.ne.s32.totalorder %s185, %s187
      %p191 = scmp.eq.s32.totalorder %s27, 0
      %p192 = por %p190, %p191
      %p193 = scmp.ne.s32.totalorder %s185, %s187
      %p194 = scmp.eq.s32.totalorder %s32, 1
      %p195 = por %p193, %p194
      %p196 = scmp.ne.s32.totalorder %s187, %s188
      %p197 = scmp.eq.s32.totalorder %s32, 0
      %p198 = por %p196, %p197
      %p199 = scmp.ne.s32.totalorder %s187, %s188
      %p200 = scmp.eq.s32.totalorder %s33, 1
      %p201 = por %p199, %p200
      %p203 = scmp.ne.s32.totalorder %s188, %s202
      %p204 = scmp.eq.s32.totalorder %s33, 0
      %p205 = por %p203, %p204
      %s207 = sadd.s32 %s206, 1
      %p210 = scmp.eq.s32.totalorder %s27, 1
      %p211 = scmp.ne.s32.totalorder %s206, %s208
      %p212 = scmp.eq.s32.totalorder %s27, 0
      %p213 = por %p211, %p212
      %p214 = scmp.ne.s32.totalorder %s206, %s208
      %p215 = scmp.eq.s32.totalorder %s32, 1
      %p216 = por %p214, %p215
      %p217 = scmp.ne.s32.totalorder %s208, %s209
      %p218 = scmp.eq.s32.totalorder %s32, 0
      %p219 = por %p217, %p218
      %p220 = scmp.ne.s32.totalorder %s208, %s209
      %p221 = scmp.eq.s32.totalorder %s33, 1
      %p222 = por %p220, %p221
      %p224 = scmp.ne.s32.totalorder %s209, %s223
      %p225 = scmp.eq.s32.totalorder %s33, 0
      %p226 = por %p224, %p225
      %s228 = sadd.s32 %s227, 1
      %p231 = scmp.eq.s32.totalorder %s27, 1
      %p232 = scmp.ne.s32.totalorder %s227, %s229
      %p233 = scmp.eq.s32.totalorder %s27, 0
      %p234 = por %p232, %p233
      %p235 = scmp.ne.s32.totalorder %s227, %s229
      %p236 = scmp.eq.s32.totalorder %s32, 1
      %p237 = por %p235, %p236
      %p238 = scmp.ne.s32.totalorder %s229, %s230
      %p239 = scmp.eq.s32.totalorder %s32, 0
      %p240 = por %p238, %p239
      %p241 = scmp.ne.s32.totalorder %s229, %s230
      %p242 = scmp.eq.s32.totalorder %s33, 1
      %p243 = por %p241, %p242
      %p245 = scmp.ne.s32.totalorder %s230, %s244
      %p246 = scmp.eq.s32.totalorder %s33, 0
      %p247 = por %p245, %p246
      %s249 = sadd.s32 %s248, 1
      %p252 = scmp.eq.s32.totalorder %s27, 1
      %p253 = scmp.ne.s32.totalorder %s248, %s250
      %p254 = scmp.eq.s32.totalorder %s27, 0
      %p255 = por %p253, %p254
      %p256 = scmp.ne.s32.totalorder %s248, %s250
      %p257 = scmp.eq.s32.totalorder %s32, 1
      %p258 = por %p256, %p257
      %p259 = scmp.ne.s32.totalorder %s250, %s251
      %p260 = scmp.eq.s32.totalorder %s32, 0
      %p261 = por %p259, %p260
      %p262 = scmp.ne.s32.totalorder %s250, %s251
      %p263 = scmp.eq.s32.totalorder %s33, 1
      %p264 = por %p262, %p263
      %p266 = scmp.ne.s32.totalorder %s251, %s265
      %p267 = scmp.eq.s32.totalorder %s33, 0
      %p268 = por %p266, %p267
      %s270 = sadd.s32 %s269, 1
      %p273 = scmp.eq.s32.totalorder %s27, 1
      %p274 = scmp.ne.s32.totalorder %s269, %s271
      %p275 = scmp.eq.s32.totalorder %s27, 0
      %p276 = por %p274, %p275
      %p277 = scmp.ne.s32.totalorder %s269, %s271
      %p278 = scmp.eq.s32.totalorder %s32, 1
      %p279 = por %p277, %p278
      %p280 = scmp.ne.s32.totalorder %s271, %s272
      %p281 = scmp.eq.s32.totalorder %s32, 0
      %p282 = por %p280, %p281
      %p283 = scmp.ne.s32.totalorder %s271, %s272
      %p284 = scmp.eq.s32.totalorder %s33, 1
      %p285 = por %p283, %p284
      %p287 = scmp.ne.s32.totalorder %s272, %s286
      %p288 = scmp.eq.s32.totalorder %s33, 0
      %p289 = por %p287, %p288
      %s291 = sadd.s32 %s290, 1
      %p294 = scmp.eq.s32.totalorder %s27, 1
      %p295 = scmp.ne.s32.totalorder %s290, %s292
      %p296 = scmp.eq.s32.totalorder %s27, 0
      %p297 = por %p295, %p296
      %p298 = scmp.ne.s32.totalorder %s290, %s292
      %p299 = scmp.eq.s32.totalorder %s32, 1
      %p300 = por %p298, %p299
      %p301 = scmp.ne.s32.totalorder %s292, %s293
      %p302 = scmp.eq.s32.totalorder %s32, 0
      %p303 = por %p301, %p302
      %p304 = scmp.ne.s32.totalorder %s292, %s293
      %p305 = scmp.eq.s32.totalorder %s33, 1
      %p306 = por %p304, %p305
      %p308 = scmp.ne.s32.totalorder %s293, %s307
      %p309 = scmp.eq.s32.totalorder %s33, 0
      %p310 = por %p308, %p309
      %s311 = ssub.s32 %s34, %s46
      %s312 = ssub.s32 %s35, %s42
      %s313 = sor.u32 %s311, %s312
      %p314 = scmp.eq.s32.totalorder %s313, 0
      %s316 = sadd.s32 %s315, 1
      %s317 = scalar_select %p314, %s315, %s316
      %p320 = pneg %p314
      %p321 = scmp.eq.s32.totalorder %s27, 1
      %p322 = por %p320, %p321
      %p323 = scmp.ne.s32.totalorder %s315, %s318
      %p324 = scmp.eq.s32.totalorder %s27, 0
      %p325 = por %p323, %p324
      %p326 = scmp.ne.s32.totalorder %s315, %s318
      %p327 = scmp.eq.s32.totalorder %s32, 1
      %p328 = por %p326, %p327
      %p329 = scmp.ne.s32.totalorder %s318, %s319
      %p330 = scmp.eq.s32.totalorder %s32, 0
      %p331 = por %p329, %p330
      %p332 = scmp.ne.s32.totalorder %s318, %s319
      %p333 = scmp.eq.s32.totalorder %s33, 1
      %p334 = por %p332, %p333
      %p336 = scmp.ne.s32.totalorder %s319, %s335
      %p337 = scmp.eq.s32.totalorder %s33, 0
      %p338 = por %p336, %p337
      %p339 = scmp.le.s32.totalorder 1, %s27
      %p340 = scmp.lt.s32.totalorder %s27, 3
      %p341 = pnand %p339, %p340
      %p342 = pneg %p341
      // Predicated region
      $region9: #{transformer_decoder.6} parent=5 // pred_check
        _
      $region10: #{transformer_decoder.6} parent=5 // pred_check_branch
        %344 = sbr.rel (%p341) target = $region12
      $region11: #{transformer_decoder.6} parent=5 // pred_region
        %s345 = ssub.s32 %s27, 1
        // Predicated region
        $region13: #{transformer_decoder.6} parent=11 // pred_check
          %p346 = pneg %p114
        $region14: #{transformer_decoder.6} parent=11 // pred_check_branch
          %348 = sbr.rel (%p346) target = $region16
        $region15: #{transformer_decoder.6} parent=11 // pred_region
          _
        $region16: #{transformer_decoder.6} parent=11 // pred_fallthru
          _
        // Predicated region
        $region17: #{transformer_decoder.6} parent=11 // pred_check
          %p349 = pneg %p135
        $region18: #{transformer_decoder.6} parent=11 // pred_check_branch
          %351 = sbr.rel (%p349) target = $region20
        $region19: #{transformer_decoder.6} parent=11 // pred_region
          _
        $region20: #{transformer_decoder.6} parent=11 // pred_fallthru
          _
        // Predicated region
        $region21: #{transformer_decoder.6} parent=11 // pred_check
          %p352 = pneg %p156
        $region22: #{transformer_decoder.6} parent=11 // pred_check_branch
          %354 = sbr.rel (%p352) target = $region24
        $region23: #{transformer_decoder.6} parent=11 // pred_region
          _
        $region24: #{transformer_decoder.6} parent=11 // pred_fallthru
          _
        // Predicated region
        $region25: #{transformer_decoder.6} parent=11 // pred_check
          %p355 = pneg %p177
        $region26: #{transformer_decoder.6} parent=11 // pred_check_branch
          %357 = sbr.rel (%p355) target = $region28
        $region27: #{transformer_decoder.6} parent=11 // pred_region
          %s359 = ssub.s32 16, 16
          %360 = vsyncadd [#allocation6], %s359
          %s362 = sshll.u32 [#allocation7], 4
          %s363 = int_to_ptr.vmem [resolvable:$true] %s362
          %365 = dma.hbm_to_vmem [thread:$0]  %s5, 16, %s363, [#allocation6]
        $region28: #{transformer_decoder.6} parent=11 // pred_fallthru
          _
        // Predicated region
        $region29: #{transformer_decoder.6} parent=11 // pred_check
          %p366 = pneg %p198
        $region30: #{transformer_decoder.6} parent=11 // pred_check_branch
          %368 = sbr.rel (%p366) target = $region32
        $region31: #{transformer_decoder.6} parent=11 // pred_region
          _
        $region32: #{transformer_decoder.6} parent=11 // pred_fallthru
          _
        // Predicated region
        $region33: #{transformer_decoder.6} parent=11 // pred_check
          %p369 = pneg %p219
        $region34: #{transformer_decoder.6} parent=11 // pred_check_branch
          %371 = sbr.rel (%p369) target = $region36
        $region35: #{transformer_decoder.6} parent=11 // pred_region
          %s373 = ssub.s32 16, 16
          %374 = vsyncadd [#allocation9], %s373
          %s376 = sshll.u32 [#allocation8], 4
          %s377 = int_to_ptr.vmem [resolvable:$true] %s376
          %379 = dma.hbm_to_vmem [thread:$0]  %s7, 16, %s377, [#allocation9]
        $region36: #{transformer_decoder.6} parent=11 // pred_fallthru
          _
        // Predicated region
        $region37: #{transformer_decoder.6} parent=11 // pred_check
          %p380 = pneg %p240
        $region38: #{transformer_decoder.6} parent=11 // pred_check_branch
          %382 = sbr.rel (%p380) target = $region40
        $region39: #{transformer_decoder.6} parent=11 // pred_region
          %s384 = ssub.s32 256, 256
          %385 = vsyncadd [#allocation9], %s384
          %s386 = sshll.u32 [#allocation10], 4
          %s387 = int_to_ptr.vmem [resolvable:$true] %s386
          %392 = dma.hbm_to_vmem [thread:$0]  %s8, 256, %s387, [#allocation9], 64, 64, 4
        $region40: #{transformer_decoder.6} parent=11 // pred_fallthru
          _
        // Predicated region
        $region41: #{transformer_decoder.6} parent=11 // pred_check
          %p393 = pneg %p261
        $region42: #{transformer_decoder.6} parent=11 // pred_check_branch
          %395 = sbr.rel (%p393) target = $region44
        $region43: #{transformer_decoder.6} parent=11 // pred_region
          %s397 = ssub.s32 16, 16
          %398 = vsyncadd [#allocation12], %s397
          %s400 = sshll.u32 [#allocation11], 4
          %s401 = int_to_ptr.vmem [resolvable:$true] %s400
          %403 = dma.hbm_to_vmem [thread:$0]  %s9, 16, %s401, [#allocation12]
        $region44: #{transformer_decoder.6} parent=11 // pred_fallthru
          _
        // Predicated region
        $region45: #{transformer_decoder.6} parent=11 // pred_check
          %p404 = pneg %p282
        $region46: #{transformer_decoder.6} parent=11 // pred_check_branch
          %406 = sbr.rel (%p404) target = $region48
        $region47: #{transformer_decoder.6} parent=11 // pred_region
          %s408 = ssub.s32 16, 16
          %409 = vsyncadd [#allocation12], %s408
          %s411 = sshll.u32 [#allocation13], 4
          %s412 = int_to_ptr.vmem [resolvable:$true] %s411
          %414 = dma.hbm_to_vmem [thread:$0]  %s10, 16, %s412, [#allocation12]
        $region48: #{transformer_decoder.6} parent=11 // pred_fallthru
          _
        // Predicated region
        $region49: #{transformer_decoder.6} parent=11 // pred_check
          %p415 = pneg %p303
        $region50: #{transformer_decoder.6} parent=11 // pred_check_branch
          %417 = sbr.rel (%p415) target = $region52
        $region51: #{transformer_decoder.6} parent=11 // pred_region
          %s419 = ssub.s32 16, 16
          %420 = vsyncadd [#allocation15], %s419
          %s422 = sshll.u32 [#allocation14], 4
          %s423 = int_to_ptr.vmem [resolvable:$true] %s422
          %425 = dma.hbm_to_vmem [thread:$0]  %s11, 16, %s423, [#allocation15]
        $region52: #{transformer_decoder.6} parent=11 // pred_fallthru
          _
      $region12: #{transformer_decoder.6} parent=5 // pred_fallthru
        _
      %p426 = scmp.lt.s32.totalorder %s27, 2
      // Predicated region
      $region53: #{transformer_decoder.6} parent=5 // pred_check
        %p427 = pneg %p426
      $region54: #{transformer_decoder.6} parent=5 // pred_check_branch
        %429 = sbr.rel (%p427) target = $region56
      $region55: #{transformer_decoder.6} parent=5 // pred_region
        // Predicated region
        $region57: #{transformer_decoder.6} parent=55 // pred_check
          %p430 = pneg %p61
        $region58: #{transformer_decoder.6} parent=55 // pred_check_branch
          %432 = sbr.rel (%p430) target = $region60
        $region59: #{transformer_decoder.6} parent=55 // pred_region
          %s433 = sand.u32 %s51, 1
          %s434 = scalar_lea.sflag [#allocation4], %s433
          %s435 = sand.u32 %s51, 1
          %s436 = smul.addr %s435, 8
          %s437 = scalar_lea.vmem [#allocation3], %s436
          %s439 = ssub.s32 128, 128
          %440 = vsyncadd %s434, %s439
          %s441 = sadd.s32 %s35, %s34
          %s442 = smul.addr %s441, 128
          %s443 = scalar_lea.hbm %s0, %s442
          %s445 = sshll.u32 %s437, 4
          %s446 = int_to_ptr.vmem [resolvable:$true] %s445
          %448 = dma.hbm_to_vmem [thread:$0]  %s443, 128, %s446, %s434
        $region60: #{transformer_decoder.6} parent=55 // pred_fallthru
          _
        // Predicated region
        $region61: #{transformer_decoder.6} parent=55 // pred_check
          %p449 = pneg %p87
        $region62: #{transformer_decoder.6} parent=55 // pred_check_branch
          %451 = sbr.rel (%p449) target = $region64
        $region63: #{transformer_decoder.6} parent=55 // pred_region
          %s452 = sand.u32 %s27, 1
          %s453 = scalar_lea.sflag [#allocation6], %s452
          %s454 = sand.u32 %s77, 1
          %s455 = smul.addr %s454, 8
          %s456 = scalar_lea.vmem [#allocation5], %s455
          %s458 = ssub.s32 128, 128
          %459 = vsyncadd %s453, %s458
          %s460 = smul.addr %s34, 128
          %s461 = scalar_lea.hbm %s1, %s460
          %s463 = sshll.u32 %s456, 4
          %s464 = int_to_ptr.vmem [resolvable:$true] %s463
          %466 = dma.hbm_to_vmem [thread:$0]  %s461, 128, %s464, %s453
        $region64: #{transformer_decoder.6} parent=55 // pred_fallthru
          _
      $region56: #{transformer_decoder.6} parent=5 // pred_fallthru
        _
      %p467 = scmp.le.s32.totalorder 1, %s27
      %p468 = scmp.lt.s32.totalorder %s27, 3
      %p469 = pnand %p467, %p468
      %p470 = pneg %p469
      // Predicated region
      $region65: #{transformer_decoder.6} parent=5 // pred_check
        _
      $region66: #{transformer_decoder.6} parent=5 // pred_check_branch
        %472 = sbr.rel (%p469) target = $region68
      $region67: #{transformer_decoder.6} parent=5 // pred_region
        %s473 = ssub.s32 %s27, 1
        %s474 = sand.u32 %s54, 1
        %s475 = scalar_lea.sflag [#allocation4], %s474
        %s476 = sand.u32 %s54, 1
        %s477 = smul.addr %s476, 8
        %s478 = scalar_lea.vmem [#allocation3], %s477
        // Predicated region
        $region69: #{transformer_decoder.6} parent=67 // pred_check
          %p479 = pneg %p67
        $region70: #{transformer_decoder.6} parent=67 // pred_check_branch
          %481 = sbr.rel (%p479) target = $region72
        $region71: #{transformer_decoder.6} parent=67 // pred_region
          %482 = dma.done %s475, 128
        $region72: #{transformer_decoder.6} parent=67 // pred_fallthru
          _
        %s483 = sand.u32 %s32, 1
        %s484 = scalar_lea.sflag [#allocation6], %s483
        %s485 = sand.u32 %s80, 1
        %s486 = smul.addr %s485, 8
        %s487 = scalar_lea.vmem [#allocation5], %s486
        // Predicated region
        $region73: #{transformer_decoder.6} parent=67 // pred_check
          %p488 = pneg %p93
        $region74: #{transformer_decoder.6} parent=67 // pred_check_branch
          %490 = sbr.rel (%p488) target = $region76
        $region75: #{transformer_decoder.6} parent=67 // pred_region
          %491 = dma.done %s484, 128
        $region76: #{transformer_decoder.6} parent=67 // pred_fallthru
          _
        // Predicated region
        $region77: #{transformer_decoder.6} parent=67 // pred_check
          %p492 = pneg %p177
        $region78: #{transformer_decoder.6} parent=67 // pred_check_branch
          %494 = sbr.rel (%p492) target = $region80
        $region79: #{transformer_decoder.6} parent=67 // pred_region
          %495 = dma.done [#allocation6], 16
        $region80: #{transformer_decoder.6} parent=67 // pred_fallthru
          _
        // Predicated region
        $region81: #{transformer_decoder.6} parent=67 // pred_check
          %p496 = pneg %p219
        $region82: #{transformer_decoder.6} parent=67 // pred_check_branch
          %498 = sbr.rel (%p496) target = $region84
        $region83: #{transformer_decoder.6} parent=67 // pred_region
          %499 = dma.done [#allocation9], 16
        $region84: #{transformer_decoder.6} parent=67 // pred_fallthru
          _
        // Predicated region
        $region85: #{transformer_decoder.6} parent=67 // pred_check
          %p500 = pneg %p240
        $region86: #{transformer_decoder.6} parent=67 // pred_check_branch
          %502 = sbr.rel (%p500) target = $region88
        $region87: #{transformer_decoder.6} parent=67 // pred_region
          %503 = dma.done [#allocation9], 256
        $region88: #{transformer_decoder.6} parent=67 // pred_fallthru
          _
        // Predicated region
        $region89: #{transformer_decoder.6} parent=67 // pred_check
          %p504 = pneg %p261
        $region90: #{transformer_decoder.6} parent=67 // pred_check_branch
          %506 = sbr.rel (%p504) target = $region92
        $region91: #{transformer_decoder.6} parent=67 // pred_region
          %507 = dma.done [#allocation12], 16
        $region92: #{transformer_decoder.6} parent=67 // pred_fallthru
          _
        // Predicated region
        $region93: #{transformer_decoder.6} parent=67 // pred_check
          %p508 = pneg %p282
        $region94: #{transformer_decoder.6} parent=67 // pred_check_branch
          %510 = sbr.rel (%p508) target = $region96
        $region95: #{transformer_decoder.6} parent=67 // pred_region
          %511 = dma.done [#allocation12], 16
        $region96: #{transformer_decoder.6} parent=67 // pred_fallthru
          _
        // Predicated region
        $region97: #{transformer_decoder.6} parent=67 // pred_check
          %p512 = pneg %p303
        $region98: #{transformer_decoder.6} parent=67 // pred_check_branch
          %514 = sbr.rel (%p512) target = $region100
        $region99: #{transformer_decoder.6} parent=67 // pred_region
          %515 = dma.done [#allocation15], 16
        $region100: #{transformer_decoder.6} parent=67 // pred_fallthru
          _
        %s516 = sand.u32 %s54, 1
        %s517 = scalar_lea.sflag [#allocation4], %s516
        %s518 = sand.u32 %s54, 1
        %s519 = smul.addr %s518, 8
        %s520 = scalar_lea.vmem [#allocation3], %s519
        %p521 = pneg %p67
        %p522 = pneg %p64
        %s523 = sand.u32 %s32, 1
        %s524 = scalar_lea.sflag [#allocation6], %s523
        %s525 = sand.u32 %s80, 1
        %s526 = smul.addr %s525, 8
        %s527 = scalar_lea.vmem [#allocation5], %s526
        %p528 = pneg %p93
        %p529 = pneg %p90
        %p530 = pneg %p114
        %p531 = pneg %p111
        %p532 = pneg %p135
        %p533 = pneg %p132
        %p534 = pneg %p156
        %p535 = pneg %p153
        %p536 = pneg %p177
        %p537 = pneg %p174
        %p538 = pneg %p198
        %p539 = pneg %p195
        %p540 = pneg %p219
        %p541 = pneg %p216
        %p542 = pneg %p240
        %p543 = pneg %p237
        %p544 = pneg %p261
        %p545 = pneg %p258
        %p546 = pneg %p282
        %p547 = pneg %p279
        %p548 = pneg %p303
        %p549 = pneg %p300
        %p550 = pneg %p331
        %p551 = pneg %p328
        %p552 = scmp.lt.s32.totalorder %s36, 1
        %s553 = scalar_select %p552, %s36, 1
        %p554 = scmp.lt.s32.totalorder %s37, 0
        %s555 = scalar_select %p554, %s37, 0
        %s556 = sadd.s32 %s555, %s553
        %s557 = smul.addr %s556, 8
        %s558 = scalar_lea.vmem %s12, %s557
        %p559 = scmp.lt.s32.totalorder %s36, 1
        %s560 = scalar_select %p559, %s36, 1
        %p561 = scmp.lt.s32.totalorder %s37, 0
        %s562 = scalar_select %p561, %s37, 0
        %s563 = sadd.s32 %s562, %s560
        %s564 = smul.addr %s563, 8
        %s565 = scalar_lea.vmem %s12, %s564
        %v567 = vld [vmem:[%s478] sm:$0xff]
        %v568 = vld [vmem:[%s487] sm:$0xff]
        %v569 = vpack.c.bf16 %v567, %v567
        %v570 = vpack.c.bf16 %v568, %v568
        %v571 = vld [vmem:[%s2] sm:$0xf]
        %v572 = vld [vmem:[%s2 + $0x4] sm:$0xf]
        %v573 = vld [vmem:[%s2 + $0x8] sm:$0xf]
        %v574 = vld [vmem:[%s2 + $0xc] sm:$0xf]
        %v575 = vld [vmem:[%s3] sm:$0x1]
        %v577 = vlaneseq
        %v578 = vshrl.u32 %v577, 7
        %v579 = vsub.s32 0, %v578
        %v580 = vrot.slane %v575, %v579
        %v586 = vunpack.c.l.b16 %v571
        %v587 = vunpack.c.l.b16 %v572
        %v588 = vunpack.c.l.b16 %v573
        %v589 = vunpack.c.l.b16 %v574
        %v590 = vpack.c.b16 %v587, %v586
        %v591 = vpack.c.b16 %v589, %v588
        %vm594 = vcmask 261120
        %v596 = vsel %vm594, %v569, 0
        %598 = vmatprep.subr.bf16.mxu0 0
        %599 = vmatpush1.bf16.msra.mxu0 0
        %600 = vmatprep.subr.bf16.mxu0 0
        %601 = vmatpush1.bf16.msra.mxu0 0
        %602 = vmatprep.subr.bf16.mxu0 0
        %603 = vmatpush1.bf16.msra.mxu0 0
        %604 = vmatprep.subr.bf16.mxu0 0
        %605 = vmatpush1.bf16.msra.mxu0 0
        %606 = vmatprep.subr.bf16.mxu0 0
        %607 = vmatpush1.bf16.msra.mxu0 0
        %608 = vmatprep.subr.bf16.mxu0 0
        %609 = vmatpush1.bf16.msra.mxu0 0
        %610 = vmatprep.subr.bf16.mxu0 0
        %611 = vmatpush1.bf16.msra.mxu0 %v591
        %612 = vmatprep.subr.bf16.mxu0 0
        %613 = vmatpush1.bf16.msra.mxu0 %v590
        %614 = vmatprep.subr.bf16.mxu0 0
        %615 = vmatpush2.bf16.msra.mxu0 0
        %616 = vmatprep.subr.bf16.mxu0 0
        %617 = vmatpush2.bf16.msra.mxu0 0
        %618 = vmatprep.subr.bf16.mxu0 0
        %619 = vmatpush2.bf16.msra.mxu0 0
        %620 = vmatprep.subr.bf16.mxu0 0
        %621 = vmatpush2.bf16.msra.mxu0 0
        %622 = vmatprep.subr.bf16.mxu0 0
        %623 = vmatpush2.bf16.msra.mxu0 0
        %624 = vmatprep.subr.bf16.mxu0 0
        %625 = vmatpush2.bf16.msra.mxu0 0
        %626 = vmatprep.subr.bf16.mxu0 0
        %627 = vmatpush2.bf16.msra.mxu0 0
        %628 = vmatprep.subr.bf16.mxu0 0
        %629 = vmatpush2.bf16.msra.mxu0 0
        %630 = vmatprep.mubr.bf16.mxu0 0
        %631 = vmatmul.mubr.bf16.gmra.mxu0 %v596
        %v632 = vpop.f32.mrf.mxu0
        %v633 = vadd.f32 %v580, %v632
        %v634 = vpop.f32.mrf.mxu0
        %v635 = vpop.f32.mrf.mxu0
        %v636 = vpop.f32.mrf.mxu0
        %637 = vdwg.mxu0
        %v638 = vld [vmem:[%s4] sm:$0xf]
        %v639 = vld [vmem:[%s4 + $0x4] sm:$0xf]
        %v640 = vld [vmem:[%s4 + $0x8] sm:$0xf]
        %v641 = vld [vmem:[%s4 + $0xc] sm:$0xf]
        %v642 = vld [vmem:[#allocation7] sm:$0x1]
        %v644 = vlaneseq
        %v645 = vshrl.u32 %v644, 7
        %v646 = vsub.s32 0, %v645
        %v647 = vrot.slane %v642, %v646
        %v653 = vunpack.c.l.b16 %v638
        %v654 = vunpack.c.l.b16 %v639
        %v655 = vunpack.c.l.b16 %v640
        %v656 = vunpack.c.l.b16 %v641
        %v657 = vpack.c.b16 %v654, %v653
        %v658 = vpack.c.b16 %v656, %v655
        %v662 = vsel %vm594, %v570, 0
        %664 = vmatprep.subr.bf16.mxu0 0
        %665 = vmatpush1.bf16.msra.mxu0 0
        %666 = vmatprep.subr.bf16.mxu0 0
        %667 = vmatpush1.bf16.msra.mxu0 0
        %668 = vmatprep.subr.bf16.mxu0 0
        %669 = vmatpush1.bf16.msra.mxu0 0
        %670 = vmatprep.subr.bf16.mxu0 0
        %671 = vmatpush1.bf16.msra.mxu0 0
        %672 = vmatprep.subr.bf16.mxu0 0
        %673 = vmatpush1.bf16.msra.mxu0 0
        %674 = vmatprep.subr.bf16.mxu0 0
        %675 = vmatpush1.bf16.msra.mxu0 0
        %676 = vmatprep.subr.bf16.mxu0 0
        %677 = vmatpush1.bf16.msra.mxu0 %v658
        %678 = vmatprep.subr.bf16.mxu0 0
        %679 = vmatpush1.bf16.msra.mxu0 %v657
        %680 = vmatprep.subr.bf16.mxu0 0
        %681 = vmatpush2.bf16.msra.mxu0 0
        %682 = vmatprep.subr.bf16.mxu0 0
        %683 = vmatpush2.bf16.msra.mxu0 0
        %684 = vmatprep.subr.bf16.mxu0 0
        %685 = vmatpush2.bf16.msra.mxu0 0
        %686 = vmatprep.subr.bf16.mxu0 0
        %687 = vmatpush2.bf16.msra.mxu0 0
        %688 = vmatprep.subr.bf16.mxu0 0
        %689 = vmatpush2.bf16.msra.mxu0 0
        %690 = vmatprep.subr.bf16.mxu0 0
        %691 = vmatpush2.bf16.msra.mxu0 0
        %692 = vmatprep.subr.bf16.mxu0 0
        %693 = vmatpush2.bf16.msra.mxu0 0
        %694 = vmatprep.subr.bf16.mxu0 0
        %695 = vmatpush2.bf16.msra.mxu0 0
        %696 = vmatprep.mubr.bf16.mxu0 0
        %697 = vmatmul.mubr.bf16.gmra.mxu0 %v662
        %v698 = vpop.f32.mrf.mxu0
        %v699 = vadd.f32 %v647, %v698
        %v700 = vpop.f32.mrf.mxu0
        %v701 = vpop.f32.mrf.mxu0
        %v702 = vpop.f32.mrf.mxu0
        %703 = vdwg.mxu0
        %v704 = vld [vmem:[%s6] sm:$0xf]
        %v705 = vld [vmem:[%s6 + $0x4] sm:$0xf]
        %v706 = vld [vmem:[%s6 + $0x8] sm:$0xf]
        %v707 = vld [vmem:[%s6 + $0xc] sm:$0xf]
        %v708 = vld [vmem:[#allocation8] sm:$0x1]
        %v710 = vlaneseq
        %v711 = vshrl.u32 %v710, 7
        %v712 = vsub.s32 0, %v711
        %v713 = vrot.slane %v708, %v712
        %v719 = vunpack.c.l.b16 %v704
        %v720 = vunpack.c.l.b16 %v705
        %v721 = vunpack.c.l.b16 %v706
        %v722 = vunpack.c.l.b16 %v707
        %v723 = vpack.c.b16 %v720, %v719
        %v724 = vpack.c.b16 %v722, %v721
        %727 = vmatprep.subr.bf16.mxu0 0
        %728 = vmatpush1.bf16.msra.mxu0 0
        %729 = vmatprep.subr.bf16.mxu0 0
        %730 = vmatpush1.bf16.msra.mxu0 0
        %731 = vmatprep.subr.bf16.mxu0 0
        %732 = vmatpush1.bf16.msra.mxu0 0
        %733 = vmatprep.subr.bf16.mxu0 0
        %734 = vmatpush1.bf16.msra.mxu0 0
        %735 = vmatprep.subr.bf16.mxu0 0
        %736 = vmatpush1.bf16.msra.mxu0 0
        %737 = vmatprep.subr.bf16.mxu0 0
        %738 = vmatpush1.bf16.msra.mxu0 0
        %739 = vmatprep.subr.bf16.mxu0 0
        %740 = vmatpush1.bf16.msra.mxu0 %v724
        %741 = vmatprep.subr.bf16.mxu0 0
        %742 = vmatpush1.bf16.msra.mxu0 %v723
        %743 = vmatprep.subr.bf16.mxu0 0
        %744 = vmatpush2.bf16.msra.mxu0 0
        %745 = vmatprep.subr.bf16.mxu0 0
        %746 = vmatpush2.bf16.msra.mxu0 0
        %747 = vmatprep.subr.bf16.mxu0 0
        %748 = vmatpush2.bf16.msra.mxu0 0
        %749 = vmatprep.subr.bf16.mxu0 0
        %750 = vmatpush2.bf16.msra.mxu0 0
        %751 = vmatprep.subr.bf16.mxu0 0
        %752 = vmatpush2.bf16.msra.mxu0 0
        %753 = vmatprep.subr.bf16.mxu0 0
        %754 = vmatpush2.bf16.msra.mxu0 0
        %755 = vmatprep.subr.bf16.mxu0 0
        %756 = vmatpush2.bf16.msra.mxu0 0
        %757 = vmatprep.subr.bf16.mxu0 0
        %758 = vmatpush2.bf16.msra.mxu0 0
        %759 = vmatprep.mubr.bf16.mxu0 0
        %760 = vmatmul.mubr.bf16.gmra.mxu0 %v662
        %v761 = vpop.f32.mrf.mxu0
        %v762 = vadd.f32 %v713, %v761
        %v763 = vpop.f32.mrf.mxu0
        %v764 = vpop.f32.mrf.mxu0
        %v765 = vpop.f32.mrf.mxu0
        %766 = vdwg.mxu0
        %v767 = vpack.c.bf16 %v633, %v633
        %v768 = vpack.c.bf16 %v699, %v699
        %v769 = vpack.c.bf16 %v762, %v762
        %vm770 = vcmask 64512
        %v772 = vsel %vm770, %v767, 0
        %v775 = vsel %vm770, %v768, 0
        %777 = vmatprep.subr.bf16.mxu0 0
        %778 = vmatpush1.bf16.xpose.msra.mxu0 0
        %779 = vmatprep.subr.bf16.mxu0 0
        %780 = vmatpush1.bf16.xpose.msra.mxu0 0
        %781 = vmatprep.subr.bf16.mxu0 0
        %782 = vmatpush1.bf16.xpose.msra.mxu0 0
        %783 = vmatprep.subr.bf16.mxu0 0
        %784 = vmatpush1.bf16.xpose.msra.mxu0 0
        %785 = vmatprep.subr.bf16.mxu0 0
        %786 = vmatpush1.bf16.xpose.msra.mxu0 0
        %787 = vmatprep.subr.bf16.mxu0 0
        %788 = vmatpush1.bf16.xpose.msra.mxu0 0
        %789 = vmatprep.subr.bf16.mxu0 0
        %790 = vmatpush1.bf16.xpose.msra.mxu0 0
        %791 = vmatprep.subr.bf16.mxu0 0
        %792 = vmatpush1.bf16.xpose.msra.mxu0 %v775
        %793 = vmatprep.subr.bf16.mxu0 0
        %794 = vmatpush2.bf16.xpose.msra.mxu0 0
        %795 = vmatprep.subr.bf16.mxu0 0
        %796 = vmatpush2.bf16.xpose.msra.mxu0 0
        %797 = vmatprep.subr.bf16.mxu0 0
        %798 = vmatpush2.bf16.xpose.msra.mxu0 0
        %799 = vmatprep.subr.bf16.mxu0 0
        %800 = vmatpush2.bf16.xpose.msra.mxu0 0
        %801 = vmatprep.subr.bf16.mxu0 0
        %802 = vmatpush2.bf16.xpose.msra.mxu0 0
        %803 = vmatprep.subr.bf16.mxu0 0
        %804 = vmatpush2.bf16.xpose.msra.mxu0 0
        %805 = vmatprep.subr.bf16.mxu0 0
        %806 = vmatpush2.bf16.xpose.msra.mxu0 0
        %807 = vmatprep.subr.bf16.mxu0 0
        %808 = vmatpush2.bf16.xpose.msra.mxu0 0
        %809 = vmatprep.mubr.bf16.mxu0 0
        %810 = vmatmul.mubr.bf16.gmra.mxu0 %v772
        %v811 = vpop.f32.mrf.mxu0
        %v812 = vadd.f32 0.0, %v811
        %v813 = vpop.f32.mrf.mxu0
        %v814 = vpop.f32.mrf.mxu0
        %v815 = vpop.f32.mrf.mxu0
        %816 = vdwg.mxu0
        %v817 = vsel %vm770, %v812, -inf
        %818 = vmax.xlane.f32.xlu0 %v817
        %v819 = vpop.xlane.xlu0 %818
        %v820 = vsub.f32 %v812, %v819
        %v821 = vmul.f32 %v820, 1.442695
        %v822 = vpow.pop %v821
        %v823 = vsel %vm770, %v822, 0.0
        %824 = vadd.xlane.f32.xlu0 %v823
        %v825 = vpop.xlane.xlu0 %824
        %v826 = vrcp.pop %v825
        %v827 = vpack.c.bf16 %v822, %v822
        %v829 = vsel %vm770, %v827, 0
        %vm831 = vcmask 1043456
        %v833 = vsel %vm831, %v769, 0
        %835 = vmatprep.subr.bf16.mxu0 0
        %836 = vmatpush1.bf16.msra.mxu0 0
        %837 = vmatprep.subr.bf16.mxu0 0
        %838 = vmatpush1.bf16.msra.mxu0 0
        %839 = vmatprep.subr.bf16.mxu0 0
        %840 = vmatpush1.bf16.msra.mxu0 0
        %841 = vmatprep.subr.bf16.mxu0 0
        %842 = vmatpush1.bf16.msra.mxu0 0
        %843 = vmatprep.subr.bf16.mxu0 0
        %844 = vmatpush1.bf16.msra.mxu0 0
        %845 = vmatprep.subr.bf16.mxu0 0
        %846 = vmatpush1.bf16.msra.mxu0 0
        %847 = vmatprep.subr.bf16.mxu0 0
        %848 = vmatpush1.bf16.msra.mxu0 0
        %849 = vmatprep.subr.bf16.mxu0 0
        %850 = vmatpush1.bf16.msra.mxu0 %v833
        %851 = vmatprep.subr.bf16.mxu0 0
        %852 = vmatpush2.bf16.msra.mxu0 0
        %853 = vmatprep.subr.bf16.mxu0 0
        %854 = vmatpush2.bf16.msra.mxu0 0
        %855 = vmatprep.subr.bf16.mxu0 0
        %856 = vmatpush2.bf16.msra.mxu0 0
        %857 = vmatprep.subr.bf16.mxu0 0
        %858 = vmatpush2.bf16.msra.mxu0 0
        %859 = vmatprep.subr.bf16.mxu0 0
        %860 = vmatpush2.bf16.msra.mxu0 0
        %861 = vmatprep.subr.bf16.mxu0 0
        %862 = vmatpush2.bf16.msra.mxu0 0
        %863 = vmatprep.subr.bf16.mxu0 0
        %864 = vmatpush2.bf16.msra.mxu0 0
        %865 = vmatprep.subr.bf16.mxu0 0
        %866 = vmatpush2.bf16.msra.mxu0 0
        %867 = vmatprep.mubr.bf16.mxu0 0
        %868 = vmatmul.mubr.bf16.gmra.mxu0 %v829
        %v869 = vpop.f32.mrf.mxu0
        %v870 = vadd.f32 0.0, %v869
        %v871 = vpop.f32.mrf.mxu0
        %v872 = vpop.f32.mrf.mxu0
        %v873 = vpop.f32.mrf.mxu0
        %874 = vdwg.mxu0
        %v875 = vmul.f32 %v870, %v826
        %876 = vst.msk [vmem:[#allocation2] sm:$0xff] %vm770, %v875
        %878 = vrot.lane.b32.xlu0 %v767, 120
        %v879 = vpop.permute.xlu0 %878
        %881 = vrot.lane.b32.xlu0 %v768, 120
        %v882 = vpop.permute.xlu0 %881
        %v884 = vsel %vm770, %v879, 0
        %v887 = vsel %vm770, %v882, 0
        %889 = vmatprep.subr.bf16.mxu0 0
        %890 = vmatpush1.bf16.xpose.msra.mxu0 0
        %891 = vmatprep.subr.bf16.mxu0 0
        %892 = vmatpush1.bf16.xpose.msra.mxu0 0
        %893 = vmatprep.subr.bf16.mxu0 0
        %894 = vmatpush1.bf16.xpose.msra.mxu0 0
        %895 = vmatprep.subr.bf16.mxu0 0
        %896 = vmatpush1.bf16.xpose.msra.mxu0 0
        %897 = vmatprep.subr.bf16.mxu0 0
        %898 = vmatpush1.bf16.xpose.msra.mxu0 0
        %899 = vmatprep.subr.bf16.mxu0 0
        %900 = vmatpush1.bf16.xpose.msra.mxu0 0
        %901 = vmatprep.subr.bf16.mxu0 0
        %902 = vmatpush1.bf16.xpose.msra.mxu0 0
        %903 = vmatprep.subr.bf16.mxu0 0
        %904 = vmatpush1.bf16.xpose.msra.mxu0 %v887
        %905 = vmatprep.subr.bf16.mxu0 0
        %906 = vmatpush2.bf16.xpose.msra.mxu0 0
        %907 = vmatprep.subr.bf16.mxu0 0
        %908 = vmatpush2.bf16.xpose.msra.mxu0 0
        %909 = vmatprep.subr.bf16.mxu0 0
        %910 = vmatpush2.bf16.xpose.msra.mxu0 0
        %911 = vmatprep.subr.bf16.mxu0 0
        %912 = vmatpush2.bf16.xpose.msra.mxu0 0
        %913 = vmatprep.subr.bf16.mxu0 0
        %914 = vmatpush2.bf16.xpose.msra.mxu0 0
        %915 = vmatprep.subr.bf16.mxu0 0
        %916 = vmatpush2.bf16.xpose.msra.mxu0 0
        %917 = vmatprep.subr.bf16.mxu0 0
        %918 = vmatpush2.bf16.xpose.msra.mxu0 0
        %919 = vmatprep.subr.bf16.mxu0 0
        %920 = vmatpush2.bf16.xpose.msra.mxu0 0
        %921 = vmatprep.mubr.bf16.mxu0 0
        %922 = vmatmul.mubr.bf16.gmra.mxu0 %v884
        %v923 = vpop.f32.mrf.mxu0
        %v924 = vadd.f32 0.0, %v923
        %v925 = vpop.f32.mrf.mxu0
        %v926 = vpop.f32.mrf.mxu0
        %v927 = vpop.f32.mrf.mxu0
        %928 = vdwg.mxu0
        %v929 = vsel %vm770, %v924, -inf
        %930 = vmax.xlane.f32.xlu0 %v929
        %v931 = vpop.xlane.xlu0 %930
        %v932 = vsub.f32 %v924, %v931
        %v933 = vmul.f32 %v932, 1.442695
        %v934 = vpow.pop %v933
        %v935 = vsel %vm770, %v934, 0.0
        %936 = vadd.xlane.f32.xlu0 %v935
        %v937 = vpop.xlane.xlu0 %936
        %v938 = vrcp.pop %v937
        %v939 = vpack.c.bf16 %v934, %v934
        %941 = vrot.lane.b32.xlu0 %v769, 120
        %v942 = vpop.permute.xlu0 %941
        %v944 = vsel %vm770, %v939, 0
        %v947 = vsel %vm831, %v942, 0
        %949 = vmatprep.subr.bf16.mxu0 0
        %950 = vmatpush1.bf16.msra.mxu0 0
        %951 = vmatprep.subr.bf16.mxu0 0
        %952 = vmatpush1.bf16.msra.mxu0 0
        %953 = vmatprep.subr.bf16.mxu0 0
        %954 = vmatpush1.bf16.msra.mxu0 0
        %955 = vmatprep.subr.bf16.mxu0 0
        %956 = vmatpush1.bf16.msra.mxu0 0
        %957 = vmatprep.subr.bf16.mxu0 0
        %958 = vmatpush1.bf16.msra.mxu0 0
        %959 = vmatprep.subr.bf16.mxu0 0
        %960 = vmatpush1.bf16.msra.mxu0 0
        %961 = vmatprep.subr.bf16.mxu0 0
        %962 = vmatpush1.bf16.msra.mxu0 0
        %963 = vmatprep.subr.bf16.mxu0 0
        %964 = vmatpush1.bf16.msra.mxu0 %v947
        %965 = vmatprep.subr.bf16.mxu0 0
        %966 = vmatpush2.bf16.msra.mxu0 0
        %967 = vmatprep.subr.bf16.mxu0 0
        %968 = vmatpush2.bf16.msra.mxu0 0
        %969 = vmatprep.subr.bf16.mxu0 0
        %970 = vmatpush2.bf16.msra.mxu0 0
        %971 = vmatprep.subr.bf16.mxu0 0
        %972 = vmatpush2.bf16.msra.mxu0 0
        %973 = vmatprep.subr.bf16.mxu0 0
        %974 = vmatpush2.bf16.msra.mxu0 0
        %975 = vmatprep.subr.bf16.mxu0 0
        %976 = vmatpush2.bf16.msra.mxu0 0
        %977 = vmatprep.subr.bf16.mxu0 0
        %978 = vmatpush2.bf16.msra.mxu0 0
        %979 = vmatprep.subr.bf16.mxu0 0
        %980 = vmatpush2.bf16.msra.mxu0 0
        %981 = vmatprep.mubr.bf16.mxu0 0
        %982 = vmatmul.mubr.bf16.gmra.mxu0 %v944
        %v983 = vpop.f32.mrf.mxu0
        %v984 = vadd.f32 0.0, %v983
        %v985 = vpop.f32.mrf.mxu0
        %v986 = vpop.f32.mrf.mxu0
        %v987 = vpop.f32.mrf.mxu0
        %988 = vdwg.mxu0
        %v989 = vmul.f32 %v984, %v938
        %991 = vrot.lane.b32.xlu0 %v989, 8
        %v992 = vpop.permute.xlu0 %991
        %vm994 = vcmask 130112
        %995 = vst.msk [vmem:[#allocation2] sm:$0xff] %vm994, %v992
        %996 = vrot.lane.b32.xlu0 %v767, 112
        %v997 = vpop.permute.xlu0 %996
        %998 = vrot.lane.b32.xlu0 %v768, 112
        %v999 = vpop.permute.xlu0 %998
        %v1001 = vsel %vm770, %v997, 0
        %v1004 = vsel %vm770, %v999, 0
        %1006 = vmatprep.subr.bf16.mxu0 0
        %1007 = vmatpush1.bf16.xpose.msra.mxu0 0
        %1008 = vmatprep.subr.bf16.mxu0 0
        %1009 = vmatpush1.bf16.xpose.msra.mxu0 0
        %1010 = vmatprep.subr.bf16.mxu0 0
        %1011 = vmatpush1.bf16.xpose.msra.mxu0 0
        %1012 = vmatprep.subr.bf16.mxu0 0
        %1013 = vmatpush1.bf16.xpose.msra.mxu0 0
        %1014 = vmatprep.subr.bf16.mxu0 0
        %1015 = vmatpush1.bf16.xpose.msra.mxu0 0
        %1016 = vmatprep.subr.bf16.mxu0 0
        %1017 = vmatpush1.bf16.xpose.msra.mxu0 0
        %1018 = vmatprep.subr.bf16.mxu0 0
        %1019 = vmatpush1.bf16.xpose.msra.mxu0 0
        %1020 = vmatprep.subr.bf16.mxu0 0
        %1021 = vmatpush1.bf16.xpose.msra.mxu0 %v1004
        %1022 = vmatprep.subr.bf16.mxu0 0
        %1023 = vmatpush2.bf16.xpose.msra.mxu0 0
        %1024 = vmatprep.subr.bf16.mxu0 0
        %1025 = vmatpush2.bf16.xpose.msra.mxu0 0
        %1026 = vmatprep.subr.bf16.mxu0 0
        %1027 = vmatpush2.bf16.xpose.msra.mxu0 0
        %1028 = vmatprep.subr.bf16.mxu0 0
        %1029 = vmatpush2.bf16.xpose.msra.mxu0 0
        %1030 = vmatprep.subr.bf16.mxu0 0
        %1031 = vmatpush2.bf16.xpose.msra.mxu0 0
        %1032 = vmatprep.subr.bf16.mxu0 0
        %1033 = vmatpush2.bf16.xpose.msra.mxu0 0
        %1034 = vmatprep.subr.bf16.mxu0 0
        %1035 = vmatpush2.bf16.xpose.msra.mxu0 0
        %1036 = vmatprep.subr.bf16.mxu0 0
        %1037 = vmatpush2.bf16.xpose.msra.mxu0 0
        %1038 = vmatprep.mubr.bf16.mxu0 0
        %1039 = vmatmul.mubr.bf16.gmra.mxu0 %v1001
        %v1040 = vpop.f32.mrf.mxu0
        %v1041 = vadd.f32 0.0, %v1040
        %v1042 = vpop.f32.mrf.mxu0
        %v1043 = vpop.f32.mrf.mxu0
        %v1044 = vpop.f32.mrf.mxu0
        %1045 = vdwg.mxu0
        %v1046 = vsel %vm770, %v1041, -inf
        %1047 = vmax.xlane.f32.xlu0 %v1046
        %v1048 = vpop.xlane.xlu0 %1047
        %v1049 = vsub.f32 %v1041, %v1048
        %v1050 = vmul.f32 %v1049, 1.442695
        %v1051 = vpow.pop %v1050
        %v1052 = vsel %vm770, %v1051, 0.0
        %1053 = vadd.xlane.f32.xlu0 %v1052
        %v1054 = vpop.xlane.xlu0 %1053
        %v1055 = vrcp.pop %v1054
        %v1056 = vpack.c.bf16 %v1051, %v1051
        %1057 = vrot.lane.b32.xlu0 %v769, 112
        %v1058 = vpop.permute.xlu0 %1057
        %v1060 = vsel %vm770, %v1056, 0
        %v1063 = vsel %vm831, %v1058, 0
        %1065 = vmatprep.subr.bf16.mxu0 0
        %1066 = vmatpush1.bf16.msra.mxu0 0
        %1067 = vmatprep.subr.bf16.mxu0 0
        %1068 = vmatpush1.bf16.msra.mxu0 0
        %1069 = vmatprep.subr.bf16.mxu0 0
        %1070 = vmatpush1.bf16.msra.mxu0 0
        %1071 = vmatprep.subr.bf16.mxu0 0
        %1072 = vmatpush1.bf16.msra.mxu0 0
        %1073 = vmatprep.subr.bf16.mxu0 0
        %1074 = vmatpush1.bf16.msra.mxu0 0
        %1075 = vmatprep.subr.bf16.mxu0 0
        %1076 = vmatpush1.bf16.msra.mxu0 0
        %1077 = vmatprep.subr.bf16.mxu0 0
        %1078 = vmatpush1.bf16.msra.mxu0 0
        %1079 = vmatprep.subr.bf16.mxu0 0
        %1080 = vmatpush1.bf16.msra.mxu0 %v1063
        %1081 = vmatprep.subr.bf16.mxu0 0
        %1082 = vmatpush2.bf16.msra.mxu0 0
        %1083 = vmatprep.subr.bf16.mxu0 0
        %1084 = vmatpush2.bf16.msra.mxu0 0
        %1085 = vmatprep.subr.bf16.mxu0 0
        %1086 = vmatpush2.bf16.msra.mxu0 0
        %1087 = vmatprep.subr.bf16.mxu0 0
        %1088 = vmatpush2.bf16.msra.mxu0 0
        %1089 = vmatprep.subr.bf16.mxu0 0
        %1090 = vmatpush2.bf16.msra.mxu0 0
        %1091 = vmatprep.subr.bf16.mxu0 0
        %1092 = vmatpush2.bf16.msra.mxu0 0
        %1093 = vmatprep.subr.bf16.mxu0 0
        %1094 = vmatpush2.bf16.msra.mxu0 0
        %1095 = vmatprep.subr.bf16.mxu0 0
        %1096 = vmatpush2.bf16.msra.mxu0 0
        %1097 = vmatprep.mubr.bf16.mxu0 0
        %1098 = vmatmul.mubr.bf16.gmra.mxu0 %v1060
        %v1099 = vpop.f32.mrf.mxu0
        %v1100 = vadd.f32 0.0, %v1099
        %v1101 = vpop.f32.mrf.mxu0
        %v1102 = vpop.f32.mrf.mxu0
        %v1103 = vpop.f32.mrf.mxu0
        %1104 = vdwg.mxu0
        %v1105 = vmul.f32 %v1100, %v1055
        %1107 = vrot.lane.b32.xlu0 %v1105, 16
        %v1108 = vpop.permute.xlu0 %1107
        %vm1110 = vcmask 195712
        %1111 = vst.msk [vmem:[#allocation2] sm:$0xff] %vm1110, %v1108
        %1112 = vrot.lane.b32.xlu0 %v767, 104
        %v1113 = vpop.permute.xlu0 %1112
        %1114 = vrot.lane.b32.xlu0 %v768, 104
        %v1115 = vpop.permute.xlu0 %1114
        %v1117 = vsel %vm770, %v1113, 0
        %v1120 = vsel %vm770, %v1115, 0
        %1122 = vmatprep.subr.bf16.mxu0 0
        %1123 = vmatpush1.bf16.xpose.msra.mxu0 0
        %1124 = vmatprep.subr.bf16.mxu0 0
        %1125 = vmatpush1.bf16.xpose.msra.mxu0 0
        %1126 = vmatprep.subr.bf16.mxu0 0
        %1127 = vmatpush1.bf16.xpose.msra.mxu0 0
        %1128 = vmatprep.subr.bf16.mxu0 0
        %1129 = vmatpush1.bf16.xpose.msra.mxu0 0
        %1130 = vmatprep.subr.bf16.mxu0 0
        %1131 = vmatpush1.bf16.xpose.msra.mxu0 0
        %1132 = vmatprep.subr.bf16.mxu0 0
        %1133 = vmatpush1.bf16.xpose.msra.mxu0 0
        %1134 = vmatprep.subr.bf16.mxu0 0
        %1135 = vmatpush1.bf16.xpose.msra.mxu0 0
        %1136 = vmatprep.subr.bf16.mxu0 0
        %1137 = vmatpush1.bf16.xpose.msra.mxu0 %v1120
        %1138 = vmatprep.subr.bf16.mxu0 0
        %1139 = vmatpush2.bf16.xpose.msra.mxu0 0
        %1140 = vmatprep.subr.bf16.mxu0 0
        %1141 = vmatpush2.bf16.xpose.msra.mxu0 0
        %1142 = vmatprep.subr.bf16.mxu0 0
        %1143 = vmatpush2.bf16.xpose.msra.mxu0 0
        %1144 = vmatprep.subr.bf16.mxu0 0
        %1145 = vmatpush2.bf16.xpose.msra.mxu0 0
        %1146 = vmatprep.subr.bf16.mxu0 0
        %1147 = vmatpush2.bf16.xpose.msra.mxu0 0
        %1148 = vmatprep.subr.bf16.mxu0 0
        %1149 = vmatpush2.bf16.xpose.msra.mxu0 0
        %1150 = vmatprep.subr.bf16.mxu0 0
        %1151 = vmatpush2.bf16.xpose.msra.mxu0 0
        %1152 = vmatprep.subr.bf16.mxu0 0
        %1153 = vmatpush2.bf16.xpose.msra.mxu0 0
        %1154 = vmatprep.mubr.bf16.mxu0 0
        %1155 = vmatmul.mubr.bf16.gmra.mxu0 %v1117
        %v1156 = vpop.f32.mrf.mxu0
        %v1157 = vadd.f32 0.0, %v1156
        %v1158 = vpop.f32.mrf.mxu0
        %v1159 = vpop.f32.mrf.mxu0
        %v1160 = vpop.f32.mrf.mxu0
        %1161 = vdwg.mxu0
        %v1162 = vsel %vm770, %v1157, -inf
        %1163 = vmax.xlane.f32.xlu0 %v1162
        %v1164 = vpop.xlane.xlu0 %1163
        %v1165 = vsub.f32 %v1157, %v1164
        %v1166 = vmul.f32 %v1165, 1.442695
        %v1167 = vpow.pop %v1166
        %v1168 = vsel %vm770, %v1167, 0.0
        %1169 = vadd.xlane.f32.xlu0 %v1168
        %v1170 = vpop.xlane.xlu0 %1169
        %v1171 = vrcp.pop %v1170
        %v1172 = vpack.c.bf16 %v1167, %v1167
        %1173 = vrot.lane.b32.xlu0 %v769, 104
        %v1174 = vpop.permute.xlu0 %1173
        %v1176 = vsel %vm770, %v1172, 0
        %v1179 = vsel %vm831, %v1174, 0
        %1181 = vmatprep.subr.bf16.mxu0 0
        %1182 = vmatpush1.bf16.msra.mxu0 0
        %1183 = vmatprep.subr.bf16.mxu0 0
        %1184 = vmatpush1.bf16.msra.mxu0 0
        %1185 = vmatprep.subr.bf16.mxu0 0
        %1186 = vmatpush1.bf16.msra.mxu0 0
        %1187 = vmatprep.subr.bf16.mxu0 0
        %1188 = vmatpush1.bf16.msra.mxu0 0
        %1189 = vmatprep.subr.bf16.mxu0 0
        %1190 = vmatpush1.bf16.msra.mxu0 0
        %1191 = vmatprep.subr.bf16.mxu0 0
        %1192 = vmatpush1.bf16.msra.mxu0 0
        %1193 = vmatprep.subr.bf16.mxu0 0
        %1194 = vmatpush1.bf16.msra.mxu0 0
        %1195 = vmatprep.subr.bf16.mxu0 0
        %1196 = vmatpush1.bf16.msra.mxu0 %v1179
        %1197 = vmatprep.subr.bf16.mxu0 0
        %1198 = vmatpush2.bf16.msra.mxu0 0
        %1199 = vmatprep.subr.bf16.mxu0 0
        %1200 = vmatpush2.bf16.msra.mxu0 0
        %1201 = vmatprep.subr.bf16.mxu0 0
        %1202 = vmatpush2.bf16.msra.mxu0 0
        %1203 = vmatprep.subr.bf16.mxu0 0
        %1204 = vmatpush2.bf16.msra.mxu0 0
        %1205 = vmatprep.subr.bf16.mxu0 0
        %1206 = vmatpush2.bf16.msra.mxu0 0
        %1207 = vmatprep.subr.bf16.mxu0 0
        %1208 = vmatpush2.bf16.msra.mxu0 0
        %1209 = vmatprep.subr.bf16.mxu0 0
        %1210 = vmatpush2.bf16.msra.mxu0 0
        %1211 = vmatprep.subr.bf16.mxu0 0
        %1212 = vmatpush2.bf16.msra.mxu0 0
        %1213 = vmatprep.mubr.bf16.mxu0 0
        %1214 = vmatmul.mubr.bf16.gmra.mxu0 %v1176
        %v1215 = vpop.f32.mrf.mxu0
        %v1216 = vadd.f32 0.0, %v1215
        %v1217 = vpop.f32.mrf.mxu0
        %v1218 = vpop.f32.mrf.mxu0
        %v1219 = vpop.f32.mrf.mxu0
        %1220 = vdwg.mxu0
        %v1221 = vmul.f32 %v1216, %v1171
        %1223 = vrot.lane.b32.xlu0 %v1221, 24
        %v1224 = vpop.permute.xlu0 %1223
        %vm1226 = vcmask 261312
        %1227 = vst.msk [vmem:[#allocation2] sm:$0xff] %vm1226, %v1224
        %v1228 = vld [vmem:[#allocation11] sm:$0x1]
        %v1230 = vlaneseq
        %v1231 = vshrl.u32 %v1230, 7
        %v1232 = vsub.s32 0, %v1231
        %v1233 = vrot.slane %v1228, %v1232
        %v1235 = vadd.f32 %v567, %v1233
        %v1236 = vld [vmem:[#allocation2] sm:$0xff]
        %v1237 = vpack.c.bf16 %v1236, %v1236
        %v1238 = vld [vmem:[#allocation10] sm:$0xf]
        %v1239 = vld [vmem:[#allocation10 + $0x4] sm:$0xf]
        %v1240 = vld [vmem:[#allocation10 + $0x8] sm:$0xf]
        %v1241 = vld [vmem:[#allocation10 + $0xc] sm:$0xf]
        %v1246 = vunpack.c.l.b16 %v1238
        %v1247 = vunpack.c.l.b16 %v1239
        %v1248 = vunpack.c.l.b16 %v1240
        %v1249 = vunpack.c.l.b16 %v1241
        %v1250 = vpack.c.b16 %v1247, %v1246
        %v1251 = vpack.c.b16 %v1249, %v1248
        %v1255 = vsel %vm594, %v1237, 0
        %1257 = vmatprep.subr.bf16.mxu0 0
        %1258 = vmatpush1.bf16.msra.mxu0 0
        %1259 = vmatprep.subr.bf16.mxu0 0
        %1260 = vmatpush1.bf16.msra.mxu0 0
        %1261 = vmatprep.subr.bf16.mxu0 0
        %1262 = vmatpush1.bf16.msra.mxu0 0
        %1263 = vmatprep.subr.bf16.mxu0 0
        %1264 = vmatpush1.bf16.msra.mxu0 0
        %1265 = vmatprep.subr.bf16.mxu0 0
        %1266 = vmatpush1.bf16.msra.mxu0 0
        %1267 = vmatprep.subr.bf16.mxu0 0
        %1268 = vmatpush1.bf16.msra.mxu0 0
        %1269 = vmatprep.subr.bf16.mxu0 0
        %1270 = vmatpush1.bf16.msra.mxu0 %v1251
        %1271 = vmatprep.subr.bf16.mxu0 0
        %1272 = vmatpush1.bf16.msra.mxu0 %v1250
        %1273 = vmatprep.subr.bf16.mxu0 0
        %1274 = vmatpush2.bf16.msra.mxu0 0
        %1275 = vmatprep.subr.bf16.mxu0 0
        %1276 = vmatpush2.bf16.msra.mxu0 0
        %1277 = vmatprep.subr.bf16.mxu0 0
        %1278 = vmatpush2.bf16.msra.mxu0 0
        %1279 = vmatprep.subr.bf16.mxu0 0
        %1280 = vmatpush2.bf16.msra.mxu0 0
        %1281 = vmatprep.subr.bf16.mxu0 0
        %1282 = vmatpush2.bf16.msra.mxu0 0
        %1283 = vmatprep.subr.bf16.mxu0 0
        %1284 = vmatpush2.bf16.msra.mxu0 0
        %1285 = vmatprep.subr.bf16.mxu0 0
        %1286 = vmatpush2.bf16.msra.mxu0 0
        %1287 = vmatprep.subr.bf16.mxu0 0
        %1288 = vmatpush2.bf16.msra.mxu0 0
        %1289 = vmatprep.mubr.bf16.mxu0 0
        %1290 = vmatmul.mubr.bf16.gmra.mxu0 %v1255
        %v1291 = vpop.f32.mrf.mxu0
        %v1292 = vadd.f32 0.0, %v1291
        %v1293 = vpop.f32.mrf.mxu0
        %v1294 = vpop.f32.mrf.mxu0
        %v1295 = vpop.f32.mrf.mxu0
        %1296 = vdwg.mxu0
        %v1297 = vadd.f32 %v1235, %v1292
        %v1298 = vsel %vm594, %v1297, 0.0
        %1299 = vadd.xlane.f32.xlu0 %v1298
        %v1300 = vpop.xlane.xlu0 %1299
        %v1301 = vrcp.pop 32.0
        %v1302 = vmul.f32 %v1300, %v1301
        %v1303 = vsub.f32 %v1297, %v1302
        %v1304 = vmul.f32 %v1303, %v1303
        %v1305 = vsel %vm594, %v1304, 0.0
        %1306 = vadd.xlane.f32.xlu0 %v1305
        %v1307 = vpop.xlane.xlu0 %1306
        %v1308 = vmul.f32 %v1307, %v1301
        %v1309 = vadd.f32 %v1308, 1e-05
        %v1310 = vrsqrt.pop %v1309
        %v1311 = vmul.f32 %v1303, %v1310
        %v1312 = vld [vmem:[#allocation13] sm:$0x1]
        %v1314 = vlaneseq
        %v1315 = vshrl.u32 %v1314, 7
        %v1316 = vsub.s32 0, %v1315
        %v1317 = vrot.slane %v1312, %v1316
        %v1319 = vmul.f32 %v1311, %v1317
        %v1320 = vld [vmem:[#allocation14] sm:$0x1]
        %v1322 = vlaneseq
        %v1323 = vshrl.u32 %v1322, 7
        %v1324 = vsub.s32 0, %v1323
        %v1325 = vrot.slane %v1320, %v1324
        %v1327 = vadd.f32 %v1319, %v1325
        %1328 = vst.msk [vmem:[%s565] sm:$0xff] %vm594, %v1327
        %p1329 = scmp.lt.s32.totalorder %s36, 1
        %s1330 = scalar_select %p1329, %s36, 1
        %p1331 = scmp.lt.s32.totalorder %s37, 0
        %s1332 = scalar_select %p1331, %s37, 0
        %s1333 = sadd.s32 %s1332, %s1330
        %s1334 = smul.addr %s1333, 8
        %s1335 = scalar_lea.vmem %s12, %s1334
        // Predicated region
        $region101: #{transformer_decoder.6} parent=67 // pred_check
          %p1336 = pneg %p328
        $region102: #{transformer_decoder.6} parent=67 // pred_check_branch
          %1338 = sbr.rel (%p1336) target = $region104
        $region103: #{transformer_decoder.6} parent=67 // pred_region
          _
        $region104: #{transformer_decoder.6} parent=67 // pred_fallthru
          _
      $region68: #{transformer_decoder.6} parent=5 // pred_fallthru
        _
      %p1339 = scmp.le.s32.totalorder 2, %s27
      // Predicated region
      $region105: #{transformer_decoder.6} parent=5 // pred_check
        %p1340 = pneg %p1339
      $region106: #{transformer_decoder.6} parent=5 // pred_check_branch
        %1342 = sbr.rel (%p1340) target = $region108
      $region107: #{transformer_decoder.6} parent=5 // pred_region
        %s1343 = ssub.s32 %s27, 2
        // Predicated region
        $region109: #{transformer_decoder.6} parent=107 // pred_check
          %p1344 = pneg %p334
        $region110: #{transformer_decoder.6} parent=107 // pred_check_branch
          %1346 = sbr.rel (%p1344) target = $region112
        $region111: #{transformer_decoder.6} parent=107 // pred_region
          %p1347 = scmp.lt.s32.totalorder %s38, 1
          %s1348 = scalar_select %p1347, %s38, 1
          %p1349 = scmp.lt.s32.totalorder %s39, 0
          %s1350 = scalar_select %p1349, %s39, 0
          %s1351 = sadd.s32 %s1350, %s1348
          %s1352 = smul.addr %s1351, 8
          %s1353 = scalar_lea.vmem %s12, %s1352
        $region112: #{transformer_decoder.6} parent=107 // pred_fallthru
          _
      $region108: #{transformer_decoder.6} parent=5 // pred_fallthru
        _
    $region6: #{transformer_decoder.6} parent=1 // loop_footer
      %s31 = sadd.s32 1, %s27
    $region7: #{transformer_decoder.6} parent=1 // loop_footer_branch
      %26 = sbr.rel target = $region3
    $region8: #{transformer_decoder.6} parent=1 // loop_exit
      _
    %1354 = vsyncpa [#allocation4], 1
    %s1355 = scalar_lea.sflag [#allocation4], 1
    %1356 = vsyncpa %s1355, 1
    %1357 = vsyncpa [#allocation6], 1
    %s1358 = scalar_lea.sflag [#allocation6], 1
    %1359 = vsyncpa %s1358, 1
    %1360 = vsyncpa [#allocation9], 1
    %1361 = vsyncpa [#allocation12], 1
    %1362 = vsyncpa [#allocation15], 1

// kernel: transformer_decoder.9
$region0: #{transformer_decoder.9}
  #allocation0 [shape = 'u32[]', space=smem, size = 0x4, offset = 0x4, fixed_abs, tag = 'smem constant byte address 0x4 - core index']
  #allocation1 [shape = 'u32[144,128]{1,0:T(1,128)}', space=vmem, size = 0x12000, scoped, tag = 'internal scratch']
  #allocation2 [shape = 'f32[8,32]{1,0:T(8,128)}', space=vmem, size = 0x1000, scoped, tag = 'scratch operand']
  %s0 = inlined_call_operand.vmem [shape: f32[2,8,32], index: 0, kind: input, shape index: {}, may-alias: {0,1}]
  %s1 = inlined_call_operand.vmem [shape: f32[2,8,32], index: 1, kind: input, shape index: {}, may-alias: {0,1}]
  %s2 = inlined_call_operand.vmem [shape: bf16[32,32], index: 2, kind: input, shape index: {}]
  %s3 = inlined_call_operand.vmem [shape: f32[1,32], index: 3, kind: input, shape index: {}]
  %s4 = inlined_call_operand.vmem [shape: bf16[32,32], index: 4, kind: input, shape index: {}]
  %s5 = inlined_call_operand.vmem [shape: f32[1,32], index: 5, kind: input, shape index: {}]
  %s6 = inlined_call_operand.vmem [shape: bf16[32,32], index: 6, kind: input, shape index: {}]
  %s7 = inlined_call_operand.vmem [shape: f32[1,32], index: 7, kind: input, shape index: {}]
  %s8 = inlined_call_operand.vmem [shape: bf16[32,32], index: 8, kind: input, shape index: {}]
  %s9 = inlined_call_operand.vmem [shape: f32[1,32], index: 9, kind: input, shape index: {}]
  %s10 = inlined_call_operand.vmem [shape: f32[1,32], index: 10, kind: input, shape index: {}]
  %s11 = inlined_call_operand.vmem [shape: f32[1,32], index: 11, kind: input, shape index: {}]
  %s12 = inlined_call_operand.vmem [shape: f32[2,8,32], index: 12, kind: output, shape index: {}]
  %s13 = sld [smem:[#allocation0]]
  $region81: #{transformer_decoder.9} parent=0
    _
  %s15 = ssub.s32 1, %s13
  %s16 = scalar_select 0, %s15, %s13
  loop: start=0, step=1, limit=4
  $region2: #{transformer_decoder.9} parent=0 // loop_pre_header
    _
  $region3: #{transformer_decoder.9} parent=0 // loop_header
    %s18 = sphi 0, %s22
    %p19 = scmp.ge.s32.totalorder %s18, 4
    %s25 = sphi 0, %s37
    %s26 = sphi 0, %s33
    %s27 = sphi 0, %s25
    %s28 = sphi 0, %s26
    %s29 = sphi 0, %s27
    %s30 = sphi 0, %s28
    %s42 = sphi 0, %s44
    %s45 = sphi 0, %s42
    %s46 = sphi 0, %s45
    %s62 = sphi 0, %s46
    %s68 = sphi 0, %s70
    %s71 = sphi 0, %s68
    %s72 = sphi 0, %s71
    %s88 = sphi 0, %s72
    %s92 = sphi 0, %s92
    %s94 = sphi 0, %s92
    %s95 = sphi 0, %s94
    %s109 = sphi 0, %s95
    %s113 = sphi 0, %s113
    %s115 = sphi 0, %s113
    %s116 = sphi 0, %s115
    %s130 = sphi 0, %s116
    %s134 = sphi 0, %s134
    %s136 = sphi 0, %s134
    %s137 = sphi 0, %s136
    %s151 = sphi 0, %s137
    %s155 = sphi 0, %s155
    %s157 = sphi 0, %s155
    %s158 = sphi 0, %s157
    %s172 = sphi 0, %s158
    %s176 = sphi 0, %s176
    %s178 = sphi 0, %s176
    %s179 = sphi 0, %s178
    %s193 = sphi 0, %s179
    %s197 = sphi 0, %s197
    %s199 = sphi 0, %s197
    %s200 = sphi 0, %s199
    %s214 = sphi 0, %s200
    %s218 = sphi 0, %s218
    %s220 = sphi 0, %s218
    %s221 = sphi 0, %s220
    %s235 = sphi 0, %s221
    %s239 = sphi 0, %s239
    %s241 = sphi 0, %s239
    %s242 = sphi 0, %s241
    %s256 = sphi 0, %s242
    %s260 = sphi 0, %s260
    %s262 = sphi 0, %s260
    %s263 = sphi 0, %s262
    %s277 = sphi 0, %s263
    %s281 = sphi 0, %s281
    %s283 = sphi 0, %s281
    %s284 = sphi 0, %s283
    %s298 = sphi 0, %s284
    %s306 = sphi 0, %s308
    %s309 = sphi 0, %s306
    %s310 = sphi 0, %s309
    %s326 = sphi 0, %s310
  $region4: #{transformer_decoder.9} parent=0 // loop_header_branch
    %21 = sbr.rel (%p19) target = $region8
  $region5: #{transformer_decoder.9} parent=0 // loop_body
    %s23 = ssub.s32 %s18, 1
    %s24 = ssub.s32 %s18, 2
    %s31 = sadd.s32 1, %s26
    %p32 = scmp.ge.s32.totalorder %s31, 1
    %s33 = scalar_select %p32, 0, %s31
    %s34 = sadd.s32 1, %s25
    %s35 = scalar_select %p32, %s34, %s25
    %p36 = scmp.ge.s32.totalorder %s35, 2
    %s37 = scalar_select %p36, 0, %s35
    %s38 = ssub.s32 %s25, %s37
    %s39 = ssub.s32 %s26, %s33
    %s40 = sor.u32 %s38, %s39
    %p41 = scmp.eq.s32.totalorder %s40, 0
    %s43 = sadd.s32 %s42, 1
    %s44 = scalar_select %p41, %s42, %s43
    %p47 = pneg %p41
    %p48 = scmp.eq.s32.totalorder %s18, 1
    %p49 = por %p47, %p48
    %p50 = scmp.ne.s32.totalorder %s42, %s45
    %p51 = scmp.eq.s32.totalorder %s18, 0
    %p52 = por %p50, %p51
    %p53 = scmp.ne.s32.totalorder %s42, %s45
    %p54 = scmp.eq.s32.totalorder %s23, 1
    %p55 = por %p53, %p54
    %p56 = scmp.ne.s32.totalorder %s45, %s46
    %p57 = scmp.eq.s32.totalorder %s23, 0
    %p58 = por %p56, %p57
    %p59 = scmp.ne.s32.totalorder %s45, %s46
    %p60 = scmp.eq.s32.totalorder %s24, 1
    %p61 = por %p59, %p60
    %p63 = scmp.ne.s32.totalorder %s46, %s62
    %p64 = scmp.eq.s32.totalorder %s24, 0
    %p65 = por %p63, %p64
    %s66 = ssub.s32 %s25, %s37
    %p67 = scmp.eq.s32.totalorder %s66, 0
    %s69 = sadd.s32 %s68, 1
    %s70 = scalar_select %p67, %s68, %s69
    %p73 = pneg %p67
    %p74 = scmp.eq.s32.totalorder %s18, 1
    %p75 = por %p73, %p74
    %p76 = scmp.ne.s32.totalorder %s68, %s71
    %p77 = scmp.eq.s32.totalorder %s18, 0
    %p78 = por %p76, %p77
    %p79 = scmp.ne.s32.totalorder %s68, %s71
    %p80 = scmp.eq.s32.totalorder %s23, 1
    %p81 = por %p79, %p80
    %p82 = scmp.ne.s32.totalorder %s71, %s72
    %p83 = scmp.eq.s32.totalorder %s23, 0
    %p84 = por %p82, %p83
    %p85 = scmp.ne.s32.totalorder %s71, %s72
    %p86 = scmp.eq.s32.totalorder %s24, 1
    %p87 = por %p85, %p86
    %p89 = scmp.ne.s32.totalorder %s72, %s88
    %p90 = scmp.eq.s32.totalorder %s24, 0
    %p91 = por %p89, %p90
    %s93 = sadd.s32 %s92, 1
    %p96 = scmp.eq.s32.totalorder %s18, 1
    %p97 = scmp.ne.s32.totalorder %s92, %s94
    %p98 = scmp.eq.s32.totalorder %s18, 0
    %p99 = por %p97, %p98
    %p100 = scmp.ne.s32.totalorder %s92, %s94
    %p101 = scmp.eq.s32.totalorder %s23, 1
    %p102 = por %p100, %p101
    %p103 = scmp.ne.s32.totalorder %s94, %s95
    %p104 = scmp.eq.s32.totalorder %s23, 0
    %p105 = por %p103, %p104
    %p106 = scmp.ne.s32.totalorder %s94, %s95
    %p107 = scmp.eq.s32.totalorder %s24, 1
    %p108 = por %p106, %p107
    %p110 = scmp.ne.s32.totalorder %s95, %s109
    %p111 = scmp.eq.s32.totalorder %s24, 0
    %p112 = por %p110, %p111
    %s114 = sadd.s32 %s113, 1
    %p117 = scmp.eq.s32.totalorder %s18, 1
    %p118 = scmp.ne.s32.totalorder %s113, %s115
    %p119 = scmp.eq.s32.totalorder %s18, 0
    %p120 = por %p118, %p119
    %p121 = scmp.ne.s32.totalorder %s113, %s115
    %p122 = scmp.eq.s32.totalorder %s23, 1
    %p123 = por %p121, %p122
    %p124 = scmp.ne.s32.totalorder %s115, %s116
    %p125 = scmp.eq.s32.totalorder %s23, 0
    %p126 = por %p124, %p125
    %p127 = scmp.ne.s32.totalorder %s115, %s116
    %p128 = scmp.eq.s32.totalorder %s24, 1
    %p129 = por %p127, %p128
    %p131 = scmp.ne.s32.totalorder %s116, %s130
    %p132 = scmp.eq.s32.totalorder %s24, 0
    %p133 = por %p131, %p132
    %s135 = sadd.s32 %s134, 1
    %p138 = scmp.eq.s32.totalorder %s18, 1
    %p139 = scmp.ne.s32.totalorder %s134, %s136
    %p140 = scmp.eq.s32.totalorder %s18, 0
    %p141 = por %p139, %p140
    %p142 = scmp.ne.s32.totalorder %s134, %s136
    %p143 = scmp.eq.s32.totalorder %s23, 1
    %p144 = por %p142, %p143
    %p145 = scmp.ne.s32.totalorder %s136, %s137
    %p146 = scmp.eq.s32.totalorder %s23, 0
    %p147 = por %p145, %p146
    %p148 = scmp.ne.s32.totalorder %s136, %s137
    %p149 = scmp.eq.s32.totalorder %s24, 1
    %p150 = por %p148, %p149
    %p152 = scmp.ne.s32.totalorder %s137, %s151
    %p153 = scmp.eq.s32.totalorder %s24, 0
    %p154 = por %p152, %p153
    %s156 = sadd.s32 %s155, 1
    %p159 = scmp.eq.s32.totalorder %s18, 1
    %p160 = scmp.ne.s32.totalorder %s155, %s157
    %p161 = scmp.eq.s32.totalorder %s18, 0
    %p162 = por %p160, %p161
    %p163 = scmp.ne.s32.totalorder %s155, %s157
    %p164 = scmp.eq.s32.totalorder %s23, 1
    %p165 = por %p163, %p164
    %p166 = scmp.ne.s32.totalorder %s157, %s158
    %p167 = scmp.eq.s32.totalorder %s23, 0
    %p168 = por %p166, %p167
    %p169 = scmp.ne.s32.totalorder %s157, %s158
    %p170 = scmp.eq.s32.totalorder %s24, 1
    %p171 = por %p169, %p170
    %p173 = scmp.ne.s32.totalorder %s158, %s172
    %p174 = scmp.eq.s32.totalorder %s24, 0
    %p175 = por %p173, %p174
    %s177 = sadd.s32 %s176, 1
    %p180 = scmp.eq.s32.totalorder %s18, 1
    %p181 = scmp.ne.s32.totalorder %s176, %s178
    %p182 = scmp.eq.s32.totalorder %s18, 0
    %p183 = por %p181, %p182
    %p184 = scmp.ne.s32.totalorder %s176, %s178
    %p185 = scmp.eq.s32.totalorder %s23, 1
    %p186 = por %p184, %p185
    %p187 = scmp.ne.s32.totalorder %s178, %s179
    %p188 = scmp.eq.s32.totalorder %s23, 0
    %p189 = por %p187, %p188
    %p190 = scmp.ne.s32.totalorder %s178, %s179
    %p191 = scmp.eq.s32.totalorder %s24, 1
    %p192 = por %p190, %p191
    %p194 = scmp.ne.s32.totalorder %s179, %s193
    %p195 = scmp.eq.s32.totalorder %s24, 0
    %p196 = por %p194, %p195
    %s198 = sadd.s32 %s197, 1
    %p201 = scmp.eq.s32.totalorder %s18, 1
    %p202 = scmp.ne.s32.totalorder %s197, %s199
    %p203 = scmp.eq.s32.totalorder %s18, 0
    %p204 = por %p202, %p203
    %p205 = scmp.ne.s32.totalorder %s197, %s199
    %p206 = scmp.eq.s32.totalorder %s23, 1
    %p207 = por %p205, %p206
    %p208 = scmp.ne.s32.totalorder %s199, %s200
    %p209 = scmp.eq.s32.totalorder %s23, 0
    %p210 = por %p208, %p209
    %p211 = scmp.ne.s32.totalorder %s199, %s200
    %p212 = scmp.eq.s32.totalorder %s24, 1
    %p213 = por %p211, %p212
    %p215 = scmp.ne.s32.totalorder %s200, %s214
    %p216 = scmp.eq.s32.totalorder %s24, 0
    %p217 = por %p215, %p216
    %s219 = sadd.s32 %s218, 1
    %p222 = scmp.eq.s32.totalorder %s18, 1
    %p223 = scmp.ne.s32.totalorder %s218, %s220
    %p224 = scmp.eq.s32.totalorder %s18, 0
    %p225 = por %p223, %p224
    %p226 = scmp.ne.s32.totalorder %s218, %s220
    %p227 = scmp.eq.s32.totalorder %s23, 1
    %p228 = por %p226, %p227
    %p229 = scmp.ne.s32.totalorder %s220, %s221
    %p230 = scmp.eq.s32.totalorder %s23, 0
    %p231 = por %p229, %p230
    %p232 = scmp.ne.s32.totalorder %s220, %s221
    %p233 = scmp.eq.s32.totalorder %s24, 1
    %p234 = por %p232, %p233
    %p236 = scmp.ne.s32.totalorder %s221, %s235
    %p237 = scmp.eq.s32.totalorder %s24, 0
    %p238 = por %p236, %p237
    %s240 = sadd.s32 %s239, 1
    %p243 = scmp.eq.s32.totalorder %s18, 1
    %p244 = scmp.ne.s32.totalorder %s239, %s241
    %p245 = scmp.eq.s32.totalorder %s18, 0
    %p246 = por %p244, %p245
    %p247 = scmp.ne.s32.totalorder %s239, %s241
    %p248 = scmp.eq.s32.totalorder %s23, 1
    %p249 = por %p247, %p248
    %p250 = scmp.ne.s32.totalorder %s241, %s242
    %p251 = scmp.eq.s32.totalorder %s23, 0
    %p252 = por %p250, %p251
    %p253 = scmp.ne.s32.totalorder %s241, %s242
    %p254 = scmp.eq.s32.totalorder %s24, 1
    %p255 = por %p253, %p254
    %p257 = scmp.ne.s32.totalorder %s242, %s256
    %p258 = scmp.eq.s32.totalorder %s24, 0
    %p259 = por %p257, %p258
    %s261 = sadd.s32 %s260, 1
    %p264 = scmp.eq.s32.totalorder %s18, 1
    %p265 = scmp.ne.s32.totalorder %s260, %s262
    %p266 = scmp.eq.s32.totalorder %s18, 0
    %p267 = por %p265, %p266
    %p268 = scmp.ne.s32.totalorder %s260, %s262
    %p269 = scmp.eq.s32.totalorder %s23, 1
    %p270 = por %p268, %p269
    %p271 = scmp.ne.s32.totalorder %s262, %s263
    %p272 = scmp.eq.s32.totalorder %s23, 0
    %p273 = por %p271, %p272
    %p274 = scmp.ne.s32.totalorder %s262, %s263
    %p275 = scmp.eq.s32.totalorder %s24, 1
    %p276 = por %p274, %p275
    %p278 = scmp.ne.s32.totalorder %s263, %s277
    %p279 = scmp.eq.s32.totalorder %s24, 0
    %p280 = por %p278, %p279
    %s282 = sadd.s32 %s281, 1
    %p285 = scmp.eq.s32.totalorder %s18, 1
    %p286 = scmp.ne.s32.totalorder %s281, %s283
    %p287 = scmp.eq.s32.totalorder %s18, 0
    %p288 = por %p286, %p287
    %p289 = scmp.ne.s32.totalorder %s281, %s283
    %p290 = scmp.eq.s32.totalorder %s23, 1
    %p291 = por %p289, %p290
    %p292 = scmp.ne.s32.totalorder %s283, %s284
    %p293 = scmp.eq.s32.totalorder %s23, 0
    %p294 = por %p292, %p293
    %p295 = scmp.ne.s32.totalorder %s283, %s284
    %p296 = scmp.eq.s32.totalorder %s24, 1
    %p297 = por %p295, %p296
    %p299 = scmp.ne.s32.totalorder %s284, %s298
    %p300 = scmp.eq.s32.totalorder %s24, 0
    %p301 = por %p299, %p300
    %s302 = ssub.s32 %s25, %s37
    %s303 = ssub.s32 %s26, %s33
    %s304 = sor.u32 %s302, %s303
    %p305 = scmp.eq.s32.totalorder %s304, 0
    %s307 = sadd.s32 %s306, 1
    %s308 = scalar_select %p305, %s306, %s307
    %p311 = pneg %p305
    %p312 = scmp.eq.s32.totalorder %s18, 1
    %p313 = por %p311, %p312
    %p314 = scmp.ne.s32.totalorder %s306, %s309
    %p315 = scmp.eq.s32.totalorder %s18, 0
    %p316 = por %p314, %p315
    %p317 = scmp.ne.s32.totalorder %s306, %s309
    %p318 = scmp.eq.s32.totalorder %s23, 1
    %p319 = por %p317, %p318
    %p320 = scmp.ne.s32.totalorder %s309, %s310
    %p321 = scmp.eq.s32.totalorder %s23, 0
    %p322 = por %p320, %p321
    %p323 = scmp.ne.s32.totalorder %s309, %s310
    %p324 = scmp.eq.s32.totalorder %s24, 1
    %p325 = por %p323, %p324
    %p327 = scmp.ne.s32.totalorder %s310, %s326
    %p328 = scmp.eq.s32.totalorder %s24, 0
    %p329 = por %p327, %p328
    %p330 = scmp.le.s32.totalorder 1, %s18
    %p331 = scmp.lt.s32.totalorder %s18, 3
    %p332 = pnand %p330, %p331
    %p333 = pneg %p332
    // Predicated region
    $region9: #{transformer_decoder.9} parent=5 // pred_check
      _
    $region10: #{transformer_decoder.9} parent=5 // pred_check_branch
      %335 = sbr.rel (%p332) target = $region12
    $region11: #{transformer_decoder.9} parent=5 // pred_region
      %s336 = ssub.s32 %s18, 1
      // Predicated region
      $region13: #{transformer_decoder.9} parent=11 // pred_check
        %p337 = pneg %p105
      $region14: #{transformer_decoder.9} parent=11 // pred_check_branch
        %339 = sbr.rel (%p337) target = $region16
      $region15: #{transformer_decoder.9} parent=11 // pred_region
        _
      $region16: #{transformer_decoder.9} parent=11 // pred_fallthru
        _
      // Predicated region
      $region17: #{transformer_decoder.9} parent=11 // pred_check
        %p340 = pneg %p126
      $region18: #{transformer_decoder.9} parent=11 // pred_check_branch
        %342 = sbr.rel (%p340) target = $region20
      $region19: #{transformer_decoder.9} parent=11 // pred_region
        _
      $region20: #{transformer_decoder.9} parent=11 // pred_fallthru
        _
      // Predicated region
      $region21: #{transformer_decoder.9} parent=11 // pred_check
        %p343 = pneg %p147
      $region22: #{transformer_decoder.9} parent=11 // pred_check_branch
        %345 = sbr.rel (%p343) target = $region24
      $region23: #{transformer_decoder.9} parent=11 // pred_region
        _
      $region24: #{transformer_decoder.9} parent=11 // pred_fallthru
        _
      // Predicated region
      $region25: #{transformer_decoder.9} parent=11 // pred_check
        %p346 = pneg %p168
      $region26: #{transformer_decoder.9} parent=11 // pred_check_branch
        %348 = sbr.rel (%p346) target = $region28
      $region27: #{transformer_decoder.9} parent=11 // pred_region
        _
      $region28: #{transformer_decoder.9} parent=11 // pred_fallthru
        _
      // Predicated region
      $region29: #{transformer_decoder.9} parent=11 // pred_check
        %p349 = pneg %p189
      $region30: #{transformer_decoder.9} parent=11 // pred_check_branch
        %351 = sbr.rel (%p349) target = $region32
      $region31: #{transformer_decoder.9} parent=11 // pred_region
        _
      $region32: #{transformer_decoder.9} parent=11 // pred_fallthru
        _
      // Predicated region
      $region33: #{transformer_decoder.9} parent=11 // pred_check
        %p352 = pneg %p210
      $region34: #{transformer_decoder.9} parent=11 // pred_check_branch
        %354 = sbr.rel (%p352) target = $region36
      $region35: #{transformer_decoder.9} parent=11 // pred_region
        _
      $region36: #{transformer_decoder.9} parent=11 // pred_fallthru
        _
      // Predicated region
      $region37: #{transformer_decoder.9} parent=11 // pred_check
        %p355 = pneg %p231
      $region38: #{transformer_decoder.9} parent=11 // pred_check_branch
        %357 = sbr.rel (%p355) target = $region40
      $region39: #{transformer_decoder.9} parent=11 // pred_region
        _
      $region40: #{transformer_decoder.9} parent=11 // pred_fallthru
        _
      // Predicated region
      $region41: #{transformer_decoder.9} parent=11 // pred_check
        %p358 = pneg %p252
      $region42: #{transformer_decoder.9} parent=11 // pred_check_branch
        %360 = sbr.rel (%p358) target = $region44
      $region43: #{transformer_decoder.9} parent=11 // pred_region
        _
      $region44: #{transformer_decoder.9} parent=11 // pred_fallthru
        _
      // Predicated region
      $region45: #{transformer_decoder.9} parent=11 // pred_check
        %p361 = pneg %p273
      $region46: #{transformer_decoder.9} parent=11 // pred_check_branch
        %363 = sbr.rel (%p361) target = $region48
      $region47: #{transformer_decoder.9} parent=11 // pred_region
        _
      $region48: #{transformer_decoder.9} parent=11 // pred_fallthru
        _
      // Predicated region
      $region49: #{transformer_decoder.9} parent=11 // pred_check
        %p364 = pneg %p294
      $region50: #{transformer_decoder.9} parent=11 // pred_check_branch
        %366 = sbr.rel (%p364) target = $region52
      $region51: #{transformer_decoder.9} parent=11 // pred_region
        _
      $region52: #{transformer_decoder.9} parent=11 // pred_fallthru
        _
    $region12: #{transformer_decoder.9} parent=5 // pred_fallthru
      _
    %p367 = scmp.lt.s32.totalorder %s18, 2
    // Predicated region
    $region53: #{transformer_decoder.9} parent=5 // pred_check
      %p368 = pneg %p367
    $region54: #{transformer_decoder.9} parent=5 // pred_check_branch
      %370 = sbr.rel (%p368) target = $region56
    $region55: #{transformer_decoder.9} parent=5 // pred_region
      // Predicated region
      $region57: #{transformer_decoder.9} parent=55 // pred_check
        %p371 = pneg %p52
      $region58: #{transformer_decoder.9} parent=55 // pred_check_branch
        %373 = sbr.rel (%p371) target = $region60
      $region59: #{transformer_decoder.9} parent=55 // pred_region
        %p374 = scmp.lt.s32.totalorder %s25, 1
        %s375 = scalar_select %p374, %s25, 1
        %p376 = scmp.lt.s32.totalorder %s26, 0
        %s377 = scalar_select %p376, %s26, 0
        %s378 = sadd.s32 %s377, %s375
        %s379 = smul.addr %s378, 8
        %s380 = scalar_lea.vmem %s0, %s379
      $region60: #{transformer_decoder.9} parent=55 // pred_fallthru
        _
      // Predicated region
      $region61: #{transformer_decoder.9} parent=55 // pred_check
        %p381 = pneg %p78
      $region62: #{transformer_decoder.9} parent=55 // pred_check_branch
        %383 = sbr.rel (%p381) target = $region64
      $region63: #{transformer_decoder.9} parent=55 // pred_region
        %p384 = scmp.lt.s32.totalorder %s25, 1
        %s385 = scalar_select %p384, %s25, 1
        %s386 = smul.addr %s385, 8
        %s387 = scalar_lea.vmem %s1, %s386
      $region64: #{transformer_decoder.9} parent=55 // pred_fallthru
        _
    $region56: #{transformer_decoder.9} parent=5 // pred_fallthru
      _
    %p388 = scmp.le.s32.totalorder 1, %s18
    %p389 = scmp.lt.s32.totalorder %s18, 3
    %p390 = pnand %p388, %p389
    %p391 = pneg %p390
    // Predicated region
    $region65: #{transformer_decoder.9} parent=5 // pred_check
      _
    $region66: #{transformer_decoder.9} parent=5 // pred_check_branch
      %393 = sbr.rel (%p390) target = $region68
    $region67: #{transformer_decoder.9} parent=5 // pred_region
      %s394 = ssub.s32 %s18, 1
      %p395 = scmp.lt.s32.totalorder %s27, 1
      %s396 = scalar_select %p395, %s27, 1
      %p397 = scmp.lt.s32.totalorder %s28, 0
      %s398 = scalar_select %p397, %s28, 0
      %s399 = sadd.s32 %s398, %s396
      %s400 = smul.addr %s399, 8
      %s401 = scalar_lea.vmem %s0, %s400
      %p402 = pneg %p58
      %p403 = pneg %p55
      %p404 = scmp.lt.s32.totalorder %s27, 1
      %s405 = scalar_select %p404, %s27, 1
      %s406 = smul.addr %s405, 8
      %s407 = scalar_lea.vmem %s1, %s406
      %p408 = pneg %p84
      %p409 = pneg %p81
      %p410 = pneg %p105
      %p411 = pneg %p102
      %p412 = pneg %p126
      %p413 = pneg %p123
      %p414 = pneg %p147
      %p415 = pneg %p144
      %p416 = pneg %p168
      %p417 = pneg %p165
      %p418 = pneg %p189
      %p419 = pneg %p186
      %p420 = pneg %p210
      %p421 = pneg %p207
      %p422 = pneg %p231
      %p423 = pneg %p228
      %p424 = pneg %p252
      %p425 = pneg %p249
      %p426 = pneg %p273
      %p427 = pneg %p270
      %p428 = pneg %p294
      %p429 = pneg %p291
      %p430 = pneg %p322
      %p431 = pneg %p319
      %p432 = scmp.lt.s32.totalorder %s27, 1
      %s433 = scalar_select %p432, %s27, 1
      %p434 = scmp.lt.s32.totalorder %s28, 0
      %s435 = scalar_select %p434, %s28, 0
      %s436 = sadd.s32 %s435, %s433
      %s437 = smul.addr %s436, 8
      %s438 = scalar_lea.vmem %s12, %s437
      %p439 = scmp.lt.s32.totalorder %s27, 1
      %s440 = scalar_select %p439, %s27, 1
      %p441 = scmp.lt.s32.totalorder %s28, 0
      %s442 = scalar_select %p441, %s28, 0
      %s443 = sadd.s32 %s442, %s440
      %s444 = smul.addr %s443, 8
      %s445 = scalar_lea.vmem %s0, %s444
      %p446 = scmp.lt.s32.totalorder %s27, 1
      %s447 = scalar_select %p446, %s27, 1
      %s448 = smul.addr %s447, 8
      %s449 = scalar_lea.vmem %s1, %s448
      %p450 = scmp.lt.s32.totalorder %s27, 1
      %s451 = scalar_select %p450, %s27, 1
      %p452 = scmp.lt.s32.totalorder %s28, 0
      %s453 = scalar_select %p452, %s28, 0
      %s454 = sadd.s32 %s453, %s451
      %s455 = smul.addr %s454, 8
      %s456 = scalar_lea.vmem %s12, %s455
      %v458 = vld [vmem:[%s445] sm:$0xff]
      %v459 = vld [vmem:[%s449] sm:$0xff]
      %v460 = vpack.c.bf16 %v458, %v458
      %v461 = vpack.c.bf16 %v459, %v459
      %v462 = vld [vmem:[%s2] sm:$0xf]
      %v463 = vld [vmem:[%s2 + $0x4] sm:$0xf]
      %v464 = vld [vmem:[%s2 + $0x8] sm:$0xf]
      %v465 = vld [vmem:[%s2 + $0xc] sm:$0xf]
      %v466 = vld [vmem:[%s3] sm:$0x1]
      %v468 = vlaneseq
      %v469 = vshrl.u32 %v468, 7
      %v470 = vsub.s32 0, %v469
      %v471 = vrot.slane %v466, %v470
      %v477 = vunpack.c.l.b16 %v462
      %v478 = vunpack.c.l.b16 %v463
      %v479 = vunpack.c.l.b16 %v464
      %v480 = vunpack.c.l.b16 %v465
      %v481 = vpack.c.b16 %v478, %v477
      %v482 = vpack.c.b16 %v480, %v479
      %vm485 = vcmask 261120
      %v487 = vsel %vm485, %v460, 0
      %489 = vmatprep.subr.bf16.mxu0 0
      %490 = vmatpush1.bf16.msra.mxu0 0
      %491 = vmatprep.subr.bf16.mxu0 0
      %492 = vmatpush1.bf16.msra.mxu0 0
      %493 = vmatprep.subr.bf16.mxu0 0
      %494 = vmatpush1.bf16.msra.mxu0 0
      %495 = vmatprep.subr.bf16.mxu0 0
      %496 = vmatpush1.bf16.msra.mxu0 0
      %497 = vmatprep.subr.bf16.mxu0 0
      %498 = vmatpush1.bf16.msra.mxu0 0
      %499 = vmatprep.subr.bf16.mxu0 0
      %500 = vmatpush1.bf16.msra.mxu0 0
      %501 = vmatprep.subr.bf16.mxu0 0
      %502 = vmatpush1.bf16.msra.mxu0 %v482
      %503 = vmatprep.subr.bf16.mxu0 0
      %504 = vmatpush1.bf16.msra.mxu0 %v481
      %505 = vmatprep.subr.bf16.mxu0 0
      %506 = vmatpush2.bf16.msra.mxu0 0
      %507 = vmatprep.subr.bf16.mxu0 0
      %508 = vmatpush2.bf16.msra.mxu0 0
      %509 = vmatprep.subr.bf16.mxu0 0
      %510 = vmatpush2.bf16.msra.mxu0 0
      %511 = vmatprep.subr.bf16.mxu0 0
      %512 = vmatpush2.bf16.msra.mxu0 0
      %513 = vmatprep.subr.bf16.mxu0 0
      %514 = vmatpush2.bf16.msra.mxu0 0
      %515 = vmatprep.subr.bf16.mxu0 0
      %516 = vmatpush2.bf16.msra.mxu0 0
      %517 = vmatprep.subr.bf16.mxu0 0
      %518 = vmatpush2.bf16.msra.mxu0 0
      %519 = vmatprep.subr.bf16.mxu0 0
      %520 = vmatpush2.bf16.msra.mxu0 0
      %521 = vmatprep.mubr.bf16.mxu0 0
      %522 = vmatmul.mubr.bf16.gmra.mxu0 %v487
      %v523 = vpop.f32.mrf.mxu0
      %v524 = vadd.f32 %v471, %v523
      %v525 = vpop.f32.mrf.mxu0
      %v526 = vpop.f32.mrf.mxu0
      %v527 = vpop.f32.mrf.mxu0
      %528 = vdwg.mxu0
      %v529 = vld [vmem:[%s4] sm:$0xf]
      %v530 = vld [vmem:[%s4 + $0x4] sm:$0xf]
      %v531 = vld [vmem:[%s4 + $0x8] sm:$0xf]
      %v532 = vld [vmem:[%s4 + $0xc] sm:$0xf]
      %v533 = vld [vmem:[%s5] sm:$0x1]
      %v535 = vlaneseq
      %v536 = vshrl.u32 %v535, 7
      %v537 = vsub.s32 0, %v536
      %v538 = vrot.slane %v533, %v537
      %v544 = vunpack.c.l.b16 %v529
      %v545 = vunpack.c.l.b16 %v530
      %v546 = vunpack.c.l.b16 %v531
      %v547 = vunpack.c.l.b16 %v532
      %v548 = vpack.c.b16 %v545, %v544
      %v549 = vpack.c.b16 %v547, %v546
      %v553 = vsel %vm485, %v461, 0
      %555 = vmatprep.subr.bf16.mxu0 0
      %556 = vmatpush1.bf16.msra.mxu0 0
      %557 = vmatprep.subr.bf16.mxu0 0
      %558 = vmatpush1.bf16.msra.mxu0 0
      %559 = vmatprep.subr.bf16.mxu0 0
      %560 = vmatpush1.bf16.msra.mxu0 0
      %561 = vmatprep.subr.bf16.mxu0 0
      %562 = vmatpush1.bf16.msra.mxu0 0
      %563 = vmatprep.subr.bf16.mxu0 0
      %564 = vmatpush1.bf16.msra.mxu0 0
      %565 = vmatprep.subr.bf16.mxu0 0
      %566 = vmatpush1.bf16.msra.mxu0 0
      %567 = vmatprep.subr.bf16.mxu0 0
      %568 = vmatpush1.bf16.msra.mxu0 %v549
      %569 = vmatprep.subr.bf16.mxu0 0
      %570 = vmatpush1.bf16.msra.mxu0 %v548
      %571 = vmatprep.subr.bf16.mxu0 0
      %572 = vmatpush2.bf16.msra.mxu0 0
      %573 = vmatprep.subr.bf16.mxu0 0
      %574 = vmatpush2.bf16.msra.mxu0 0
      %575 = vmatprep.subr.bf16.mxu0 0
      %576 = vmatpush2.bf16.msra.mxu0 0
      %577 = vmatprep.subr.bf16.mxu0 0
      %578 = vmatpush2.bf16.msra.mxu0 0
      %579 = vmatprep.subr.bf16.mxu0 0
      %580 = vmatpush2.bf16.msra.mxu0 0
      %581 = vmatprep.subr.bf16.mxu0 0
      %582 = vmatpush2.bf16.msra.mxu0 0
      %583 = vmatprep.subr.bf16.mxu0 0
      %584 = vmatpush2.bf16.msra.mxu0 0
      %585 = vmatprep.subr.bf16.mxu0 0
      %586 = vmatpush2.bf16.msra.mxu0 0
      %587 = vmatprep.mubr.bf16.mxu0 0
      %588 = vmatmul.mubr.bf16.gmra.mxu0 %v553
      %v589 = vpop.f32.mrf.mxu0
      %v590 = vadd.f32 %v538, %v589
      %v591 = vpop.f32.mrf.mxu0
      %v592 = vpop.f32.mrf.mxu0
      %v593 = vpop.f32.mrf.mxu0
      %594 = vdwg.mxu0
      %v595 = vld [vmem:[%s6] sm:$0xf]
      %v596 = vld [vmem:[%s6 + $0x4] sm:$0xf]
      %v597 = vld [vmem:[%s6 + $0x8] sm:$0xf]
      %v598 = vld [vmem:[%s6 + $0xc] sm:$0xf]
      %v599 = vld [vmem:[%s7] sm:$0x1]
      %v601 = vlaneseq
      %v602 = vshrl.u32 %v601, 7
      %v603 = vsub.s32 0, %v602
      %v604 = vrot.slane %v599, %v603
      %v610 = vunpack.c.l.b16 %v595
      %v611 = vunpack.c.l.b16 %v596
      %v612 = vunpack.c.l.b16 %v597
      %v613 = vunpack.c.l.b16 %v598
      %v614 = vpack.c.b16 %v611, %v610
      %v615 = vpack.c.b16 %v613, %v612
      %618 = vmatprep.subr.bf16.mxu0 0
      %619 = vmatpush1.bf16.msra.mxu0 0
      %620 = vmatprep.subr.bf16.mxu0 0
      %621 = vmatpush1.bf16.msra.mxu0 0
      %622 = vmatprep.subr.bf16.mxu0 0
      %623 = vmatpush1.bf16.msra.mxu0 0
      %624 = vmatprep.subr.bf16.mxu0 0
      %625 = vmatpush1.bf16.msra.mxu0 0
      %626 = vmatprep.subr.bf16.mxu0 0
      %627 = vmatpush1.bf16.msra.mxu0 0
      %628 = vmatprep.subr.bf16.mxu0 0
      %629 = vmatpush1.bf16.msra.mxu0 0
      %630 = vmatprep.subr.bf16.mxu0 0
      %631 = vmatpush1.bf16.msra.mxu0 %v615
      %632 = vmatprep.subr.bf16.mxu0 0
      %633 = vmatpush1.bf16.msra.mxu0 %v614
      %634 = vmatprep.subr.bf16.mxu0 0
      %635 = vmatpush2.bf16.msra.mxu0 0
      %636 = vmatprep.subr.bf16.mxu0 0
      %637 = vmatpush2.bf16.msra.mxu0 0
      %638 = vmatprep.subr.bf16.mxu0 0
      %639 = vmatpush2.bf16.msra.mxu0 0
      %640 = vmatprep.subr.bf16.mxu0 0
      %641 = vmatpush2.bf16.msra.mxu0 0
      %642 = vmatprep.subr.bf16.mxu0 0
      %643 = vmatpush2.bf16.msra.mxu0 0
      %644 = vmatprep.subr.bf16.mxu0 0
      %645 = vmatpush2.bf16.msra.mxu0 0
      %646 = vmatprep.subr.bf16.mxu0 0
      %647 = vmatpush2.bf16.msra.mxu0 0
      %648 = vmatprep.subr.bf16.mxu0 0
      %649 = vmatpush2.bf16.msra.mxu0 0
      %650 = vmatprep.mubr.bf16.mxu0 0
      %651 = vmatmul.mubr.bf16.gmra.mxu0 %v553
      %v652 = vpop.f32.mrf.mxu0
      %v653 = vadd.f32 %v604, %v652
      %v654 = vpop.f32.mrf.mxu0
      %v655 = vpop.f32.mrf.mxu0
      %v656 = vpop.f32.mrf.mxu0
      %657 = vdwg.mxu0
      %v658 = vpack.c.bf16 %v524, %v524
      %v659 = vpack.c.bf16 %v590, %v590
      %v660 = vpack.c.bf16 %v653, %v653
      %vm661 = vcmask 64512
      %v663 = vsel %vm661, %v658, 0
      %v666 = vsel %vm661, %v659, 0
      %668 = vmatprep.subr.bf16.mxu0 0
      %669 = vmatpush1.bf16.xpose.msra.mxu0 0
      %670 = vmatprep.subr.bf16.mxu0 0
      %671 = vmatpush1.bf16.xpose.msra.mxu0 0
      %672 = vmatprep.subr.bf16.mxu0 0
      %673 = vmatpush1.bf16.xpose.msra.mxu0 0
      %674 = vmatprep.subr.bf16.mxu0 0
      %675 = vmatpush1.bf16.xpose.msra.mxu0 0
      %676 = vmatprep.subr.bf16.mxu0 0
      %677 = vmatpush1.bf16.xpose.msra.mxu0 0
      %678 = vmatprep.subr.bf16.mxu0 0
      %679 = vmatpush1.bf16.xpose.msra.mxu0 0
      %680 = vmatprep.subr.bf16.mxu0 0
      %681 = vmatpush1.bf16.xpose.msra.mxu0 0
      %682 = vmatprep.subr.bf16.mxu0 0
      %683 = vmatpush1.bf16.xpose.msra.mxu0 %v666
      %684 = vmatprep.subr.bf16.mxu0 0
      %685 = vmatpush2.bf16.xpose.msra.mxu0 0
      %686 = vmatprep.subr.bf16.mxu0 0
      %687 = vmatpush2.bf16.xpose.msra.mxu0 0
      %688 = vmatprep.subr.bf16.mxu0 0
      %689 = vmatpush2.bf16.xpose.msra.mxu0 0
      %690 = vmatprep.subr.bf16.mxu0 0
      %691 = vmatpush2.bf16.xpose.msra.mxu0 0
      %692 = vmatprep.subr.bf16.mxu0 0
      %693 = vmatpush2.bf16.xpose.msra.mxu0 0
      %694 = vmatprep.subr.bf16.mxu0 0
      %695 = vmatpush2.bf16.xpose.msra.mxu0 0
      %696 = vmatprep.subr.bf16.mxu0 0
      %697 = vmatpush2.bf16.xpose.msra.mxu0 0
      %698 = vmatprep.subr.bf16.mxu0 0
      %699 = vmatpush2.bf16.xpose.msra.mxu0 0
      %700 = vmatprep.mubr.bf16.mxu0 0
      %701 = vmatmul.mubr.bf16.gmra.mxu0 %v663
      %v702 = vpop.f32.mrf.mxu0
      %v703 = vadd.f32 0.0, %v702
      %v704 = vpop.f32.mrf.mxu0
      %v705 = vpop.f32.mrf.mxu0
      %v706 = vpop.f32.mrf.mxu0
      %707 = vdwg.mxu0
      %v708 = vsel %vm661, %v703, -inf
      %709 = vmax.xlane.f32.xlu0 %v708
      %v710 = vpop.xlane.xlu0 %709
      %v711 = vsub.f32 %v703, %v710
      %v712 = vmul.f32 %v711, 1.442695
      %v713 = vpow.pop %v712
      %v714 = vsel %vm661, %v713, 0.0
      %715 = vadd.xlane.f32.xlu0 %v714
      %v716 = vpop.xlane.xlu0 %715
      %v717 = vrcp.pop %v716
      %v718 = vpack.c.bf16 %v713, %v713
      %v720 = vsel %vm661, %v718, 0
      %vm722 = vcmask 1043456
      %v724 = vsel %vm722, %v660, 0
      %726 = vmatprep.subr.bf16.mxu0 0
      %727 = vmatpush1.bf16.msra.mxu0 0
      %728 = vmatprep.subr.bf16.mxu0 0
      %729 = vmatpush1.bf16.msra.mxu0 0
      %730 = vmatprep.subr.bf16.mxu0 0
      %731 = vmatpush1.bf16.msra.mxu0 0
      %732 = vmatprep.subr.bf16.mxu0 0
      %733 = vmatpush1.bf16.msra.mxu0 0
      %734 = vmatprep.subr.bf16.mxu0 0
      %735 = vmatpush1.bf16.msra.mxu0 0
      %736 = vmatprep.subr.bf16.mxu0 0
      %737 = vmatpush1.bf16.msra.mxu0 0
      %738 = vmatprep.subr.bf16.mxu0 0
      %739 = vmatpush1.bf16.msra.mxu0 0
      %740 = vmatprep.subr.bf16.mxu0 0
      %741 = vmatpush1.bf16.msra.mxu0 %v724
      %742 = vmatprep.subr.bf16.mxu0 0
      %743 = vmatpush2.bf16.msra.mxu0 0
      %744 = vmatprep.subr.bf16.mxu0 0
      %745 = vmatpush2.bf16.msra.mxu0 0
      %746 = vmatprep.subr.bf16.mxu0 0
      %747 = vmatpush2.bf16.msra.mxu0 0
      %748 = vmatprep.subr.bf16.mxu0 0
      %749 = vmatpush2.bf16.msra.mxu0 0
      %750 = vmatprep.subr.bf16.mxu0 0
      %751 = vmatpush2.bf16.msra.mxu0 0
      %752 = vmatprep.subr.bf16.mxu0 0
      %753 = vmatpush2.bf16.msra.mxu0 0
      %754 = vmatprep.subr.bf16.mxu0 0
      %755 = vmatpush2.bf16.msra.mxu0 0
      %756 = vmatprep.subr.bf16.mxu0 0
      %757 = vmatpush2.bf16.msra.mxu0 0
      %758 = vmatprep.mubr.bf16.mxu0 0
      %759 = vmatmul.mubr.bf16.gmra.mxu0 %v720
      %v760 = vpop.f32.mrf.mxu0
      %v761 = vadd.f32 0.0, %v760
      %v762 = vpop.f32.mrf.mxu0
      %v763 = vpop.f32.mrf.mxu0
      %v764 = vpop.f32.mrf.mxu0
      %765 = vdwg.mxu0
      %v766 = vmul.f32 %v761, %v717
      %767 = vst.msk [vmem:[#allocation2] sm:$0xff] %vm661, %v766
      %769 = vrot.lane.b32.xlu0 %v658, 120
      %v770 = vpop.permute.xlu0 %769
      %772 = vrot.lane.b32.xlu0 %v659, 120
      %v773 = vpop.permute.xlu0 %772
      %v775 = vsel %vm661, %v770, 0
      %v778 = vsel %vm661, %v773, 0
      %780 = vmatprep.subr.bf16.mxu0 0
      %781 = vmatpush1.bf16.xpose.msra.mxu0 0
      %782 = vmatprep.subr.bf16.mxu0 0
      %783 = vmatpush1.bf16.xpose.msra.mxu0 0
      %784 = vmatprep.subr.bf16.mxu0 0
      %785 = vmatpush1.bf16.xpose.msra.mxu0 0
      %786 = vmatprep.subr.bf16.mxu0 0
      %787 = vmatpush1.bf16.xpose.msra.mxu0 0
      %788 = vmatprep.subr.bf16.mxu0 0
      %789 = vmatpush1.bf16.xpose.msra.mxu0 0
      %790 = vmatprep.subr.bf16.mxu0 0
      %791 = vmatpush1.bf16.xpose.msra.mxu0 0
      %792 = vmatprep.subr.bf16.mxu0 0
      %793 = vmatpush1.bf16.xpose.msra.mxu0 0
      %794 = vmatprep.subr.bf16.mxu0 0
      %795 = vmatpush1.bf16.xpose.msra.mxu0 %v778
      %796 = vmatprep.subr.bf16.mxu0 0
      %797 = vmatpush2.bf16.xpose.msra.mxu0 0
      %798 = vmatprep.subr.bf16.mxu0 0
      %799 = vmatpush2.bf16.xpose.msra.mxu0 0
      %800 = vmatprep.subr.bf16.mxu0 0
      %801 = vmatpush2.bf16.xpose.msra.mxu0 0
      %802 = vmatprep.subr.bf16.mxu0 0
      %803 = vmatpush2.bf16.xpose.msra.mxu0 0
      %804 = vmatprep.subr.bf16.mxu0 0
      %805 = vmatpush2.bf16.xpose.msra.mxu0 0
      %806 = vmatprep.subr.bf16.mxu0 0
      %807 = vmatpush2.bf16.xpose.msra.mxu0 0
      %808 = vmatprep.subr.bf16.mxu0 0
      %809 = vmatpush2.bf16.xpose.msra.mxu0 0
      %810 = vmatprep.subr.bf16.mxu0 0
      %811 = vmatpush2.bf16.xpose.msra.mxu0 0
      %812 = vmatprep.mubr.bf16.mxu0 0
      %813 = vmatmul.mubr.bf16.gmra.mxu0 %v775
      %v814 = vpop.f32.mrf.mxu0
      %v815 = vadd.f32 0.0, %v814
      %v816 = vpop.f32.mrf.mxu0
      %v817 = vpop.f32.mrf.mxu0
      %v818 = vpop.f32.mrf.mxu0
      %819 = vdwg.mxu0
      %v820 = vsel %vm661, %v815, -inf
      %821 = vmax.xlane.f32.xlu0 %v820
      %v822 = vpop.xlane.xlu0 %821
      %v823 = vsub.f32 %v815, %v822
      %v824 = vmul.f32 %v823, 1.442695
      %v825 = vpow.pop %v824
      %v826 = vsel %vm661, %v825, 0.0
      %827 = vadd.xlane.f32.xlu0 %v826
      %v828 = vpop.xlane.xlu0 %827
      %v829 = vrcp.pop %v828
      %v830 = vpack.c.bf16 %v825, %v825
      %832 = vrot.lane.b32.xlu0 %v660, 120
      %v833 = vpop.permute.xlu0 %832
      %v835 = vsel %vm661, %v830, 0
      %v838 = vsel %vm722, %v833, 0
      %840 = vmatprep.subr.bf16.mxu0 0
      %841 = vmatpush1.bf16.msra.mxu0 0
      %842 = vmatprep.subr.bf16.mxu0 0
      %843 = vmatpush1.bf16.msra.mxu0 0
      %844 = vmatprep.subr.bf16.mxu0 0
      %845 = vmatpush1.bf16.msra.mxu0 0
      %846 = vmatprep.subr.bf16.mxu0 0
      %847 = vmatpush1.bf16.msra.mxu0 0
      %848 = vmatprep.subr.bf16.mxu0 0
      %849 = vmatpush1.bf16.msra.mxu0 0
      %850 = vmatprep.subr.bf16.mxu0 0
      %851 = vmatpush1.bf16.msra.mxu0 0
      %852 = vmatprep.subr.bf16.mxu0 0
      %853 = vmatpush1.bf16.msra.mxu0 0
      %854 = vmatprep.subr.bf16.mxu0 0
      %855 = vmatpush1.bf16.msra.mxu0 %v838
      %856 = vmatprep.subr.bf16.mxu0 0
      %857 = vmatpush2.bf16.msra.mxu0 0
      %858 = vmatprep.subr.bf16.mxu0 0
      %859 = vmatpush2.bf16.msra.mxu0 0
      %860 = vmatprep.subr.bf16.mxu0 0
      %861 = vmatpush2.bf16.msra.mxu0 0
      %862 = vmatprep.subr.bf16.mxu0 0
      %863 = vmatpush2.bf16.msra.mxu0 0
      %864 = vmatprep.subr.bf16.mxu0 0
      %865 = vmatpush2.bf16.msra.mxu0 0
      %866 = vmatprep.subr.bf16.mxu0 0
      %867 = vmatpush2.bf16.msra.mxu0 0
      %868 = vmatprep.subr.bf16.mxu0 0
      %869 = vmatpush2.bf16.msra.mxu0 0
      %870 = vmatprep.subr.bf16.mxu0 0
      %871 = vmatpush2.bf16.msra.mxu0 0
      %872 = vmatprep.mubr.bf16.mxu0 0
      %873 = vmatmul.mubr.bf16.gmra.mxu0 %v835
      %v874 = vpop.f32.mrf.mxu0
      %v875 = vadd.f32 0.0, %v874
      %v876 = vpop.f32.mrf.mxu0
      %v877 = vpop.f32.mrf.mxu0
      %v878 = vpop.f32.mrf.mxu0
      %879 = vdwg.mxu0
      %v880 = vmul.f32 %v875, %v829
      %882 = vrot.lane.b32.xlu0 %v880, 8
      %v883 = vpop.permute.xlu0 %882
      %vm885 = vcmask 130112
      %886 = vst.msk [vmem:[#allocation2] sm:$0xff] %vm885, %v883
      %887 = vrot.lane.b32.xlu0 %v658, 112
      %v888 = vpop.permute.xlu0 %887
      %889 = vrot.lane.b32.xlu0 %v659, 112
      %v890 = vpop.permute.xlu0 %889
      %v892 = vsel %vm661, %v888, 0
      %v895 = vsel %vm661, %v890, 0
      %897 = vmatprep.subr.bf16.mxu0 0
      %898 = vmatpush1.bf16.xpose.msra.mxu0 0
      %899 = vmatprep.subr.bf16.mxu0 0
      %900 = vmatpush1.bf16.xpose.msra.mxu0 0
      %901 = vmatprep.subr.bf16.mxu0 0
      %902 = vmatpush1.bf16.xpose.msra.mxu0 0
      %903 = vmatprep.subr.bf16.mxu0 0
      %904 = vmatpush1.bf16.xpose.msra.mxu0 0
      %905 = vmatprep.subr.bf16.mxu0 0
      %906 = vmatpush1.bf16.xpose.msra.mxu0 0
      %907 = vmatprep.subr.bf16.mxu0 0
      %908 = vmatpush1.bf16.xpose.msra.mxu0 0
      %909 = vmatprep.subr.bf16.mxu0 0
      %910 = vmatpush1.bf16.xpose.msra.mxu0 0
      %911 = vmatprep.subr.bf16.mxu0 0
      %912 = vmatpush1.bf16.xpose.msra.mxu0 %v895
      %913 = vmatprep.subr.bf16.mxu0 0
      %914 = vmatpush2.bf16.xpose.msra.mxu0 0
      %915 = vmatprep.subr.bf16.mxu0 0
      %916 = vmatpush2.bf16.xpose.msra.mxu0 0
      %917 = vmatprep.subr.bf16.mxu0 0
      %918 = vmatpush2.bf16.xpose.msra.mxu0 0
      %919 = vmatprep.subr.bf16.mxu0 0
      %920 = vmatpush2.bf16.xpose.msra.mxu0 0
      %921 = vmatprep.subr.bf16.mxu0 0
      %922 = vmatpush2.bf16.xpose.msra.mxu0 0
      %923 = vmatprep.subr.bf16.mxu0 0
      %924 = vmatpush2.bf16.xpose.msra.mxu0 0
      %925 = vmatprep.subr.bf16.mxu0 0
      %926 = vmatpush2.bf16.xpose.msra.mxu0 0
      %927 = vmatprep.subr.bf16.mxu0 0
      %928 = vmatpush2.bf16.xpose.msra.mxu0 0
      %929 = vmatprep.mubr.bf16.mxu0 0
      %930 = vmatmul.mubr.bf16.gmra.mxu0 %v892
      %v931 = vpop.f32.mrf.mxu0
      %v932 = vadd.f32 0.0, %v931
      %v933 = vpop.f32.mrf.mxu0
      %v934 = vpop.f32.mrf.mxu0
      %v935 = vpop.f32.mrf.mxu0
      %936 = vdwg.mxu0
      %v937 = vsel %vm661, %v932, -inf
      %938 = vmax.xlane.f32.xlu0 %v937
      %v939 = vpop.xlane.xlu0 %938
      %v940 = vsub.f32 %v932, %v939
      %v941 = vmul.f32 %v940, 1.442695
      %v942 = vpow.pop %v941
      %v943 = vsel %vm661, %v942, 0.0
      %944 = vadd.xlane.f32.xlu0 %v943
      %v945 = vpop.xlane.xlu0 %944
      %v946 = vrcp.pop %v945
      %v947 = vpack.c.bf16 %v942, %v942
      %948 = vrot.lane.b32.xlu0 %v660, 112
      %v949 = vpop.permute.xlu0 %948
      %v951 = vsel %vm661, %v947, 0
      %v954 = vsel %vm722, %v949, 0
      %956 = vmatprep.subr.bf16.mxu0 0
      %957 = vmatpush1.bf16.msra.mxu0 0
      %958 = vmatprep.subr.bf16.mxu0 0
      %959 = vmatpush1.bf16.msra.mxu0 0
      %960 = vmatprep.subr.bf16.mxu0 0
      %961 = vmatpush1.bf16.msra.mxu0 0
      %962 = vmatprep.subr.bf16.mxu0 0
      %963 = vmatpush1.bf16.msra.mxu0 0
      %964 = vmatprep.subr.bf16.mxu0 0
      %965 = vmatpush1.bf16.msra.mxu0 0
      %966 = vmatprep.subr.bf16.mxu0 0
      %967 = vmatpush1.bf16.msra.mxu0 0
      %968 = vmatprep.subr.bf16.mxu0 0
      %969 = vmatpush1.bf16.msra.mxu0 0
      %970 = vmatprep.subr.bf16.mxu0 0
      %971 = vmatpush1.bf16.msra.mxu0 %v954
      %972 = vmatprep.subr.bf16.mxu0 0
      %973 = vmatpush2.bf16.msra.mxu0 0
      %974 = vmatprep.subr.bf16.mxu0 0
      %975 = vmatpush2.bf16.msra.mxu0 0
      %976 = vmatprep.subr.bf16.mxu0 0
      %977 = vmatpush2.bf16.msra.mxu0 0
      %978 = vmatprep.subr.bf16.mxu0 0
      %979 = vmatpush2.bf16.msra.mxu0 0
      %980 = vmatprep.subr.bf16.mxu0 0
      %981 = vmatpush2.bf16.msra.mxu0 0
      %982 = vmatprep.subr.bf16.mxu0 0
      %983 = vmatpush2.bf16.msra.mxu0 0
      %984 = vmatprep.subr.bf16.mxu0 0
      %985 = vmatpush2.bf16.msra.mxu0 0
      %986 = vmatprep.subr.bf16.mxu0 0
      %987 = vmatpush2.bf16.msra.mxu0 0
      %988 = vmatprep.mubr.bf16.mxu0 0
      %989 = vmatmul.mubr.bf16.gmra.mxu0 %v951
      %v990 = vpop.f32.mrf.mxu0
      %v991 = vadd.f32 0.0, %v990
      %v992 = vpop.f32.mrf.mxu0
      %v993 = vpop.f32.mrf.mxu0
      %v994 = vpop.f32.mrf.mxu0
      %995 = vdwg.mxu0
      %v996 = vmul.f32 %v991, %v946
      %998 = vrot.lane.b32.xlu0 %v996, 16
      %v999 = vpop.permute.xlu0 %998
      %vm1001 = vcmask 195712
      %1002 = vst.msk [vmem:[#allocation2] sm:$0xff] %vm1001, %v999
      %1003 = vrot.lane.b32.xlu0 %v658, 104
      %v1004 = vpop.permute.xlu0 %1003
      %1005 = vrot.lane.b32.xlu0 %v659, 104
      %v1006 = vpop.permute.xlu0 %1005
      %v1008 = vsel %vm661, %v1004, 0
      %v1011 = vsel %vm661, %v1006, 0
      %1013 = vmatprep.subr.bf16.mxu0 0
      %1014 = vmatpush1.bf16.xpose.msra.mxu0 0
      %1015 = vmatprep.subr.bf16.mxu0 0
      %1016 = vmatpush1.bf16.xpose.msra.mxu0 0
      %1017 = vmatprep.subr.bf16.mxu0 0
      %1018 = vmatpush1.bf16.xpose.msra.mxu0 0
      %1019 = vmatprep.subr.bf16.mxu0 0
      %1020 = vmatpush1.bf16.xpose.msra.mxu0 0
      %1021 = vmatprep.subr.bf16.mxu0 0
      %1022 = vmatpush1.bf16.xpose.msra.mxu0 0
      %1023 = vmatprep.subr.bf16.mxu0 0
      %1024 = vmatpush1.bf16.xpose.msra.mxu0 0
      %1025 = vmatprep.subr.bf16.mxu0 0
      %1026 = vmatpush1.bf16.xpose.msra.mxu0 0
      %1027 = vmatprep.subr.bf16.mxu0 0
      %1028 = vmatpush1.bf16.xpose.msra.mxu0 %v1011
      %1029 = vmatprep.subr.bf16.mxu0 0
      %1030 = vmatpush2.bf16.xpose.msra.mxu0 0
      %1031 = vmatprep.subr.bf16.mxu0 0
      %1032 = vmatpush2.bf16.xpose.msra.mxu0 0
      %1033 = vmatprep.subr.bf16.mxu0 0
      %1034 = vmatpush2.bf16.xpose.msra.mxu0 0
      %1035 = vmatprep.subr.bf16.mxu0 0
      %1036 = vmatpush2.bf16.xpose.msra.mxu0 0
      %1037 = vmatprep.subr.bf16.mxu0 0
      %1038 = vmatpush2.bf16.xpose.msra.mxu0 0
      %1039 = vmatprep.subr.bf16.mxu0 0
      %1040 = vmatpush2.bf16.xpose.msra.mxu0 0
      %1041 = vmatprep.subr.bf16.mxu0 0
      %1042 = vmatpush2.bf16.xpose.msra.mxu0 0
      %1043 = vmatprep.subr.bf16.mxu0 0
      %1044 = vmatpush2.bf16.xpose.msra.mxu0 0
      %1045 = vmatprep.mubr.bf16.mxu0 0
      %1046 = vmatmul.mubr.bf16.gmra.mxu0 %v1008
      %v1047 = vpop.f32.mrf.mxu0
      %v1048 = vadd.f32 0.0, %v1047
      %v1049 = vpop.f32.mrf.mxu0
      %v1050 = vpop.f32.mrf.mxu0
      %v1051 = vpop.f32.mrf.mxu0
      %1052 = vdwg.mxu0
      %v1053 = vsel %vm661, %v1048, -inf
      %1054 = vmax.xlane.f32.xlu0 %v1053
      %v1055 = vpop.xlane.xlu0 %1054
      %v1056 = vsub.f32 %v1048, %v1055
      %v1057 = vmul.f32 %v1056, 1.442695
      %v1058 = vpow.pop %v1057
      %v1059 = vsel %vm661, %v1058, 0.0
      %1060 = vadd.xlane.f32.xlu0 %v1059
      %v1061 = vpop.xlane.xlu0 %1060
      %v1062 = vrcp.pop %v1061
      %v1063 = vpack.c.bf16 %v1058, %v1058
      %1064 = vrot.lane.b32.xlu0 %v660, 104
      %v1065 = vpop.permute.xlu0 %1064
      %v1067 = vsel %vm661, %v1063, 0
      %v1070 = vsel %vm722, %v1065, 0
      %1072 = vmatprep.subr.bf16.mxu0 0
      %1073 = vmatpush1.bf16.msra.mxu0 0
      %1074 = vmatprep.subr.bf16.mxu0 0
      %1075 = vmatpush1.bf16.msra.mxu0 0
      %1076 = vmatprep.subr.bf16.mxu0 0
      %1077 = vmatpush1.bf16.msra.mxu0 0
      %1078 = vmatprep.subr.bf16.mxu0 0
      %1079 = vmatpush1.bf16.msra.mxu0 0
      %1080 = vmatprep.subr.bf16.mxu0 0
      %1081 = vmatpush1.bf16.msra.mxu0 0
      %1082 = vmatprep.subr.bf16.mxu0 0
      %1083 = vmatpush1.bf16.msra.mxu0 0
      %1084 = vmatprep.subr.bf16.mxu0 0
      %1085 = vmatpush1.bf16.msra.mxu0 0
      %1086 = vmatprep.subr.bf16.mxu0 0
      %1087 = vmatpush1.bf16.msra.mxu0 %v1070
      %1088 = vmatprep.subr.bf16.mxu0 0
      %1089 = vmatpush2.bf16.msra.mxu0 0
      %1090 = vmatprep.subr.bf16.mxu0 0
      %1091 = vmatpush2.bf16.msra.mxu0 0
      %1092 = vmatprep.subr.bf16.mxu0 0
      %1093 = vmatpush2.bf16.msra.mxu0 0
      %1094 = vmatprep.subr.bf16.mxu0 0
      %1095 = vmatpush2.bf16.msra.mxu0 0
      %1096 = vmatprep.subr.bf16.mxu0 0
      %1097 = vmatpush2.bf16.msra.mxu0 0
      %1098 = vmatprep.subr.bf16.mxu0 0
      %1099 = vmatpush2.bf16.msra.mxu0 0
      %1100 = vmatprep.subr.bf16.mxu0 0
      %1101 = vmatpush2.bf16.msra.mxu0 0
      %1102 = vmatprep.subr.bf16.mxu0 0
      %1103 = vmatpush2.bf16.msra.mxu0 0
      %1104 = vmatprep.mubr.bf16.mxu0 0
      %1105 = vmatmul.mubr.bf16.gmra.mxu0 %v1067
      %v1106 = vpop.f32.mrf.mxu0
      %v1107 = vadd.f32 0.0, %v1106
      %v1108 = vpop.f32.mrf.mxu0
      %v1109 = vpop.f32.mrf.mxu0
      %v1110 = vpop.f32.mrf.mxu0
      %1111 = vdwg.mxu0
      %v1112 = vmul.f32 %v1107, %v1062
      %1114 = vrot.lane.b32.xlu0 %v1112, 24
      %v1115 = vpop.permute.xlu0 %1114
      %vm1117 = vcmask 261312
      %1118 = vst.msk [vmem:[#allocation2] sm:$0xff] %vm1117, %v1115
      %v1119 = vld [vmem:[%s9] sm:$0x1]
      %v1121 = vlaneseq
      %v1122 = vshrl.u32 %v1121, 7
      %v1123 = vsub.s32 0, %v1122
      %v1124 = vrot.slane %v1119, %v1123
      %v1126 = vadd.f32 %v458, %v1124
      %v1127 = vld [vmem:[#allocation2] sm:$0xff]
      %v1128 = vpack.c.bf16 %v1127, %v1127
      %v1129 = vld [vmem:[%s8] sm:$0xf]
      %v1130 = vld [vmem:[%s8 + $0x4] sm:$0xf]
      %v1131 = vld [vmem:[%s8 + $0x8] sm:$0xf]
      %v1132 = vld [vmem:[%s8 + $0xc] sm:$0xf]
      %v1137 = vunpack.c.l.b16 %v1129
      %v1138 = vunpack.c.l.b16 %v1130
      %v1139 = vunpack.c.l.b16 %v1131
      %v1140 = vunpack.c.l.b16 %v1132
      %v1141 = vpack.c.b16 %v1138, %v1137
      %v1142 = vpack.c.b16 %v1140, %v1139
      %v1146 = vsel %vm485, %v1128, 0
      %1148 = vmatprep.subr.bf16.mxu0 0
      %1149 = vmatpush1.bf16.msra.mxu0 0
      %1150 = vmatprep.subr.bf16.mxu0 0
      %1151 = vmatpush1.bf16.msra.mxu0 0
      %1152 = vmatprep.subr.bf16.mxu0 0
      %1153 = vmatpush1.bf16.msra.mxu0 0
      %1154 = vmatprep.subr.bf16.mxu0 0
      %1155 = vmatpush1.bf16.msra.mxu0 0
      %1156 = vmatprep.subr.bf16.mxu0 0
      %1157 = vmatpush1.bf16.msra.mxu0 0
      %1158 = vmatprep.subr.bf16.mxu0 0
      %1159 = vmatpush1.bf16.msra.mxu0 0
      %1160 = vmatprep.subr.bf16.mxu0 0
      %1161 = vmatpush1.bf16.msra.mxu0 %v1142
      %1162 = vmatprep.subr.bf16.mxu0 0
      %1163 = vmatpush1.bf16.msra.mxu0 %v1141
      %1164 = vmatprep.subr.bf16.mxu0 0
      %1165 = vmatpush2.bf16.msra.mxu0 0
      %1166 = vmatprep.subr.bf16.mxu0 0
      %1167 = vmatpush2.bf16.msra.mxu0 0
      %1168 = vmatprep.subr.bf16.mxu0 0
      %1169 = vmatpush2.bf16.msra.mxu0 0
      %1170 = vmatprep.subr.bf16.mxu0 0
      %1171 = vmatpush2.bf16.msra.mxu0 0
      %1172 = vmatprep.subr.bf16.mxu0 0
      %1173 = vmatpush2.bf16.msra.mxu0 0
      %1174 = vmatprep.subr.bf16.mxu0 0
      %1175 = vmatpush2.bf16.msra.mxu0 0
      %1176 = vmatprep.subr.bf16.mxu0 0
      %1177 = vmatpush2.bf16.msra.mxu0 0
      %1178 = vmatprep.subr.bf16.mxu0 0
      %1179 = vmatpush2.bf16.msra.mxu0 0
      %1180 = vmatprep.mubr.bf16.mxu0 0
      %1181 = vmatmul.mubr.bf16.gmra.mxu0 %v1146
      %v1182 = vpop.f32.mrf.mxu0
      %v1183 = vadd.f32 0.0, %v1182
      %v1184 = vpop.f32.mrf.mxu0
      %v1185 = vpop.f32.mrf.mxu0
      %v1186 = vpop.f32.mrf.mxu0
      %1187 = vdwg.mxu0
      %v1188 = vadd.f32 %v1126, %v1183
      %v1189 = vsel %vm485, %v1188, 0.0
      %1190 = vadd.xlane.f32.xlu0 %v1189
      %v1191 = vpop.xlane.xlu0 %1190
      %v1192 = vrcp.pop 32.0
      %v1193 = vmul.f32 %v1191, %v1192
      %v1194 = vsub.f32 %v1188, %v1193
      %v1195 = vmul.f32 %v1194, %v1194
      %v1196 = vsel %vm485, %v1195, 0.0
      %1197 = vadd.xlane.f32.xlu0 %v1196
      %v1198 = vpop.xlane.xlu0 %1197
      %v1199 = vmul.f32 %v1198, %v1192
      %v1200 = vadd.f32 %v1199, 1e-05
      %v1201 = vrsqrt.pop %v1200
      %v1202 = vmul.f32 %v1194, %v1201
      %v1203 = vld [vmem:[%s10] sm:$0x1]
      %v1205 = vlaneseq
      %v1206 = vshrl.u32 %v1205, 7
      %v1207 = vsub.s32 0, %v1206
      %v1208 = vrot.slane %v1203, %v1207
      %v1210 = vmul.f32 %v1202, %v1208
      %v1211 = vld [vmem:[%s11] sm:$0x1]
      %v1213 = vlaneseq
      %v1214 = vshrl.u32 %v1213, 7
      %v1215 = vsub.s32 0, %v1214
      %v1216 = vrot.slane %v1211, %v1215
      %v1218 = vadd.f32 %v1210, %v1216
      %1219 = vst.msk [vmem:[%s456] sm:$0xff] %vm485, %v1218
      %p1220 = scmp.lt.s32.totalorder %s27, 1
      %s1221 = scalar_select %p1220, %s27, 1
      %p1222 = scmp.lt.s32.totalorder %s28, 0
      %s1223 = scalar_select %p1222, %s28, 0
      %s1224 = sadd.s32 %s1223, %s1221
      %s1225 = smul.addr %s1224, 8
      %s1226 = scalar_lea.vmem %s12, %s1225
      // Predicated region
      $region69: #{transformer_decoder.9} parent=67 // pred_check
        %p1227 = pneg %p319
      $region70: #{transformer_decoder.9} parent=67 // pred_check_branch
        %1229 = sbr.rel (%p1227) target = $region72
      $region71: #{transformer_decoder.9} parent=67 // pred_region
        _
      $region72: #{transformer_decoder.9} parent=67 // pred_fallthru
        _
    $region68: #{transformer_decoder.9} parent=5 // pred_fallthru
      _
    %p1230 = scmp.le.s32.totalorder 2, %s18
    // Predicated region
    $region73: #{transformer_decoder.9} parent=5 // pred_check
      %p1231 = pneg %p1230
    $region74: #{transformer_decoder.9} parent=5 // pred_check_branch
      %1233 = sbr.rel (%p1231) target = $region76
    $region75: #{transformer_decoder.9} parent=5 // pred_region
      %s1234 = ssub.s32 %s18, 2
      // Predicated region
      $region77: #{transformer_decoder.9} parent=75 // pred_check
        %p1235 = pneg %p325
      $region78: #{transformer_decoder.9} parent=75 // pred_check_branch
        %1237 = sbr.rel (%p1235) target = $region80
      $region79: #{transformer_decoder.9} parent=75 // pred_region
        %p1238 = scmp.lt.s32.totalorder %s29, 1
        %s1239 = scalar_select %p1238, %s29, 1
        %p1240 = scmp.lt.s32.totalorder %s30, 0
        %s1241 = scalar_select %p1240, %s30, 0
        %s1242 = sadd.s32 %s1241, %s1239
        %s1243 = smul.addr %s1242, 8
        %s1244 = scalar_lea.vmem %s12, %s1243
      $region80: #{transformer_decoder.9} parent=75 // pred_fallthru
        _
    $region76: #{transformer_decoder.9} parent=5 // pred_fallthru
      _
  $region6: #{transformer_decoder.9} parent=0 // loop_footer
    %s22 = sadd.s32 1, %s18
  $region7: #{transformer_decoder.9} parent=0 // loop_footer_branch
    %17 = sbr.rel target = $region3
  $region8: #{transformer_decoder.9} parent=0 // loop_exit
    _

// kernel: transformer_decoder.11
$region0: #{transformer_decoder.11}
  #allocation0 [shape = 'u32[]', space=smem, size = 0x4, offset = 0x4, fixed_abs, tag = 'smem constant byte address 0x4 - core index']
  #allocation1 [shape = 'u32[144,128]{1,0:T(1,128)}', space=vmem, size = 0x12000, scoped, tag = 'internal scratch']
  #allocation2 [shape = 'f32[16,32]{1,0:T(8,128)}', space=vmem, size = 0x2000, scoped, tag = 'scratch operand']
  %s0 = inlined_call_operand.vmem [shape: f32[16,32], index: 0, kind: input, shape index: {}]
  %s1 = inlined_call_operand.vmem [shape: bf16[32,64], index: 1, kind: input, shape index: {}]
  %s2 = inlined_call_operand.vmem [shape: f32[1,64], index: 2, kind: input, shape index: {}]
  %s3 = inlined_call_operand.vmem [shape: bf16[64,32], index: 3, kind: input, shape index: {}]
  %s4 = inlined_call_operand.vmem [shape: f32[1,32], index: 4, kind: input, shape index: {}]
  %s5 = inlined_call_operand.vmem [shape: f32[1,32], index: 5, kind: input, shape index: {}]
  %s6 = inlined_call_operand.vmem [shape: f32[1,32], index: 6, kind: input, shape index: {}]
  %s7 = inlined_call_operand.vmem [shape: f32[1,32], index: 7, kind: input, shape index: {}]
  %s8 = inlined_call_operand.vmem [shape: f32[1,32], index: 8, kind: input, shape index: {}]
  %s9 = inlined_call_operand.hbm [shape: f32[16,32], index: 9, kind: output, shape index: {}]
  %s10 = sld [smem:[#allocation0]]
  $region54: #{transformer_decoder.11} parent=0
    _
  %s12 = ssub.s32 1, %s10
  %s13 = scalar_select 0, %s12, %s10
  $region1: #{transformer_decoder.11} parent=0
    #allocation3 [shape = 'u8[8192]{0}', space=vmem, size = 0x2000, scoped, tag = 'output window, operand 0, single buffered']
    #allocation4 [shape = 's32[1]{0}', space=sflag, size = 0x4, scoped, tag = 'scoped memory for transformer_decoder.11']
    %14 = vsyncpa [#allocation4], 0
    // Predicated region
    $region2: #{transformer_decoder.11} parent=1 // pred_check
      _
    $region3: #{transformer_decoder.11} parent=1 // pred_check_branch
      %16 = sbr.rel (0) target = $region5
    $region4: #{transformer_decoder.11} parent=1 // pred_region
      _
    $region5: #{transformer_decoder.11} parent=1 // pred_fallthru
      _
    // Predicated region
    $region6: #{transformer_decoder.11} parent=1 // pred_check
      _
    $region7: #{transformer_decoder.11} parent=1 // pred_check_branch
      %18 = sbr.rel (0) target = $region9
    $region8: #{transformer_decoder.11} parent=1 // pred_region
      _
    $region9: #{transformer_decoder.11} parent=1 // pred_fallthru
      _
    // Predicated region
    $region10: #{transformer_decoder.11} parent=1 // pred_check
      _
    $region11: #{transformer_decoder.11} parent=1 // pred_check_branch
      %20 = sbr.rel (0) target = $region13
    $region12: #{transformer_decoder.11} parent=1 // pred_region
      _
    $region13: #{transformer_decoder.11} parent=1 // pred_fallthru
      _
    // Predicated region
    $region14: #{transformer_decoder.11} parent=1 // pred_check
      _
    $region15: #{transformer_decoder.11} parent=1 // pred_check_branch
      %22 = sbr.rel (0) target = $region17
    $region16: #{transformer_decoder.11} parent=1 // pred_region
      _
    $region17: #{transformer_decoder.11} parent=1 // pred_fallthru
      _
    // Predicated region
    $region18: #{transformer_decoder.11} parent=1 // pred_check
      _
    $region19: #{transformer_decoder.11} parent=1 // pred_check_branch
      %24 = sbr.rel (0) target = $region21
    $region20: #{transformer_decoder.11} parent=1 // pred_region
      _
    $region21: #{transformer_decoder.11} parent=1 // pred_fallthru
      _
    // Predicated region
    $region22: #{transformer_decoder.11} parent=1 // pred_check
      _
    $region23: #{transformer_decoder.11} parent=1 // pred_check_branch
      %26 = sbr.rel (0) target = $region25
    $region24: #{transformer_decoder.11} parent=1 // pred_region
      _
    $region25: #{transformer_decoder.11} parent=1 // pred_fallthru
      _
    // Predicated region
    $region26: #{transformer_decoder.11} parent=1 // pred_check
      _
    $region27: #{transformer_decoder.11} parent=1 // pred_check_branch
      %28 = sbr.rel (0) target = $region29
    $region28: #{transformer_decoder.11} parent=1 // pred_region
      _
    $region29: #{transformer_decoder.11} parent=1 // pred_fallthru
      _
    // Predicated region
    $region30: #{transformer_decoder.11} parent=1 // pred_check
      _
    $region31: #{transformer_decoder.11} parent=1 // pred_check_branch
      %30 = sbr.rel (0) target = $region33
    $region32: #{transformer_decoder.11} parent=1 // pred_region
      _
    $region33: #{transformer_decoder.11} parent=1 // pred_fallthru
      _
    // Predicated region
    $region34: #{transformer_decoder.11} parent=1 // pred_check
      _
    $region35: #{transformer_decoder.11} parent=1 // pred_check_branch
      %32 = sbr.rel (0) target = $region37
    $region36: #{transformer_decoder.11} parent=1 // pred_region
      _
    $region37: #{transformer_decoder.11} parent=1 // pred_fallthru
      _
    %p34 = scmp.eq.s32.totalorder 0, 0
    // Predicated region
    $region38: #{transformer_decoder.11} parent=1 // pred_check
      %p35 = pneg %p34
    $region39: #{transformer_decoder.11} parent=1 // pred_check_branch
      %37 = sbr.rel (%p35) target = $region41
    $region40: #{transformer_decoder.11} parent=1 // pred_region
      %vm38 = vcmask 261120
      %39 = vst.msk [vmem:[#allocation2] sm:$0xff] %vm38, 0.0
      %40 = vst.msk [vmem:[#allocation2 + $0x8] sm:$0xff] %vm38, 0.0
    $region41: #{transformer_decoder.11} parent=1 // pred_fallthru
      _
    %v41 = vld [vmem:[%s0] sm:$0xff]
    %v42 = vld [vmem:[%s0 + $0x8] sm:$0xff]
    %v43 = vpack.c.bf16 %v42, %v41
    %v44 = vld [vmem:[%s1] sm:$0xf]
    %v45 = vld [vmem:[%s1 + $0x4] sm:$0xf]
    %v46 = vld [vmem:[%s1 + $0x8] sm:$0xf]
    %v47 = vld [vmem:[%s1 + $0xc] sm:$0xf]
    %v48 = vld [vmem:[%s2] sm:$0x1]
    %v50 = vlaneseq
    %v51 = vshrl.u32 %v50, 7
    %v52 = vsub.s32 0, %v51
    %v53 = vrot.slane %v48, %v52
    %v59 = vunpack.c.l.b16 %v44
    %v60 = vunpack.c.l.b16 %v45
    %v61 = vunpack.c.l.b16 %v46
    %v62 = vunpack.c.l.b16 %v47
    %v63 = vpack.c.b16 %v60, %v59
    %v64 = vpack.c.b16 %v62, %v61
    %vm67 = vcmask 261120
    %v69 = vsel %vm67, %v43, 0
    %71 = vmatprep.subr.bf16.mxu0 0
    %72 = vmatpush1.bf16.msra.mxu0 0
    %73 = vmatprep.subr.bf16.mxu0 0
    %74 = vmatpush1.bf16.msra.mxu0 0
    %75 = vmatprep.subr.bf16.mxu0 0
    %76 = vmatpush1.bf16.msra.mxu0 0
    %77 = vmatprep.subr.bf16.mxu0 0
    %78 = vmatpush1.bf16.msra.mxu0 0
    %79 = vmatprep.subr.bf16.mxu0 0
    %80 = vmatpush1.bf16.msra.mxu0 0
    %81 = vmatprep.subr.bf16.mxu0 0
    %82 = vmatpush1.bf16.msra.mxu0 0
    %83 = vmatprep.subr.bf16.mxu0 0
    %84 = vmatpush1.bf16.msra.mxu0 %v64
    %85 = vmatprep.subr.bf16.mxu0 0
    %86 = vmatpush1.bf16.msra.mxu0 %v63
    %87 = vmatprep.subr.bf16.mxu0 0
    %88 = vmatpush2.bf16.msra.mxu0 0
    %89 = vmatprep.subr.bf16.mxu0 0
    %90 = vmatpush2.bf16.msra.mxu0 0
    %91 = vmatprep.subr.bf16.mxu0 0
    %92 = vmatpush2.bf16.msra.mxu0 0
    %93 = vmatprep.subr.bf16.mxu0 0
    %94 = vmatpush2.bf16.msra.mxu0 0
    %95 = vmatprep.subr.bf16.mxu0 0
    %96 = vmatpush2.bf16.msra.mxu0 0
    %97 = vmatprep.subr.bf16.mxu0 0
    %98 = vmatpush2.bf16.msra.mxu0 0
    %99 = vmatprep.subr.bf16.mxu0 0
    %100 = vmatpush2.bf16.msra.mxu0 0
    %101 = vmatprep.subr.bf16.mxu0 0
    %102 = vmatpush2.bf16.msra.mxu0 0
    %103 = vmatprep.mubr.bf16.mxu0 0
    %104 = vmatmul.mubr.bf16.gmra.mxu0 %v69
    %v105 = vpop.f32.mrf.mxu0
    %v106 = vadd.f32 %v53, %v105
    %v107 = vpop.f32.mrf.mxu0
    %v108 = vpop.f32.mrf.mxu0
    %v109 = vadd.f32 %v53, %v108
    %v110 = vpop.f32.mrf.mxu0
    %111 = vdwg.mxu0
    %v112 = vmax.f32 %v106, 0.0
    %v113 = vmax.f32 %v109, 0.0
    %v114 = vld [vmem:[#allocation2] sm:$0xff]
    %v115 = vld [vmem:[#allocation2 + $0x8] sm:$0xff]
    %v116 = vpack.c.bf16 %v113, %v112
    %v117 = vld [vmem:[%s3] sm:$0xf]
    %v118 = vld [vmem:[%s3 + $0x4] sm:$0xf]
    %v119 = vld [vmem:[%s3 + $0x8] sm:$0xf]
    %v120 = vld [vmem:[%s3 + $0xc] sm:$0xf]
    %v121 = vld [vmem:[%s3 + $0x10] sm:$0xf]
    %v122 = vld [vmem:[%s3 + $0x14] sm:$0xf]
    %v123 = vld [vmem:[%s3 + $0x18] sm:$0xf]
    %v124 = vld [vmem:[%s3 + $0x1c] sm:$0xf]
    %v133 = vunpack.c.l.b16 %v117
    %v134 = vunpack.c.l.b16 %v118
    %v135 = vunpack.c.l.b16 %v119
    %v136 = vunpack.c.l.b16 %v120
    %v137 = vunpack.c.l.b16 %v121
    %v138 = vunpack.c.l.b16 %v122
    %v139 = vunpack.c.l.b16 %v123
    %v140 = vunpack.c.l.b16 %v124
    %v141 = vpack.c.b16 %v134, %v133
    %v142 = vpack.c.b16 %v136, %v135
    %v143 = vpack.c.b16 %v138, %v137
    %v144 = vpack.c.b16 %v140, %v139
    %vm149 = vcmask 523264
    %v151 = vsel %vm149, %v116, 0
    %153 = vmatprep.subr.bf16.mxu0 0
    %154 = vmatpush1.bf16.msra.mxu0 0
    %155 = vmatprep.subr.bf16.mxu0 0
    %156 = vmatpush1.bf16.msra.mxu0 0
    %157 = vmatprep.subr.bf16.mxu0 0
    %158 = vmatpush1.bf16.msra.mxu0 0
    %159 = vmatprep.subr.bf16.mxu0 0
    %160 = vmatpush1.bf16.msra.mxu0 0
    %161 = vmatprep.subr.bf16.mxu0 0
    %162 = vmatpush1.bf16.msra.mxu0 %v144
    %163 = vmatprep.subr.bf16.mxu0 0
    %164 = vmatpush1.bf16.msra.mxu0 %v143
    %165 = vmatprep.subr.bf16.mxu0 0
    %166 = vmatpush1.bf16.msra.mxu0 %v142
    %167 = vmatprep.subr.bf16.mxu0 0
    %168 = vmatpush1.bf16.msra.mxu0 %v141
    %169 = vmatprep.subr.bf16.mxu0 0
    %170 = vmatpush2.bf16.msra.mxu0 0
    %171 = vmatprep.subr.bf16.mxu0 0
    %172 = vmatpush2.bf16.msra.mxu0 0
    %173 = vmatprep.subr.bf16.mxu0 0
    %174 = vmatpush2.bf16.msra.mxu0 0
    %175 = vmatprep.subr.bf16.mxu0 0
    %176 = vmatpush2.bf16.msra.mxu0 0
    %177 = vmatprep.subr.bf16.mxu0 0
    %178 = vmatpush2.bf16.msra.mxu0 0
    %179 = vmatprep.subr.bf16.mxu0 0
    %180 = vmatpush2.bf16.msra.mxu0 0
    %181 = vmatprep.subr.bf16.mxu0 0
    %182 = vmatpush2.bf16.msra.mxu0 0
    %183 = vmatprep.subr.bf16.mxu0 0
    %184 = vmatpush2.bf16.msra.mxu0 0
    %185 = vmatprep.mubr.bf16.mxu0 0
    %186 = vmatmul.mubr.bf16.gmra.mxu0 %v151
    %v187 = vpop.f32.mrf.mxu0
    %v188 = vadd.f32 0.0, %v187
    %v189 = vpop.f32.mrf.mxu0
    %v190 = vpop.f32.mrf.mxu0
    %v191 = vadd.f32 0.0, %v190
    %v192 = vpop.f32.mrf.mxu0
    %193 = vdwg.mxu0
    %v194 = vadd.f32 %v114, %v188
    %v195 = vadd.f32 %v115, %v191
    %196 = vst.msk [vmem:[#allocation2] sm:$0xff] %vm67, %v194
    %197 = vst.msk [vmem:[#allocation2 + $0x8] sm:$0xff] %vm67, %v195
    // Predicated region
    $region42: #{transformer_decoder.11} parent=1 // pred_check
      %p198 = pneg %p34
    $region43: #{transformer_decoder.11} parent=1 // pred_check_branch
      %200 = sbr.rel (%p198) target = $region45
    $region44: #{transformer_decoder.11} parent=1 // pred_region
      %v201 = vld [vmem:[#allocation2] sm:$0xff]
      %v202 = vld [vmem:[#allocation2 + $0x8] sm:$0xff]
      %v203 = vld [vmem:[%s4] sm:$0x1]
      %v205 = vlaneseq
      %v206 = vshrl.u32 %v205, 7
      %v207 = vsub.s32 0, %v206
      %v208 = vrot.slane %v203, %v207
      %v210 = vadd.f32 %v201, %v208
      %v211 = vadd.f32 %v202, %v208
      %v212 = vadd.f32 %v210, %v41
      %v213 = vadd.f32 %v211, %v42
      %v214 = vsel %vm67, %v212, 0.0
      %215 = vadd.xlane.f32.xlu0 %v214
      %v216 = vpop.xlane.xlu0 %215
      %v217 = vsel %vm67, %v213, 0.0
      %218 = vadd.xlane.f32.xlu0 %v217
      %v219 = vpop.xlane.xlu0 %218
      %v220 = vrcp.pop 32.0
      %v221 = vmul.f32 %v216, %v220
      %v222 = vmul.f32 %v219, %v220
      %v223 = vsub.f32 %v212, %v221
      %v224 = vsub.f32 %v213, %v222
      %v225 = vmul.f32 %v223, %v223
      %v226 = vmul.f32 %v224, %v224
      %v227 = vsel %vm67, %v225, 0.0
      %228 = vadd.xlane.f32.xlu0 %v227
      %v229 = vpop.xlane.xlu0 %228
      %v230 = vsel %vm67, %v226, 0.0
      %231 = vadd.xlane.f32.xlu0 %v230
      %v232 = vpop.xlane.xlu0 %231
      %v233 = vmul.f32 %v229, %v220
      %v234 = vmul.f32 %v232, %v220
      %v235 = vadd.f32 %v233, 1e-05
      %v236 = vadd.f32 %v234, 1e-05
      %v237 = vrsqrt.pop %v235
      %v238 = vrsqrt.pop %v236
      %v239 = vmul.f32 %v223, %v237
      %v240 = vmul.f32 %v224, %v238
      %v241 = vld [vmem:[%s5] sm:$0x1]
      %v243 = vlaneseq
      %v244 = vshrl.u32 %v243, 7
      %v245 = vsub.s32 0, %v244
      %v246 = vrot.slane %v241, %v245
      %v248 = vmul.f32 %v239, %v246
      %v249 = vmul.f32 %v240, %v246
      %v250 = vld [vmem:[%s6] sm:$0x1]
      %v252 = vlaneseq
      %v253 = vshrl.u32 %v252, 7
      %v254 = vsub.s32 0, %v253
      %v255 = vrot.slane %v250, %v254
      %v257 = vadd.f32 %v248, %v255
      %v258 = vadd.f32 %v249, %v255
      %v259 = vsel %vm67, %v257, 0.0
      %260 = vadd.xlane.f32.xlu0 %v259
      %v261 = vpop.xlane.xlu0 %260
      %v262 = vsel %vm67, %v258, 0.0
      %263 = vadd.xlane.f32.xlu0 %v262
      %v264 = vpop.xlane.xlu0 %263
      %v265 = vmul.f32 %v261, %v220
      %v266 = vmul.f32 %v264, %v220
      %v267 = vsub.f32 %v257, %v265
      %v268 = vsub.f32 %v258, %v266
      %v269 = vmul.f32 %v267, %v267
      %v270 = vmul.f32 %v268, %v268
      %v271 = vsel %vm67, %v269, 0.0
      %272 = vadd.xlane.f32.xlu0 %v271
      %v273 = vpop.xlane.xlu0 %272
      %v274 = vsel %vm67, %v270, 0.0
      %275 = vadd.xlane.f32.xlu0 %v274
      %v276 = vpop.xlane.xlu0 %275
      %v277 = vmul.f32 %v273, %v220
      %v278 = vmul.f32 %v276, %v220
      %v279 = vadd.f32 %v277, 1e-05
      %v280 = vadd.f32 %v278, 1e-05
      %v281 = vrsqrt.pop %v279
      %v282 = vrsqrt.pop %v280
      %v283 = vmul.f32 %v267, %v281
      %v284 = vmul.f32 %v268, %v282
      %v285 = vld [vmem:[%s7] sm:$0x1]
      %v287 = vlaneseq
      %v288 = vshrl.u32 %v287, 7
      %v289 = vsub.s32 0, %v288
      %v290 = vrot.slane %v285, %v289
      %v292 = vmul.f32 %v283, %v290
      %v293 = vmul.f32 %v284, %v290
      %v294 = vld [vmem:[%s8] sm:$0x1]
      %v296 = vlaneseq
      %v297 = vshrl.u32 %v296, 7
      %v298 = vsub.s32 0, %v297
      %v299 = vrot.slane %v294, %v298
      %v301 = vadd.f32 %v292, %v299
      %v302 = vadd.f32 %v293, %v299
      %303 = vst.msk [vmem:[#allocation3] sm:$0xff] %vm67, %v301
      %304 = vst.msk [vmem:[#allocation3 + $0x8] sm:$0xff] %vm67, %v302
    $region45: #{transformer_decoder.11} parent=1 // pred_fallthru
      _
    // Predicated region
    $region46: #{transformer_decoder.11} parent=1 // pred_check
      _
    $region47: #{transformer_decoder.11} parent=1 // pred_check_branch
      %306 = sbr.rel (0) target = $region49
    $region48: #{transformer_decoder.11} parent=1 // pred_region
      %s308 = ssub.s32 256, 256
      %309 = vsyncadd [#allocation4], %s308
      %s310 = sshll.u32 [#allocation3], 4
      %s311 = int_to_ptr.vmem [resolvable:$true] %s310
      %316 = dma.vmem_to_hbm [thread:$0]  %s311, 256, %s9, [#allocation4], 128, 128, 8
    $region49: #{transformer_decoder.11} parent=1 // pred_fallthru
      _
    // Predicated region
    $region50: #{transformer_decoder.11} parent=1 // pred_check
      _
    $region51: #{transformer_decoder.11} parent=1 // pred_check_branch
      %318 = sbr.rel (0) target = $region53
    $region52: #{transformer_decoder.11} parent=1 // pred_region
      %319 = dma.done [#allocation4], 256
    $region53: #{transformer_decoder.11} parent=1 // pred_fallthru
      _
    %320 = vsyncpa [#allocation4], 1

</llo_original>
